<compile_context>
chip_gen: v6e
topology: v6e:2x2x1
jax: 0.10.0
libtpu: 0.0.40
codegen_flags: <defaults>
</compile_context>

<pallas_src>
import functools

import jax
import jax.numpy as jnp
from jax import lax
from jax.experimental import pallas as pl
from jax.experimental.pallas import tpu as pltpu

PRIMITIVES = [
    "none",
    "max_pool_3x3",
    "avg_pool_3x3",
    "skip_connect",
    "sep_conv_3x3",
    "sep_conv_5x5",
    "dil_conv_3x3",
    "dil_conv_5x5",
]
EPS = 1e-5
PAD = 4          # H-halo of the shared padded input (covers dil_conv_5x5)
HALO = 8         # top/bottom halo rows of the inner-dw scratch (sublane-aligned)
_REF_PREC = lax.Precision.HIGHEST  # reference (pure JAX) only


def _full_spec(shape):
  nd = len(shape)
  return pl.BlockSpec(shape, lambda *_: (0,) * nd)


# ----------------------------------------------------------------------------
# The single fused MixedOp kernel.
# Layout: activations are (N*H, W*C) f32 (lane-dense, W*C == 128 in the test);
# the padded input is (N, H+2*PAD, W*C) — padded in H only.
# ----------------------------------------------------------------------------
def _mixed_kernel(w_ref,                       # SMEM (8,)  arch weights
                  xp_ref,                      # (N, Hp, W*C) H-zero-padded input
                  t_s3a_ref, t_s3b_ref,        # depthwise taps, (k*k, W*C),
                  t_s5a_ref, t_s5b_ref,        #   W-edge masks folded in
                  t_d3_ref, t_d5_ref,
                  m_s3a_ref, m_s3b_ref,        # 1x1 convs as block-diag (WC,WC) bf16
                  m_s5a_ref, m_s5b_ref,
                  m_d3_ref, m_d5_ref,
                  o_ref,                       # (N*H, W*C) f32 output
                  pbuf_ref,                    # VMEM scratch (N, H+2*HALO, W*C)
                  *, N, H, W, C):
  NH = N * H
  WC = W * C
  inv_nhw = 1.0 / float(N * H * W)

  xp = xp_ref[...]                             # (N, Hp, WC)

  # Zero ONLY the halo rows of the inner-dw scratch (aligned full-lane stores);
  # the interior is always overwritten before being read.
  pbuf_ref[:, 0:HALO, :] = jnp.zeros((N, HALO, WC), jnp.float32)
  pbuf_ref[:, HALO + H:2 * HALO + H, :] = jnp.zeros((N, HALO, WC), jnp.float32)

  # ---- hoisted index masks / constants (computed once) --------------------
  hper = lax.broadcasted_iota(jnp.int32, (N, H, WC), 1).reshape(NH, WC)
  lane = lax.broadcasted_iota(jnp.int32, (1, WC), 1)
  rtop = hper >= 1                     # row valid for a dh = -1 tap
  rbot = hper <= H - 2                 # row valid for a dh = +1 tap
  cleft = lane >= C                    # lane valid for a dw = -1 tap
  cright = lane < (W - 1) * C          # lane valid for a dw = +1 tap
  cleft_f = cleft.astype(jnp.float32)
  cright_f = cright.astype(jnp.float32)
  inv_cnt = 1.0 / (                    # avg-pool reciprocal divisor (4/6/9)
      (1.0 + rtop.astype(jnp.float32) + rbot.astype(jnp.float32)) *
      (1.0 + cleft_f + cright_f))

  def lroll(v2, dw):                   # lane roll realizing a W-offset of dw
    if dw == 0:
      return v2
    return pltpu.roll(v2, shift=(-dw * C) % WC, axis=1)

  def chan_total(row):                 # (1, WC): per-channel total over W,
    acc = row                          # broadcast back to every w position
    if W & (W - 1) == 0:               # log-step doubling (W power of two)
      s = 1
      while s < W:
        acc = acc + pltpu.roll(acc, shift=s * C, axis=1)
        s *= 2
    else:                              # fallback: linear
      for j in range(1, W):
        acc = acc + pltpu.roll(row, shift=j * C, axis=1)
    return acc

  def bn(y2):                          # training-mode BN, affine=False
    mean = chan_total(jnp.sum(y2, axis=0, keepdims=True)) * inv_nhw
    d = y2 - mean
    var = chan_total(jnp.sum(d * d, axis=0, keepdims=True)) * inv_nhw
    return d * lax.rsqrt(var + EPS)

  def pw(y2, m_ref):                   # 1x1 conv: block-diag MXU matmul
    return jnp.dot(y2.astype(jnp.bfloat16), m_ref[...],
                   preferred_element_type=jnp.float32)

  def dw_outer(xr, taps_ref, k, d):
    # Depthwise conv over the relu'd H-padded input.  W zero-padding is folded
    # into the tap rows, so each tap is: (shared) row slice + lane roll + FMA.
    p = d * (k - 1) // 2
    acc = jnp.zeros((NH, WC), jnp.float32)
    for kh in range(k):
      r0 = PAD - p + kh * d
      rs = xr[:, r0:r0 + H, :].reshape(NH, WC)
      for kw in range(k):
        i = kh * k + kw
        acc = acc + lroll(rs, kw * d - p) * taps_ref[i:i + 1, :]
    return acc

  def dw_inner(y2, taps_ref, k):
    # relu -> kxk depthwise conv (stride 1, zero pad).  Rows come from the
    # lane-aligned scratch (interior stored at sublane-aligned row HALO,
    # zero halo provides the H padding); W padding is folded into the taps.
    p = (k - 1) // 2
    pbuf_ref[:, HALO:HALO + H, :] = jnp.maximum(y2, 0.0).reshape(N, H, WC)
    acc = jnp.zeros((NH, WC), jnp.float32)
    for kh in range(k):
      r0 = HALO - p + kh
      rs = pbuf_ref[:, r0:r0 + H, :].reshape(NH, WC)
      for kw in range(k):
        i = kh * k + kw
        acc = acc + lroll(rs, kw - p) * taps_ref[i:i + 1, :]
    return acc

  # ---- pools (3x3, stride 1, pad 1) + skip_connect -------------------------
  x0 = xp[:, PAD:PAD + H, :].reshape(NH, WC)           # the original x
  mx = x0                                              # center tap always valid
  sm = x0
  for kh in range(3):
    dh = kh - 1
    if dh == 0:
      rs = x0
    else:
      rs = xp[:, PAD + dh:PAD + dh + H, :].reshape(NH, WC)   # zero rows outside
    rmask = rtop if dh < 0 else (rbot if dh > 0 else None)
    for kw in range(3):
      dw = kw - 1
      if dh == 0 and dw == 0:
        continue                                       # center handled above
      v = lroll(rs, dw)
      # avg-pool sum: zero the lane wrap; padded rows already contribute 0.
      if dw < 0:
        sm = sm + v * cleft_f
      elif dw > 0:
        sm = sm + v * cright_f
      else:
        sm = sm + v
      # max-pool: -inf at wrapped / padded positions (border taps only).
      vm = v
      if dw < 0:
        vm = jnp.where(cleft, vm, -jnp.inf)
      elif dw > 0:
        vm = jnp.where(cright, vm, -jnp.inf)
      if rmask is not None:
        vm = jnp.where(rmask, vm, -jnp.inf)
      mx = jnp.maximum(mx, vm)
  avg = sm * inv_cnt                                   # count_include_pad=False

  # ---- weighted accumulation ('none' == exact zero, skipped) ---------------
  out = w_ref[3] * x0                                  # skip_connect
  out = out + w_ref[1] * bn(mx)                        # max_pool_3x3 -> BN
  out = out + w_ref[2] * bn(avg)                       # avg_pool_3x3 -> BN

  # ---- conv primitives ------------------------------------------------------
  xr = jnp.maximum(xp, 0.0)                            # ReLU once (pad rows stay 0)
  a_s3 = dw_outer(xr, t_s3a_ref, 3, 1)                 # all outer dw back-to-back
  a_s5 = dw_outer(xr, t_s5a_ref, 5, 1)                 # -> short live range for xr
  a_d3 = dw_outer(xr, t_d3_ref, 3, 2)
  a_d5 = dw_outer(xr, t_d5_ref, 5, 2)

  out = out + w_ref[6] * bn(pw(a_d3, m_d3_ref))        # dil_conv_3x3
  out = out + w_ref[7] * bn(pw(a_d5, m_d5_ref))        # dil_conv_5x5

  y = bn(pw(a_s3, m_s3a_ref))                          # sep_conv_3x3
  y = bn(pw(dw_inner(y, t_s3b_ref, 3), m_s3b_ref))
  out = out + w_ref[4] * y

  y = bn(pw(a_s5, m_s5a_ref))                          # sep_conv_5x5
  y = bn(pw(dw_inner(y, t_s5b_ref, 5), m_s5b_ref))
  out = out + w_ref[5] * y

  o_ref[...] = out


# ----------------------------------------------------------------------------
# Wrapper: NCHW -> NHWC, pad H once, re-layout weights, single pallas_call.
# ----------------------------------------------------------------------------
def mixed_op_forward(x_nchw, arch_weights, params):
  x = jnp.transpose(x_nchw, (0, 2, 3, 1)).astype(jnp.float32)   # NHWC
  N, H, W, C = x.shape
  WC = W * C

  # Pad ONLY H; minor dim stays W*C (lane-aligned: multiple of 128 in the test).
  xp = jnp.pad(x, ((0, 0), (PAD, PAD), (0, 0), (0, 0))).reshape(
      N, H + 2 * PAD, WC)

  wpos = jnp.arange(W)

  def taps(wmat, k, d):
    # (k*k, C) depthwise taps -> (k*k, W*C), lane-dense, with the W-edge
    # zero-padding mask of each kw column offset folded into the tap values.
    p = d * (k - 1) // 2
    rows = []
    for kh in range(k):
      for kw in range(k):
        dw = kw * d - p
        m = ((wpos + dw >= 0) & (wpos + dw <= W - 1)).astype(jnp.float32)
        rows.append(jnp.tile(wmat[kh * k + kw].astype(jnp.float32), (W,)) *
                    jnp.repeat(m, C))
    return jnp.stack(rows, axis=0)

  def bdiag(wmat):
    # (C, C) 1x1-conv weight -> block-diag (W*C, W*C) bf16 MXU operand.
    # TODO(synk): replace with a (N*H*W, C)@(C, C) layout at production sizes.
    return jnp.kron(jnp.eye(W, dtype=jnp.float32),
                    wmat.astype(jnp.float32)).astype(jnp.bfloat16)

  p3, p5 = params["sep_conv_3x3"], params["sep_conv_5x5"]
  d3, d5 = params["dil_conv_3x3"], params["dil_conv_5x5"]
  ins = (xp,
         taps(p3["dw1"], 3, 1), taps(p3["dw2"], 3, 1),
         taps(p5["dw1"], 5, 1), taps(p5["dw2"], 5, 1),
         taps(d3["dw"], 3, 2), taps(d5["dw"], 5, 2),
         bdiag(p3["pw1"]), bdiag(p3["pw2"]),
         bdiag(p5["pw1"]), bdiag(p5["pw2"]),
         bdiag(d3["pw"]), bdiag(d5["pw"]))

  kern = functools.partial(_mixed_kernel, N=N, H=H, W=W, C=C)
  out2 = pl.pallas_call(
      kern,
      out_shape=jax.ShapeDtypeStruct((N * H, WC), jnp.float32),
      grid_spec=pltpu.PrefetchScalarGridSpec(
          num_scalar_prefetch=1,              # arch weights -> SMEM scalars
          grid=(1,),
          in_specs=[_full_spec(a.shape) for a in ins],
          out_specs=pl.BlockSpec((N * H, WC), lambda *_: (0, 0)),
          scratch_shapes=[
              pltpu.VMEM((N, H + 2 * HALO, WC), jnp.float32)],
      ),
      compiler_params=pltpu.CompilerParams(dimension_semantics=("arbitrary",)),
  )(arch_weights.astype(jnp.float32), *ins)

  return jnp.transpose(out2.reshape(N, H, W, C), (0, 3, 1, 2))   # back to NCHW


# ----------------------------------------------------------------------------
# Pure-JAX reference (no Pallas) for validation.
# ----------------------------------------------------------------------------
def ref_forward(x_nchw, arch_weights, params):
  x = jnp.transpose(x_nchw, (0, 2, 3, 1)).astype(jnp.float32)
  C = x.shape[-1]

  def dw_ref(x, w, k, dil, relu):
    if relu:
      x = jnp.maximum(x, 0.0)
    pad = dil * (k - 1) // 2
    rhs = w.reshape(k, k, 1, C)
    return lax.conv_general_dilated(
        x, rhs, window_strides=(1, 1), padding=((pad, pad), (pad, pad)),
        rhs_dilation=(dil, dil), dimension_numbers=("NHWC", "HWIO", "NHWC"),
        feature_group_count=C, precision=_REF_PREC)

  def pw_ref(x, w):
    return jnp.einsum("nhwc,cd->nhwd", x, w, precision=_REF_PREC)

  def bn_ref(x):
    m = jnp.mean(x, axis=(0, 1, 2), keepdims=True)
    v = jnp.mean(jnp.square(x - m), axis=(0, 1, 2), keepdims=True)
    return (x - m) / jnp.sqrt(v + EPS)

  pads = ((0, 0), (1, 1), (1, 1), (0, 0))

  def maxpool_ref(x):
    return lax.reduce_window(x, -jnp.inf, lax.max, (1, 3, 3, 1), (1, 1, 1, 1), pads)

  def avgpool_ref(x):
    s = lax.reduce_window(x, 0.0, lax.add, (1, 3, 3, 1), (1, 1, 1, 1), pads)
    cnt = lax.reduce_window(jnp.ones_like(x), 0.0, lax.add,
                            (1, 3, 3, 1), (1, 1, 1, 1), pads)
    return s / cnt

  outs = []
  for prim in PRIMITIVES:
    if prim == "none":
      outs.append(jnp.zeros_like(x))
    elif prim == "max_pool_3x3":
      outs.append(bn_ref(maxpool_ref(x)))
    elif prim == "avg_pool_3x3":
      outs.append(bn_ref(avgpool_ref(x)))
    elif prim == "skip_connect":
      outs.append(x)
    elif prim.startswith("sep_conv"):
      k = int(prim[-1])
      p = params[prim]
      y = bn_ref(pw_ref(dw_ref(x, p["dw1"], k, 1, True), p["pw1"]))
      y = bn_ref(pw_ref(dw_ref(y, p["dw2"], k, 1, True), p["pw2"]))
      outs.append(y)
    elif prim.startswith("dil_conv"):
      k = int(prim[-1])
      p = params[prim]
      outs.append(bn_ref(pw_ref(dw_ref(x, p["dw"], k, 2, True), p["pw"])))
  mixed = sum(w * o for w, o in zip(arch_weights, outs))
  return jnp.transpose(mixed, (0, 3, 1, 2))


def init_params(C, key):
  keys = iter(jax.random.split(key, 16))
  params = {}
  for prim in PRIMITIVES:
    if prim.startswith("sep_conv"):
      k = int(prim[-1])
      params[prim] = {
          "dw1": jax.random.normal(next(keys), (k * k, C), jnp.float32) / k,
          "pw1": jax.random.normal(next(keys), (C, C), jnp.float32) * (C ** -0.5),
          "dw2": jax.random.normal(next(keys), (k * k, C), jnp.float32) / k,
          "pw2": jax.random.normal(next(keys), (C, C), jnp.float32) * (C ** -0.5),
      }
    elif prim.startswith("dil_conv"):
      k = int(prim[-1])
      params[prim] = {
          "dw": jax.random.normal(next(keys), (k * k, C), jnp.float32) / k,
          "pw": jax.random.normal(next(keys), (C, C), jnp.float32) * (C ** -0.5),
      }
  return params


if __name__ == "__main__":
  # C=8, W=16 so the lane-dense minor dim W*C is exactly 128.
  N, C, H, W = 2, 8, 16, 16
  key = jax.random.PRNGKey(0)
  kx, kw, kp = jax.random.split(key, 3)
  x = jax.random.normal(kx, (N, C, H, W), jnp.float32)
  arch_weights = jax.nn.softmax(
      jax.random.normal(kw, (len(PRIMITIVES),), jnp.float32))
  params = init_params(C, kp)

  fwd = jax.jit(mixed_op_forward)
  out = fwd(x, arch_weights, params)
  out = jax.block_until_ready(out)
  assert out.shape == (N, C, H, W) and out.dtype == jnp.float32

  ref = ref_forward(x, arch_weights, params)
  # Tolerance covers the bf16 MXU operands of the 1x1 convs; everything else
  # (depthwise taps, pools, BN statistics) is exact f32.
  max_err = float(jnp.max(jnp.abs(out - ref)))
  assert max_err < 1e-2, f"mismatch vs reference: max_err={max_err}"

  print("KERNEL_OK")
</pallas_src>

<mosaic_0001>
module attributes {stable_mosaic.version = 11 : i64} {
  func.func @_mixed_kernel(%arg0: i32, %arg1: memref<8xf32, #tpu.memory_space<smem>>, %arg2: memref<2x24x128xf32, #tpu.memory_space<vmem>>, %arg3: memref<9x128xf32, #tpu.memory_space<vmem>>, %arg4: memref<9x128xf32, #tpu.memory_space<vmem>>, %arg5: memref<25x128xf32, #tpu.memory_space<vmem>>, %arg6: memref<25x128xf32, #tpu.memory_space<vmem>>, %arg7: memref<9x128xf32, #tpu.memory_space<vmem>>, %arg8: memref<25x128xf32, #tpu.memory_space<vmem>>, %arg9: memref<128x128xbf16, #tpu.memory_space<vmem>>, %arg10: memref<128x128xbf16, #tpu.memory_space<vmem>>, %arg11: memref<128x128xbf16, #tpu.memory_space<vmem>>, %arg12: memref<128x128xbf16, #tpu.memory_space<vmem>>, %arg13: memref<128x128xbf16, #tpu.memory_space<vmem>>, %arg14: memref<128x128xbf16, #tpu.memory_space<vmem>>, %arg15: memref<32x128xf32, #tpu.memory_space<vmem>>, %arg16: memref<2x32x128xf32, #tpu.memory_space<vmem>>) attributes {dimension_semantics = [#tpu.dimension_semantics<arbitrary>], iteration_bounds = array<i64: 1>, scalar_prefetch = 1 : i64, scratch_operands = 1 : i64, tpu.core_type = #tpu.core_type<tc>, window_params = [{pipeline_mode = #tpu.pipeline_mode<synchronous>, transform_indices = @transform_0, window_bounds = array<i64: 2, 24, 128>}, {pipeline_mode = #tpu.pipeline_mode<synchronous>, transform_indices = @transform_1, window_bounds = array<i64: 9, 128>}, {pipeline_mode = #tpu.pipeline_mode<synchronous>, transform_indices = @transform_2, window_bounds = array<i64: 9, 128>}, {pipeline_mode = #tpu.pipeline_mode<synchronous>, transform_indices = @transform_3, window_bounds = array<i64: 25, 128>}, {pipeline_mode = #tpu.pipeline_mode<synchronous>, transform_indices = @transform_4, window_bounds = array<i64: 25, 128>}, {pipeline_mode = #tpu.pipeline_mode<synchronous>, transform_indices = @transform_5, window_bounds = array<i64: 9, 128>}, {pipeline_mode = #tpu.pipeline_mode<synchronous>, transform_indices = @transform_6, window_bounds = array<i64: 25, 128>}, {pipeline_mode = #tpu.pipeline_mode<synchronous>, transform_indices = @transform_7, window_bounds = array<i64: 128, 128>}, {pipeline_mode = #tpu.pipeline_mode<synchronous>, transform_indices = @transform_8, window_bounds = array<i64: 128, 128>}, {pipeline_mode = #tpu.pipeline_mode<synchronous>, transform_indices = @transform_9, window_bounds = array<i64: 128, 128>}, {pipeline_mode = #tpu.pipeline_mode<synchronous>, transform_indices = @transform_10, window_bounds = array<i64: 128, 128>}, {pipeline_mode = #tpu.pipeline_mode<synchronous>, transform_indices = @transform_11, window_bounds = array<i64: 128, 128>}, {pipeline_mode = #tpu.pipeline_mode<synchronous>, transform_indices = @transform_12, window_bounds = array<i64: 128, 128>}, {pipeline_mode = #tpu.pipeline_mode<synchronous>, transform_indices = @transform_13, window_bounds = array<i64: 32, 128>}]} {
    %c0 = arith.constant 0 : index
    %c0_0 = arith.constant 0 : index
    %c0_1 = arith.constant 0 : index
    %0 = vector.load %arg2[%c0, %c0_0, %c0_1] : memref<2x24x128xf32, #tpu.memory_space<vmem>>, vector<2x24x128xf32>
    %cst = arith.constant 0.000000e+00 : f32
    %1 = vector.broadcast %cst : f32 to vector<2x8x128xf32>
    %c0_2 = arith.constant 0 : index
    %c0_3 = arith.constant 0 : index
    %c0_4 = arith.constant 0 : index
    %2 = vector.load %arg16[%c0_2, %c0_3, %c0_4] : memref<2x32x128xf32, #tpu.memory_space<vmem>>, vector<2x8x128xf32>
    tpu.vector_store %arg16[%c0_2, %c0_3, %c0_4], %1 {strides = array<i32>} : memref<2x32x128xf32, #tpu.memory_space<vmem>>, vector<2x8x128xf32>,
    %cst_5 = arith.constant 0.000000e+00 : f32
    %3 = vector.broadcast %cst_5 : f32 to vector<2x8x128xf32>
    %c0_6 = arith.constant 0 : index
    %c24 = arith.constant 24 : index
    %c0_7 = arith.constant 0 : index
    %4 = vector.load %arg16[%c0_6, %c24, %c0_7] : memref<2x32x128xf32, #tpu.memory_space<vmem>>, vector<2x8x128xf32>
    tpu.vector_store %arg16[%c0_6, %c24, %c0_7], %3 {strides = array<i32>} : memref<2x32x128xf32, #tpu.memory_space<vmem>>, vector<2x8x128xf32>,
    %5 = tpu.iota {dimensions = array<i32: 1>} : vector<2x16x128xi32>
    %6 = vector.shape_cast %5 : vector<2x16x128xi32> to vector<32x128xi32>
    %7 = tpu.iota {dimensions = array<i32: 1>} : vector<1x128xi32>
    %c1_i32 = arith.constant 1 : i32
    %8 = vector.broadcast %c1_i32 : i32 to vector<32x128xi32>
    %9 = arith.cmpi sge, %6, %8 : vector<32x128xi32>
    %c14_i32 = arith.constant 14 : i32
    %10 = vector.broadcast %c14_i32 : i32 to vector<32x128xi32>
    %11 = arith.cmpi sle, %6, %10 : vector<32x128xi32>
    %c8_i32 = arith.constant 8 : i32
    %12 = vector.broadcast %c8_i32 : i32 to vector<1x128xi32>
    %13 = arith.cmpi sge, %7, %12 : vector<1x128xi32>
    %c120_i32 = arith.constant 120 : i32
    %14 = vector.broadcast %c120_i32 : i32 to vector<1x128xi32>
    %15 = arith.cmpi slt, %7, %14 : vector<1x128xi32>
    %16 = arith.extui %13 : vector<1x128xi1> to vector<1x128xi32>
    %17 = arith.sitofp %16 : vector<1x128xi32> to vector<1x128xf32>
    %18 = arith.extui %15 : vector<1x128xi1> to vector<1x128xi32>
    %19 = arith.sitofp %18 : vector<1x128xi32> to vector<1x128xf32>
    %20 = arith.extui %9 : vector<32x128xi1> to vector<32x128xi32>
    %21 = arith.sitofp %20 : vector<32x128xi32> to vector<32x128xf32>
    %cst_8 = arith.constant 1.000000e+00 : f32
    %22 = vector.broadcast %cst_8 : f32 to vector<32x128xf32>
    %23 = arith.addf %22, %21 : vector<32x128xf32>
    %24 = arith.extui %11 : vector<32x128xi1> to vector<32x128xi32>
    %25 = arith.sitofp %24 : vector<32x128xi32> to vector<32x128xf32>
    %26 = arith.addf %23, %25 : vector<32x128xf32>
    %cst_9 = arith.constant 1.000000e+00 : f32
    %27 = vector.broadcast %cst_9 : f32 to vector<1x128xf32>
    %28 = arith.addf %27, %17 : vector<1x128xf32>
    %29 = arith.addf %28, %19 : vector<1x128xf32>
    %30 = vector.broadcast %29 : vector<1x128xf32> to vector<32x128xf32>
    %31 = arith.mulf %26, %30 : vector<32x128xf32>
    %cst_10 = arith.constant 1.000000e+00 : f32
    %32 = vector.broadcast %cst_10 : f32 to vector<32x128xf32>
    %33 = arith.divf %32, %31 : vector<32x128xf32>
    %34 = vector.extract_strided_slice %0 {offsets = [0, 4, 0], sizes = [2, 16, 128], strides = [1, 1, 1]} : vector<2x24x128xf32> to vector<2x16x128xf32>
    %35 = vector.shape_cast %34 : vector<2x16x128xf32> to vector<32x128xf32>
    %36 = vector.extract_strided_slice %0 {offsets = [0, 3, 0], sizes = [2, 16, 128], strides = [1, 1, 1]} : vector<2x24x128xf32> to vector<2x16x128xf32>
    %37 = vector.shape_cast %36 : vector<2x16x128xf32> to vector<32x128xf32>
    %c8_i32_11 = arith.constant 8 : i32
    %38 = tpu.dynamic_rotate %37 by %c8_i32_11 dim 1 : vector<32x128xf32>, i32 -> vector<32x128xf32>
    %39 = vector.broadcast %17 : vector<1x128xf32> to vector<32x128xf32>
    %40 = arith.mulf %38, %39 : vector<32x128xf32>
    %41 = arith.addf %35, %40 : vector<32x128xf32>
    %cst_12 = arith.constant 0xFF800000 : f32
    %42 = vector.shape_cast %13 : vector<1x128xi1> to vector<1x128xi1>
    %43 = vector.broadcast %42 : vector<1x128xi1> to vector<32x128xi1>
    %44 = vector.broadcast %cst_12 : f32 to vector<32x128xf32>
    %45 = arith.select %43, %38, %44 : vector<32x128xi1>, vector<32x128xf32>
    %cst_13 = arith.constant 0xFF800000 : f32
    %46 = vector.broadcast %cst_13 : f32 to vector<32x128xf32>
    %47 = arith.select %9, %45, %46 : vector<32x128xi1>, vector<32x128xf32>
    %48 = arith.maximumf %35, %47 : vector<32x128xf32>
    %49 = arith.addf %41, %37 : vector<32x128xf32>
    %cst_14 = arith.constant 0xFF800000 : f32
    %50 = vector.broadcast %cst_14 : f32 to vector<32x128xf32>
    %51 = arith.select %9, %37, %50 : vector<32x128xi1>, vector<32x128xf32>
    %52 = arith.maximumf %48, %51 : vector<32x128xf32>
    %c120_i32_15 = arith.constant 120 : i32
    %53 = tpu.dynamic_rotate %37 by %c120_i32_15 dim 1 : vector<32x128xf32>, i32 -> vector<32x128xf32>
    %54 = vector.broadcast %19 : vector<1x128xf32> to vector<32x128xf32>
    %55 = arith.mulf %53, %54 : vector<32x128xf32>
    %56 = arith.addf %49, %55 : vector<32x128xf32>
    %cst_16 = arith.constant 0xFF800000 : f32
    %57 = vector.shape_cast %15 : vector<1x128xi1> to vector<1x128xi1>
    %58 = vector.broadcast %57 : vector<1x128xi1> to vector<32x128xi1>
    %59 = vector.broadcast %cst_16 : f32 to vector<32x128xf32>
    %60 = arith.select %58, %53, %59 : vector<32x128xi1>, vector<32x128xf32>
    %cst_17 = arith.constant 0xFF800000 : f32
    %61 = vector.broadcast %cst_17 : f32 to vector<32x128xf32>
    %62 = arith.select %9, %60, %61 : vector<32x128xi1>, vector<32x128xf32>
    %63 = arith.maximumf %52, %62 : vector<32x128xf32>
    %c8_i32_18 = arith.constant 8 : i32
    %64 = tpu.dynamic_rotate %35 by %c8_i32_18 dim 1 : vector<32x128xf32>, i32 -> vector<32x128xf32>
    %65 = vector.broadcast %17 : vector<1x128xf32> to vector<32x128xf32>
    %66 = arith.mulf %64, %65 : vector<32x128xf32>
    %67 = arith.addf %56, %66 : vector<32x128xf32>
    %cst_19 = arith.constant 0xFF800000 : f32
    %68 = vector.shape_cast %13 : vector<1x128xi1> to vector<1x128xi1>
    %69 = vector.broadcast %68 : vector<1x128xi1> to vector<32x128xi1>
    %70 = vector.broadcast %cst_19 : f32 to vector<32x128xf32>
    %71 = arith.select %69, %64, %70 : vector<32x128xi1>, vector<32x128xf32>
    %72 = arith.maximumf %63, %71 : vector<32x128xf32>
    %c120_i32_20 = arith.constant 120 : i32
    %73 = tpu.dynamic_rotate %35 by %c120_i32_20 dim 1 : vector<32x128xf32>, i32 -> vector<32x128xf32>
    %74 = vector.broadcast %19 : vector<1x128xf32> to vector<32x128xf32>
    %75 = arith.mulf %73, %74 : vector<32x128xf32>
    %76 = arith.addf %67, %75 : vector<32x128xf32>
    %cst_21 = arith.constant 0xFF800000 : f32
    %77 = vector.shape_cast %15 : vector<1x128xi1> to vector<1x128xi1>
    %78 = vector.broadcast %77 : vector<1x128xi1> to vector<32x128xi1>
    %79 = vector.broadcast %cst_21 : f32 to vector<32x128xf32>
    %80 = arith.select %78, %73, %79 : vector<32x128xi1>, vector<32x128xf32>
    %81 = arith.maximumf %72, %80 : vector<32x128xf32>
    %82 = vector.extract_strided_slice %0 {offsets = [0, 5, 0], sizes = [2, 16, 128], strides = [1, 1, 1]} : vector<2x24x128xf32> to vector<2x16x128xf32>
    %83 = vector.shape_cast %82 : vector<2x16x128xf32> to vector<32x128xf32>
    %c8_i32_22 = arith.constant 8 : i32
    %84 = tpu.dynamic_rotate %83 by %c8_i32_22 dim 1 : vector<32x128xf32>, i32 -> vector<32x128xf32>
    %85 = vector.broadcast %17 : vector<1x128xf32> to vector<32x128xf32>
    %86 = arith.mulf %84, %85 : vector<32x128xf32>
    %87 = arith.addf %76, %86 : vector<32x128xf32>
    %cst_23 = arith.constant 0xFF800000 : f32
    %88 = vector.shape_cast %13 : vector<1x128xi1> to vector<1x128xi1>
    %89 = vector.broadcast %88 : vector<1x128xi1> to vector<32x128xi1>
    %90 = vector.broadcast %cst_23 : f32 to vector<32x128xf32>
    %91 = arith.select %89, %84, %90 : vector<32x128xi1>, vector<32x128xf32>
    %cst_24 = arith.constant 0xFF800000 : f32
    %92 = vector.broadcast %cst_24 : f32 to vector<32x128xf32>
    %93 = arith.select %11, %91, %92 : vector<32x128xi1>, vector<32x128xf32>
    %94 = arith.maximumf %81, %93 : vector<32x128xf32>
    %95 = arith.addf %87, %83 : vector<32x128xf32>
    %cst_25 = arith.constant 0xFF800000 : f32
    %96 = vector.broadcast %cst_25 : f32 to vector<32x128xf32>
    %97 = arith.select %11, %83, %96 : vector<32x128xi1>, vector<32x128xf32>
    %98 = arith.maximumf %94, %97 : vector<32x128xf32>
    %c120_i32_26 = arith.constant 120 : i32
    %99 = tpu.dynamic_rotate %83 by %c120_i32_26 dim 1 : vector<32x128xf32>, i32 -> vector<32x128xf32>
    %100 = vector.broadcast %19 : vector<1x128xf32> to vector<32x128xf32>
    %101 = arith.mulf %99, %100 : vector<32x128xf32>
    %102 = arith.addf %95, %101 : vector<32x128xf32>
    %cst_27 = arith.constant 0xFF800000 : f32
    %103 = vector.shape_cast %15 : vector<1x128xi1> to vector<1x128xi1>
    %104 = vector.broadcast %103 : vector<1x128xi1> to vector<32x128xi1>
    %105 = vector.broadcast %cst_27 : f32 to vector<32x128xf32>
    %106 = arith.select %104, %99, %105 : vector<32x128xi1>, vector<32x128xf32>
    %cst_28 = arith.constant 0xFF800000 : f32
    %107 = vector.broadcast %cst_28 : f32 to vector<32x128xf32>
    %108 = arith.select %11, %106, %107 : vector<32x128xi1>, vector<32x128xf32>
    %109 = arith.maximumf %98, %108 : vector<32x128xf32>
    %110 = arith.mulf %102, %33 : vector<32x128xf32>
    %c3 = arith.constant 3 : index
    %111 = memref.load %arg1[%c3] : memref<8xf32, #tpu.memory_space<smem>>
    %112 = vector.broadcast %111 : f32 to vector<32x128xf32>
    %113 = arith.mulf %112, %35 : vector<32x128xf32>
    %c1 = arith.constant 1 : index
    %114 = memref.load %arg1[%c1] : memref<8xf32, #tpu.memory_space<smem>>
    %cst_29 = arith.constant dense<0.000000e+00> : vector<128xf32>
    %115 = vector.multi_reduction <add>, %109, %cst_29 [0] : vector<32x128xf32> to vector<128xf32>
    %116 = vector.shape_cast %115 : vector<128xf32> to vector<1x128xf32>
    %c8_i32_30 = arith.constant 8 : i32
    %117 = tpu.dynamic_rotate %116 by %c8_i32_30 dim 1 : vector<1x128xf32>, i32 -> vector<1x128xf32>
    %118 = arith.addf %116, %117 : vector<1x128xf32>
    %c16_i32 = arith.constant 16 : i32
    %119 = tpu.dynamic_rotate %118 by %c16_i32 dim 1 : vector<1x128xf32>, i32 -> vector<1x128xf32>
    %120 = arith.addf %118, %119 : vector<1x128xf32>
    %c32_i32 = arith.constant 32 : i32
    %121 = tpu.dynamic_rotate %120 by %c32_i32 dim 1 : vector<1x128xf32>, i32 -> vector<1x128xf32>
    %122 = arith.addf %120, %121 : vector<1x128xf32>
    %c64_i32 = arith.constant 64 : i32
    %123 = tpu.dynamic_rotate %122 by %c64_i32 dim 1 : vector<1x128xf32>, i32 -> vector<1x128xf32>
    %124 = arith.addf %122, %123 : vector<1x128xf32>
    %cst_31 = arith.constant 0.001953125 : f32
    %125 = vector.broadcast %cst_31 : f32 to vector<1x128xf32>
    %126 = arith.mulf %124, %125 : vector<1x128xf32>
    %127 = vector.broadcast %126 : vector<1x128xf32> to vector<32x128xf32>
    %128 = arith.subf %109, %127 : vector<32x128xf32>
    %129 = arith.mulf %128, %128 : vector<32x128xf32>
    %cst_32 = arith.constant dense<0.000000e+00> : vector<128xf32>
    %130 = vector.multi_reduction <add>, %129, %cst_32 [0] : vector<32x128xf32> to vector<128xf32>
    %131 = vector.shape_cast %130 : vector<128xf32> to vector<1x128xf32>
    %c8_i32_33 = arith.constant 8 : i32
    %132 = tpu.dynamic_rotate %131 by %c8_i32_33 dim 1 : vector<1x128xf32>, i32 -> vector<1x128xf32>
    %133 = arith.addf %131, %132 : vector<1x128xf32>
    %c16_i32_34 = arith.constant 16 : i32
    %134 = tpu.dynamic_rotate %133 by %c16_i32_34 dim 1 : vector<1x128xf32>, i32 -> vector<1x128xf32>
    %135 = arith.addf %133, %134 : vector<1x128xf32>
    %c32_i32_35 = arith.constant 32 : i32
    %136 = tpu.dynamic_rotate %135 by %c32_i32_35 dim 1 : vector<1x128xf32>, i32 -> vector<1x128xf32>
    %137 = arith.addf %135, %136 : vector<1x128xf32>
    %c64_i32_36 = arith.constant 64 : i32
    %138 = tpu.dynamic_rotate %137 by %c64_i32_36 dim 1 : vector<1x128xf32>, i32 -> vector<1x128xf32>
    %139 = arith.addf %137, %138 : vector<1x128xf32>
    %cst_37 = arith.constant 0.001953125 : f32
    %140 = vector.broadcast %cst_37 : f32 to vector<1x128xf32>
    %141 = arith.mulf %139, %140 : vector<1x128xf32>
    %cst_38 = arith.constant 9.99999974E-6 : f32
    %142 = vector.broadcast %cst_38 : f32 to vector<1x128xf32>
    %143 = arith.addf %141, %142 : vector<1x128xf32>
    %144 = math.rsqrt %143 : vector<1x128xf32>
    %145 = vector.broadcast %144 : vector<1x128xf32> to vector<32x128xf32>
    %146 = arith.mulf %128, %145 : vector<32x128xf32>
    %147 = vector.broadcast %114 : f32 to vector<32x128xf32>
    %148 = arith.mulf %147, %146 : vector<32x128xf32>
    %149 = arith.addf %113, %148 : vector<32x128xf32>
    %c2 = arith.constant 2 : index
    %150 = memref.load %arg1[%c2] : memref<8xf32, #tpu.memory_space<smem>>
    %cst_39 = arith.constant dense<0.000000e+00> : vector<128xf32>
    %151 = vector.multi_reduction <add>, %110, %cst_39 [0] : vector<32x128xf32> to vector<128xf32>
    %152 = vector.shape_cast %151 : vector<128xf32> to vector<1x128xf32>
    %c8_i32_40 = arith.constant 8 : i32
    %153 = tpu.dynamic_rotate %152 by %c8_i32_40 dim 1 : vector<1x128xf32>, i32 -> vector<1x128xf32>
    %154 = arith.addf %152, %153 : vector<1x128xf32>
    %c16_i32_41 = arith.constant 16 : i32
    %155 = tpu.dynamic_rotate %154 by %c16_i32_41 dim 1 : vector<1x128xf32>, i32 -> vector<1x128xf32>
    %156 = arith.addf %154, %155 : vector<1x128xf32>
    %c32_i32_42 = arith.constant 32 : i32
    %157 = tpu.dynamic_rotate %156 by %c32_i32_42 dim 1 : vector<1x128xf32>, i32 -> vector<1x128xf32>
    %158 = arith.addf %156, %157 : vector<1x128xf32>
    %c64_i32_43 = arith.constant 64 : i32
    %159 = tpu.dynamic_rotate %158 by %c64_i32_43 dim 1 : vector<1x128xf32>, i32 -> vector<1x128xf32>
    %160 = arith.addf %158, %159 : vector<1x128xf32>
    %cst_44 = arith.constant 0.001953125 : f32
    %161 = vector.broadcast %cst_44 : f32 to vector<1x128xf32>
    %162 = arith.mulf %160, %161 : vector<1x128xf32>
    %163 = vector.broadcast %162 : vector<1x128xf32> to vector<32x128xf32>
    %164 = arith.subf %110, %163 : vector<32x128xf32>
    %165 = arith.mulf %164, %164 : vector<32x128xf32>
    %cst_45 = arith.constant dense<0.000000e+00> : vector<128xf32>
    %166 = vector.multi_reduction <add>, %165, %cst_45 [0] : vector<32x128xf32> to vector<128xf32>
    %167 = vector.shape_cast %166 : vector<128xf32> to vector<1x128xf32>
    %c8_i32_46 = arith.constant 8 : i32
    %168 = tpu.dynamic_rotate %167 by %c8_i32_46 dim 1 : vector<1x128xf32>, i32 -> vector<1x128xf32>
    %169 = arith.addf %167, %168 : vector<1x128xf32>
    %c16_i32_47 = arith.constant 16 : i32
    %170 = tpu.dynamic_rotate %169 by %c16_i32_47 dim 1 : vector<1x128xf32>, i32 -> vector<1x128xf32>
    %171 = arith.addf %169, %170 : vector<1x128xf32>
    %c32_i32_48 = arith.constant 32 : i32
    %172 = tpu.dynamic_rotate %171 by %c32_i32_48 dim 1 : vector<1x128xf32>, i32 -> vector<1x128xf32>
    %173 = arith.addf %171, %172 : vector<1x128xf32>
    %c64_i32_49 = arith.constant 64 : i32
    %174 = tpu.dynamic_rotate %173 by %c64_i32_49 dim 1 : vector<1x128xf32>, i32 -> vector<1x128xf32>
    %175 = arith.addf %173, %174 : vector<1x128xf32>
    %cst_50 = arith.constant 0.001953125 : f32
    %176 = vector.broadcast %cst_50 : f32 to vector<1x128xf32>
    %177 = arith.mulf %175, %176 : vector<1x128xf32>
    %cst_51 = arith.constant 9.99999974E-6 : f32
    %178 = vector.broadcast %cst_51 : f32 to vector<1x128xf32>
    %179 = arith.addf %177, %178 : vector<1x128xf32>
    %180 = math.rsqrt %179 : vector<1x128xf32>
    %181 = vector.broadcast %180 : vector<1x128xf32> to vector<32x128xf32>
    %182 = arith.mulf %164, %181 : vector<32x128xf32>
    %183 = vector.broadcast %150 : f32 to vector<32x128xf32>
    %184 = arith.mulf %183, %182 : vector<32x128xf32>
    %185 = arith.addf %149, %184 : vector<32x128xf32>
    %cst_52 = arith.constant 0.000000e+00 : f32
    %186 = vector.broadcast %cst_52 : f32 to vector<2x24x128xf32>
    %187 = arith.maximumf %0, %186 : vector<2x24x128xf32>
    %cst_53 = arith.constant 0.000000e+00 : f32
    %188 = vector.broadcast %cst_53 : f32 to vector<32x128xf32>
    %189 = vector.extract_strided_slice %187 {offsets = [0, 3, 0], sizes = [2, 16, 128], strides = [1, 1, 1]} : vector<2x24x128xf32> to vector<2x16x128xf32>
    %190 = vector.shape_cast %189 : vector<2x16x128xf32> to vector<32x128xf32>
    %c8_i32_54 = arith.constant 8 : i32
    %191 = tpu.dynamic_rotate %190 by %c8_i32_54 dim 1 : vector<32x128xf32>, i32 -> vector<32x128xf32>
    %c0_55 = arith.constant 0 : index
    %c0_56 = arith.constant 0 : index
    %192 = vector.load %arg3[%c0_55, %c0_56] : memref<9x128xf32, #tpu.memory_space<vmem>>, vector<1x128xf32>
    %193 = vector.broadcast %192 : vector<1x128xf32> to vector<32x128xf32>
    %194 = arith.mulf %191, %193 : vector<32x128xf32>
    %195 = arith.addf %188, %194 : vector<32x128xf32>
    %c1_57 = arith.constant 1 : index
    %c0_58 = arith.constant 0 : index
    %196 = vector.load %arg3[%c1_57, %c0_58] : memref<9x128xf32, #tpu.memory_space<vmem>>, vector<1x128xf32>
    %197 = vector.broadcast %196 : vector<1x128xf32> to vector<32x128xf32>
    %198 = arith.mulf %190, %197 : vector<32x128xf32>
    %199 = arith.addf %195, %198 : vector<32x128xf32>
    %c120_i32_59 = arith.constant 120 : i32
    %200 = tpu.dynamic_rotate %190 by %c120_i32_59 dim 1 : vector<32x128xf32>, i32 -> vector<32x128xf32>
    %c2_60 = arith.constant 2 : index
    %c0_61 = arith.constant 0 : index
    %201 = vector.load %arg3[%c2_60, %c0_61] : memref<9x128xf32, #tpu.memory_space<vmem>>, vector<1x128xf32>
    %202 = vector.broadcast %201 : vector<1x128xf32> to vector<32x128xf32>
    %203 = arith.mulf %200, %202 : vector<32x128xf32>
    %204 = arith.addf %199, %203 : vector<32x128xf32>
    %205 = vector.extract_strided_slice %187 {offsets = [0, 4, 0], sizes = [2, 16, 128], strides = [1, 1, 1]} : vector<2x24x128xf32> to vector<2x16x128xf32>
    %206 = vector.shape_cast %205 : vector<2x16x128xf32> to vector<32x128xf32>
    %c8_i32_62 = arith.constant 8 : i32
    %207 = tpu.dynamic_rotate %206 by %c8_i32_62 dim 1 : vector<32x128xf32>, i32 -> vector<32x128xf32>
    %c3_63 = arith.constant 3 : index
    %c0_64 = arith.constant 0 : index
    %208 = vector.load %arg3[%c3_63, %c0_64] : memref<9x128xf32, #tpu.memory_space<vmem>>, vector<1x128xf32>
    %209 = vector.broadcast %208 : vector<1x128xf32> to vector<32x128xf32>
    %210 = arith.mulf %207, %209 : vector<32x128xf32>
    %211 = arith.addf %204, %210 : vector<32x128xf32>
    %c4 = arith.constant 4 : index
    %c0_65 = arith.constant 0 : index
    %212 = vector.load %arg3[%c4, %c0_65] : memref<9x128xf32, #tpu.memory_space<vmem>>, vector<1x128xf32>
    %213 = vector.broadcast %212 : vector<1x128xf32> to vector<32x128xf32>
    %214 = arith.mulf %206, %213 : vector<32x128xf32>
    %215 = arith.addf %211, %214 : vector<32x128xf32>
    %c120_i32_66 = arith.constant 120 : i32
    %216 = tpu.dynamic_rotate %206 by %c120_i32_66 dim 1 : vector<32x128xf32>, i32 -> vector<32x128xf32>
    %c5 = arith.constant 5 : index
    %c0_67 = arith.constant 0 : index
    %217 = vector.load %arg3[%c5, %c0_67] : memref<9x128xf32, #tpu.memory_space<vmem>>, vector<1x128xf32>
    %218 = vector.broadcast %217 : vector<1x128xf32> to vector<32x128xf32>
    %219 = arith.mulf %216, %218 : vector<32x128xf32>
    %220 = arith.addf %215, %219 : vector<32x128xf32>
    %221 = vector.extract_strided_slice %187 {offsets = [0, 5, 0], sizes = [2, 16, 128], strides = [1, 1, 1]} : vector<2x24x128xf32> to vector<2x16x128xf32>
    %222 = vector.shape_cast %221 : vector<2x16x128xf32> to vector<32x128xf32>
    %c8_i32_68 = arith.constant 8 : i32
    %223 = tpu.dynamic_rotate %222 by %c8_i32_68 dim 1 : vector<32x128xf32>, i32 -> vector<32x128xf32>
    %c6 = arith.constant 6 : index
    %c0_69 = arith.constant 0 : index
    %224 = vector.load %arg3[%c6, %c0_69] : memref<9x128xf32, #tpu.memory_space<vmem>>, vector<1x128xf32>
    %225 = vector.broadcast %224 : vector<1x128xf32> to vector<32x128xf32>
    %226 = arith.mulf %223, %225 : vector<32x128xf32>
    %227 = arith.addf %220, %226 : vector<32x128xf32>
    %c7 = arith.constant 7 : index
    %c0_70 = arith.constant 0 : index
    %228 = vector.load %arg3[%c7, %c0_70] : memref<9x128xf32, #tpu.memory_space<vmem>>, vector<1x128xf32>
    %229 = vector.broadcast %228 : vector<1x128xf32> to vector<32x128xf32>
    %230 = arith.mulf %222, %229 : vector<32x128xf32>
    %231 = arith.addf %227, %230 : vector<32x128xf32>
    %c120_i32_71 = arith.constant 120 : i32
    %232 = tpu.dynamic_rotate %222 by %c120_i32_71 dim 1 : vector<32x128xf32>, i32 -> vector<32x128xf32>
    %c8 = arith.constant 8 : index
    %c0_72 = arith.constant 0 : index
    %233 = vector.load %arg3[%c8, %c0_72] : memref<9x128xf32, #tpu.memory_space<vmem>>, vector<1x128xf32>
    %234 = vector.broadcast %233 : vector<1x128xf32> to vector<32x128xf32>
    %235 = arith.mulf %232, %234 : vector<32x128xf32>
    %236 = arith.addf %231, %235 : vector<32x128xf32>
    %cst_73 = arith.constant 0.000000e+00 : f32
    %237 = vector.broadcast %cst_73 : f32 to vector<32x128xf32>
    %238 = vector.extract_strided_slice %187 {offsets = [0, 2, 0], sizes = [2, 16, 128], strides = [1, 1, 1]} : vector<2x24x128xf32> to vector<2x16x128xf32>
    %239 = vector.shape_cast %238 : vector<2x16x128xf32> to vector<32x128xf32>
    %c16_i32_74 = arith.constant 16 : i32
    %240 = tpu.dynamic_rotate %239 by %c16_i32_74 dim 1 : vector<32x128xf32>, i32 -> vector<32x128xf32>
    %c0_75 = arith.constant 0 : index
    %c0_76 = arith.constant 0 : index
    %241 = vector.load %arg5[%c0_75, %c0_76] : memref<25x128xf32, #tpu.memory_space<vmem>>, vector<1x128xf32>
    %242 = vector.broadcast %241 : vector<1x128xf32> to vector<32x128xf32>
    %243 = arith.mulf %240, %242 : vector<32x128xf32>
    %244 = arith.addf %237, %243 : vector<32x128xf32>
    %c8_i32_77 = arith.constant 8 : i32
    %245 = tpu.dynamic_rotate %239 by %c8_i32_77 dim 1 : vector<32x128xf32>, i32 -> vector<32x128xf32>
    %c1_78 = arith.constant 1 : index
    %c0_79 = arith.constant 0 : index
    %246 = vector.load %arg5[%c1_78, %c0_79] : memref<25x128xf32, #tpu.memory_space<vmem>>, vector<1x128xf32>
    %247 = vector.broadcast %246 : vector<1x128xf32> to vector<32x128xf32>
    %248 = arith.mulf %245, %247 : vector<32x128xf32>
    %249 = arith.addf %244, %248 : vector<32x128xf32>
    %c2_80 = arith.constant 2 : index
    %c0_81 = arith.constant 0 : index
    %250 = vector.load %arg5[%c2_80, %c0_81] : memref<25x128xf32, #tpu.memory_space<vmem>>, vector<1x128xf32>
    %251 = vector.broadcast %250 : vector<1x128xf32> to vector<32x128xf32>
    %252 = arith.mulf %239, %251 : vector<32x128xf32>
    %253 = arith.addf %249, %252 : vector<32x128xf32>
    %c120_i32_82 = arith.constant 120 : i32
    %254 = tpu.dynamic_rotate %239 by %c120_i32_82 dim 1 : vector<32x128xf32>, i32 -> vector<32x128xf32>
    %c3_83 = arith.constant 3 : index
    %c0_84 = arith.constant 0 : index
    %255 = vector.load %arg5[%c3_83, %c0_84] : memref<25x128xf32, #tpu.memory_space<vmem>>, vector<1x128xf32>
    %256 = vector.broadcast %255 : vector<1x128xf32> to vector<32x128xf32>
    %257 = arith.mulf %254, %256 : vector<32x128xf32>
    %258 = arith.addf %253, %257 : vector<32x128xf32>
    %c112_i32 = arith.constant 112 : i32
    %259 = tpu.dynamic_rotate %239 by %c112_i32 dim 1 : vector<32x128xf32>, i32 -> vector<32x128xf32>
    %c4_85 = arith.constant 4 : index
    %c0_86 = arith.constant 0 : index
    %260 = vector.load %arg5[%c4_85, %c0_86] : memref<25x128xf32, #tpu.memory_space<vmem>>, vector<1x128xf32>
    %261 = vector.broadcast %260 : vector<1x128xf32> to vector<32x128xf32>
    %262 = arith.mulf %259, %261 : vector<32x128xf32>
    %263 = arith.addf %258, %262 : vector<32x128xf32>
    %264 = vector.extract_strided_slice %187 {offsets = [0, 3, 0], sizes = [2, 16, 128], strides = [1, 1, 1]} : vector<2x24x128xf32> to vector<2x16x128xf32>
    %265 = vector.shape_cast %264 : vector<2x16x128xf32> to vector<32x128xf32>
    %c16_i32_87 = arith.constant 16 : i32
    %266 = tpu.dynamic_rotate %265 by %c16_i32_87 dim 1 : vector<32x128xf32>, i32 -> vector<32x128xf32>
    %c5_88 = arith.constant 5 : index
    %c0_89 = arith.constant 0 : index
    %267 = vector.load %arg5[%c5_88, %c0_89] : memref<25x128xf32, #tpu.memory_space<vmem>>, vector<1x128xf32>
    %268 = vector.broadcast %267 : vector<1x128xf32> to vector<32x128xf32>
    %269 = arith.mulf %266, %268 : vector<32x128xf32>
    %270 = arith.addf %263, %269 : vector<32x128xf32>
    %c8_i32_90 = arith.constant 8 : i32
    %271 = tpu.dynamic_rotate %265 by %c8_i32_90 dim 1 : vector<32x128xf32>, i32 -> vector<32x128xf32>
    %c6_91 = arith.constant 6 : index
    %c0_92 = arith.constant 0 : index
    %272 = vector.load %arg5[%c6_91, %c0_92] : memref<25x128xf32, #tpu.memory_space<vmem>>, vector<1x128xf32>
    %273 = vector.broadcast %272 : vector<1x128xf32> to vector<32x128xf32>
    %274 = arith.mulf %271, %273 : vector<32x128xf32>
    %275 = arith.addf %270, %274 : vector<32x128xf32>
    %c7_93 = arith.constant 7 : index
    %c0_94 = arith.constant 0 : index
    %276 = vector.load %arg5[%c7_93, %c0_94] : memref<25x128xf32, #tpu.memory_space<vmem>>, vector<1x128xf32>
    %277 = vector.broadcast %276 : vector<1x128xf32> to vector<32x128xf32>
    %278 = arith.mulf %265, %277 : vector<32x128xf32>
    %279 = arith.addf %275, %278 : vector<32x128xf32>
    %c120_i32_95 = arith.constant 120 : i32
    %280 = tpu.dynamic_rotate %265 by %c120_i32_95 dim 1 : vector<32x128xf32>, i32 -> vector<32x128xf32>
    %c8_96 = arith.constant 8 : index
    %c0_97 = arith.constant 0 : index
    %281 = vector.load %arg5[%c8_96, %c0_97] : memref<25x128xf32, #tpu.memory_space<vmem>>, vector<1x128xf32>
    %282 = vector.broadcast %281 : vector<1x128xf32> to vector<32x128xf32>
    %283 = arith.mulf %280, %282 : vector<32x128xf32>
    %284 = arith.addf %279, %283 : vector<32x128xf32>
    %c112_i32_98 = arith.constant 112 : i32
    %285 = tpu.dynamic_rotate %265 by %c112_i32_98 dim 1 : vector<32x128xf32>, i32 -> vector<32x128xf32>
    %c9 = arith.constant 9 : index
    %c0_99 = arith.constant 0 : index
    %286 = vector.load %arg5[%c9, %c0_99] : memref<25x128xf32, #tpu.memory_space<vmem>>, vector<1x128xf32>
    %287 = vector.broadcast %286 : vector<1x128xf32> to vector<32x128xf32>
    %288 = arith.mulf %285, %287 : vector<32x128xf32>
    %289 = arith.addf %284, %288 : vector<32x128xf32>
    %290 = vector.extract_strided_slice %187 {offsets = [0, 4, 0], sizes = [2, 16, 128], strides = [1, 1, 1]} : vector<2x24x128xf32> to vector<2x16x128xf32>
    %291 = vector.shape_cast %290 : vector<2x16x128xf32> to vector<32x128xf32>
    %c16_i32_100 = arith.constant 16 : i32
    %292 = tpu.dynamic_rotate %291 by %c16_i32_100 dim 1 : vector<32x128xf32>, i32 -> vector<32x128xf32>
    %c10 = arith.constant 10 : index
    %c0_101 = arith.constant 0 : index
    %293 = vector.load %arg5[%c10, %c0_101] : memref<25x128xf32, #tpu.memory_space<vmem>>, vector<1x128xf32>
    %294 = vector.broadcast %293 : vector<1x128xf32> to vector<32x128xf32>
    %295 = arith.mulf %292, %294 : vector<32x128xf32>
    %296 = arith.addf %289, %295 : vector<32x128xf32>
    %c8_i32_102 = arith.constant 8 : i32
    %297 = tpu.dynamic_rotate %291 by %c8_i32_102 dim 1 : vector<32x128xf32>, i32 -> vector<32x128xf32>
    %c11 = arith.constant 11 : index
    %c0_103 = arith.constant 0 : index
    %298 = vector.load %arg5[%c11, %c0_103] : memref<25x128xf32, #tpu.memory_space<vmem>>, vector<1x128xf32>
    %299 = vector.broadcast %298 : vector<1x128xf32> to vector<32x128xf32>
    %300 = arith.mulf %297, %299 : vector<32x128xf32>
    %301 = arith.addf %296, %300 : vector<32x128xf32>
    %c12 = arith.constant 12 : index
    %c0_104 = arith.constant 0 : index
    %302 = vector.load %arg5[%c12, %c0_104] : memref<25x128xf32, #tpu.memory_space<vmem>>, vector<1x128xf32>
    %303 = vector.broadcast %302 : vector<1x128xf32> to vector<32x128xf32>
    %304 = arith.mulf %291, %303 : vector<32x128xf32>
    %305 = arith.addf %301, %304 : vector<32x128xf32>
    %c120_i32_105 = arith.constant 120 : i32
    %306 = tpu.dynamic_rotate %291 by %c120_i32_105 dim 1 : vector<32x128xf32>, i32 -> vector<32x128xf32>
    %c13 = arith.constant 13 : index
    %c0_106 = arith.constant 0 : index
    %307 = vector.load %arg5[%c13, %c0_106] : memref<25x128xf32, #tpu.memory_space<vmem>>, vector<1x128xf32>
    %308 = vector.broadcast %307 : vector<1x128xf32> to vector<32x128xf32>
    %309 = arith.mulf %306, %308 : vector<32x128xf32>
    %310 = arith.addf %305, %309 : vector<32x128xf32>
    %c112_i32_107 = arith.constant 112 : i32
    %311 = tpu.dynamic_rotate %291 by %c112_i32_107 dim 1 : vector<32x128xf32>, i32 -> vector<32x128xf32>
    %c14 = arith.constant 14 : index
    %c0_108 = arith.constant 0 : index
    %312 = vector.load %arg5[%c14, %c0_108] : memref<25x128xf32, #tpu.memory_space<vmem>>, vector<1x128xf32>
    %313 = vector.broadcast %312 : vector<1x128xf32> to vector<32x128xf32>
    %314 = arith.mulf %311, %313 : vector<32x128xf32>
    %315 = arith.addf %310, %314 : vector<32x128xf32>
    %316 = vector.extract_strided_slice %187 {offsets = [0, 5, 0], sizes = [2, 16, 128], strides = [1, 1, 1]} : vector<2x24x128xf32> to vector<2x16x128xf32>
    %317 = vector.shape_cast %316 : vector<2x16x128xf32> to vector<32x128xf32>
    %c16_i32_109 = arith.constant 16 : i32
    %318 = tpu.dynamic_rotate %317 by %c16_i32_109 dim 1 : vector<32x128xf32>, i32 -> vector<32x128xf32>
    %c15 = arith.constant 15 : index
    %c0_110 = arith.constant 0 : index
    %319 = vector.load %arg5[%c15, %c0_110] : memref<25x128xf32, #tpu.memory_space<vmem>>, vector<1x128xf32>
    %320 = vector.broadcast %319 : vector<1x128xf32> to vector<32x128xf32>
    %321 = arith.mulf %318, %320 : vector<32x128xf32>
    %322 = arith.addf %315, %321 : vector<32x128xf32>
    %c8_i32_111 = arith.constant 8 : i32
    %323 = tpu.dynamic_rotate %317 by %c8_i32_111 dim 1 : vector<32x128xf32>, i32 -> vector<32x128xf32>
    %c16 = arith.constant 16 : index
    %c0_112 = arith.constant 0 : index
    %324 = vector.load %arg5[%c16, %c0_112] : memref<25x128xf32, #tpu.memory_space<vmem>>, vector<1x128xf32>
    %325 = vector.broadcast %324 : vector<1x128xf32> to vector<32x128xf32>
    %326 = arith.mulf %323, %325 : vector<32x128xf32>
    %327 = arith.addf %322, %326 : vector<32x128xf32>
    %c17 = arith.constant 17 : index
    %c0_113 = arith.constant 0 : index
    %328 = vector.load %arg5[%c17, %c0_113] : memref<25x128xf32, #tpu.memory_space<vmem>>, vector<1x128xf32>
    %329 = vector.broadcast %328 : vector<1x128xf32> to vector<32x128xf32>
    %330 = arith.mulf %317, %329 : vector<32x128xf32>
    %331 = arith.addf %327, %330 : vector<32x128xf32>
    %c120_i32_114 = arith.constant 120 : i32
    %332 = tpu.dynamic_rotate %317 by %c120_i32_114 dim 1 : vector<32x128xf32>, i32 -> vector<32x128xf32>
    %c18 = arith.constant 18 : index
    %c0_115 = arith.constant 0 : index
    %333 = vector.load %arg5[%c18, %c0_115] : memref<25x128xf32, #tpu.memory_space<vmem>>, vector<1x128xf32>
    %334 = vector.broadcast %333 : vector<1x128xf32> to vector<32x128xf32>
    %335 = arith.mulf %332, %334 : vector<32x128xf32>
    %336 = arith.addf %331, %335 : vector<32x128xf32>
    %c112_i32_116 = arith.constant 112 : i32
    %337 = tpu.dynamic_rotate %317 by %c112_i32_116 dim 1 : vector<32x128xf32>, i32 -> vector<32x128xf32>
    %c19 = arith.constant 19 : index
    %c0_117 = arith.constant 0 : index
    %338 = vector.load %arg5[%c19, %c0_117] : memref<25x128xf32, #tpu.memory_space<vmem>>, vector<1x128xf32>
    %339 = vector.broadcast %338 : vector<1x128xf32> to vector<32x128xf32>
    %340 = arith.mulf %337, %339 : vector<32x128xf32>
    %341 = arith.addf %336, %340 : vector<32x128xf32>
    %342 = vector.extract_strided_slice %187 {offsets = [0, 6, 0], sizes = [2, 16, 128], strides = [1, 1, 1]} : vector<2x24x128xf32> to vector<2x16x128xf32>
    %343 = vector.shape_cast %342 : vector<2x16x128xf32> to vector<32x128xf32>
    %c16_i32_118 = arith.constant 16 : i32
    %344 = tpu.dynamic_rotate %343 by %c16_i32_118 dim 1 : vector<32x128xf32>, i32 -> vector<32x128xf32>
    %c20 = arith.constant 20 : index
    %c0_119 = arith.constant 0 : index
    %345 = vector.load %arg5[%c20, %c0_119] : memref<25x128xf32, #tpu.memory_space<vmem>>, vector<1x128xf32>
    %346 = vector.broadcast %345 : vector<1x128xf32> to vector<32x128xf32>
    %347 = arith.mulf %344, %346 : vector<32x128xf32>
    %348 = arith.addf %341, %347 : vector<32x128xf32>
    %c8_i32_120 = arith.constant 8 : i32
    %349 = tpu.dynamic_rotate %343 by %c8_i32_120 dim 1 : vector<32x128xf32>, i32 -> vector<32x128xf32>
    %c21 = arith.constant 21 : index
    %c0_121 = arith.constant 0 : index
    %350 = vector.load %arg5[%c21, %c0_121] : memref<25x128xf32, #tpu.memory_space<vmem>>, vector<1x128xf32>
    %351 = vector.broadcast %350 : vector<1x128xf32> to vector<32x128xf32>
    %352 = arith.mulf %349, %351 : vector<32x128xf32>
    %353 = arith.addf %348, %352 : vector<32x128xf32>
    %c22 = arith.constant 22 : index
    %c0_122 = arith.constant 0 : index
    %354 = vector.load %arg5[%c22, %c0_122] : memref<25x128xf32, #tpu.memory_space<vmem>>, vector<1x128xf32>
    %355 = vector.broadcast %354 : vector<1x128xf32> to vector<32x128xf32>
    %356 = arith.mulf %343, %355 : vector<32x128xf32>
    %357 = arith.addf %353, %356 : vector<32x128xf32>
    %c120_i32_123 = arith.constant 120 : i32
    %358 = tpu.dynamic_rotate %343 by %c120_i32_123 dim 1 : vector<32x128xf32>, i32 -> vector<32x128xf32>
    %c23 = arith.constant 23 : index
    %c0_124 = arith.constant 0 : index
    %359 = vector.load %arg5[%c23, %c0_124] : memref<25x128xf32, #tpu.memory_space<vmem>>, vector<1x128xf32>
    %360 = vector.broadcast %359 : vector<1x128xf32> to vector<32x128xf32>
    %361 = arith.mulf %358, %360 : vector<32x128xf32>
    %362 = arith.addf %357, %361 : vector<32x128xf32>
    %c112_i32_125 = arith.constant 112 : i32
    %363 = tpu.dynamic_rotate %343 by %c112_i32_125 dim 1 : vector<32x128xf32>, i32 -> vector<32x128xf32>
    %c24_126 = arith.constant 24 : index
    %c0_127 = arith.constant 0 : index
    %364 = vector.load %arg5[%c24_126, %c0_127] : memref<25x128xf32, #tpu.memory_space<vmem>>, vector<1x128xf32>
    %365 = vector.broadcast %364 : vector<1x128xf32> to vector<32x128xf32>
    %366 = arith.mulf %363, %365 : vector<32x128xf32>
    %367 = arith.addf %362, %366 : vector<32x128xf32>
    %cst_128 = arith.constant 0.000000e+00 : f32
    %368 = vector.broadcast %cst_128 : f32 to vector<32x128xf32>
    %369 = vector.extract_strided_slice %187 {offsets = [0, 2, 0], sizes = [2, 16, 128], strides = [1, 1, 1]} : vector<2x24x128xf32> to vector<2x16x128xf32>
    %370 = vector.shape_cast %369 : vector<2x16x128xf32> to vector<32x128xf32>
    %c16_i32_129 = arith.constant 16 : i32
    %371 = tpu.dynamic_rotate %370 by %c16_i32_129 dim 1 : vector<32x128xf32>, i32 -> vector<32x128xf32>
    %c0_130 = arith.constant 0 : index
    %c0_131 = arith.constant 0 : index
    %372 = vector.load %arg7[%c0_130, %c0_131] : memref<9x128xf32, #tpu.memory_space<vmem>>, vector<1x128xf32>
    %373 = vector.broadcast %372 : vector<1x128xf32> to vector<32x128xf32>
    %374 = arith.mulf %371, %373 : vector<32x128xf32>
    %375 = arith.addf %368, %374 : vector<32x128xf32>
    %c1_132 = arith.constant 1 : index
    %c0_133 = arith.constant 0 : index
    %376 = vector.load %arg7[%c1_132, %c0_133] : memref<9x128xf32, #tpu.memory_space<vmem>>, vector<1x128xf32>
    %377 = vector.broadcast %376 : vector<1x128xf32> to vector<32x128xf32>
    %378 = arith.mulf %370, %377 : vector<32x128xf32>
    %379 = arith.addf %375, %378 : vector<32x128xf32>
    %c112_i32_134 = arith.constant 112 : i32
    %380 = tpu.dynamic_rotate %370 by %c112_i32_134 dim 1 : vector<32x128xf32>, i32 -> vector<32x128xf32>
    %c2_135 = arith.constant 2 : index
    %c0_136 = arith.constant 0 : index
    %381 = vector.load %arg7[%c2_135, %c0_136] : memref<9x128xf32, #tpu.memory_space<vmem>>, vector<1x128xf32>
    %382 = vector.broadcast %381 : vector<1x128xf32> to vector<32x128xf32>
    %383 = arith.mulf %380, %382 : vector<32x128xf32>
    %384 = arith.addf %379, %383 : vector<32x128xf32>
    %385 = vector.extract_strided_slice %187 {offsets = [0, 4, 0], sizes = [2, 16, 128], strides = [1, 1, 1]} : vector<2x24x128xf32> to vector<2x16x128xf32>
    %386 = vector.shape_cast %385 : vector<2x16x128xf32> to vector<32x128xf32>
    %c16_i32_137 = arith.constant 16 : i32
    %387 = tpu.dynamic_rotate %386 by %c16_i32_137 dim 1 : vector<32x128xf32>, i32 -> vector<32x128xf32>
    %c3_138 = arith.constant 3 : index
    %c0_139 = arith.constant 0 : index
    %388 = vector.load %arg7[%c3_138, %c0_139] : memref<9x128xf32, #tpu.memory_space<vmem>>, vector<1x128xf32>
    %389 = vector.broadcast %388 : vector<1x128xf32> to vector<32x128xf32>
    %390 = arith.mulf %387, %389 : vector<32x128xf32>
    %391 = arith.addf %384, %390 : vector<32x128xf32>
    %c4_140 = arith.constant 4 : index
    %c0_141 = arith.constant 0 : index
    %392 = vector.load %arg7[%c4_140, %c0_141] : memref<9x128xf32, #tpu.memory_space<vmem>>, vector<1x128xf32>
    %393 = vector.broadcast %392 : vector<1x128xf32> to vector<32x128xf32>
    %394 = arith.mulf %386, %393 : vector<32x128xf32>
    %395 = arith.addf %391, %394 : vector<32x128xf32>
    %c112_i32_142 = arith.constant 112 : i32
    %396 = tpu.dynamic_rotate %386 by %c112_i32_142 dim 1 : vector<32x128xf32>, i32 -> vector<32x128xf32>
    %c5_143 = arith.constant 5 : index
    %c0_144 = arith.constant 0 : index
    %397 = vector.load %arg7[%c5_143, %c0_144] : memref<9x128xf32, #tpu.memory_space<vmem>>, vector<1x128xf32>
    %398 = vector.broadcast %397 : vector<1x128xf32> to vector<32x128xf32>
    %399 = arith.mulf %396, %398 : vector<32x128xf32>
    %400 = arith.addf %395, %399 : vector<32x128xf32>
    %401 = vector.extract_strided_slice %187 {offsets = [0, 6, 0], sizes = [2, 16, 128], strides = [1, 1, 1]} : vector<2x24x128xf32> to vector<2x16x128xf32>
    %402 = vector.shape_cast %401 : vector<2x16x128xf32> to vector<32x128xf32>
    %c16_i32_145 = arith.constant 16 : i32
    %403 = tpu.dynamic_rotate %402 by %c16_i32_145 dim 1 : vector<32x128xf32>, i32 -> vector<32x128xf32>
    %c6_146 = arith.constant 6 : index
    %c0_147 = arith.constant 0 : index
    %404 = vector.load %arg7[%c6_146, %c0_147] : memref<9x128xf32, #tpu.memory_space<vmem>>, vector<1x128xf32>
    %405 = vector.broadcast %404 : vector<1x128xf32> to vector<32x128xf32>
    %406 = arith.mulf %403, %405 : vector<32x128xf32>
    %407 = arith.addf %400, %406 : vector<32x128xf32>
    %c7_148 = arith.constant 7 : index
    %c0_149 = arith.constant 0 : index
    %408 = vector.load %arg7[%c7_148, %c0_149] : memref<9x128xf32, #tpu.memory_space<vmem>>, vector<1x128xf32>
    %409 = vector.broadcast %408 : vector<1x128xf32> to vector<32x128xf32>
    %410 = arith.mulf %402, %409 : vector<32x128xf32>
    %411 = arith.addf %407, %410 : vector<32x128xf32>
    %c112_i32_150 = arith.constant 112 : i32
    %412 = tpu.dynamic_rotate %402 by %c112_i32_150 dim 1 : vector<32x128xf32>, i32 -> vector<32x128xf32>
    %c8_151 = arith.constant 8 : index
    %c0_152 = arith.constant 0 : index
    %413 = vector.load %arg7[%c8_151, %c0_152] : memref<9x128xf32, #tpu.memory_space<vmem>>, vector<1x128xf32>
    %414 = vector.broadcast %413 : vector<1x128xf32> to vector<32x128xf32>
    %415 = arith.mulf %412, %414 : vector<32x128xf32>
    %416 = arith.addf %411, %415 : vector<32x128xf32>
    %cst_153 = arith.constant 0.000000e+00 : f32
    %417 = vector.broadcast %cst_153 : f32 to vector<32x128xf32>
    %418 = vector.extract_strided_slice %187 {offsets = [0, 0, 0], sizes = [2, 16, 128], strides = [1, 1, 1]} : vector<2x24x128xf32> to vector<2x16x128xf32>
    %419 = vector.shape_cast %418 : vector<2x16x128xf32> to vector<32x128xf32>
    %c32_i32_154 = arith.constant 32 : i32
    %420 = tpu.dynamic_rotate %419 by %c32_i32_154 dim 1 : vector<32x128xf32>, i32 -> vector<32x128xf32>
    %c0_155 = arith.constant 0 : index
    %c0_156 = arith.constant 0 : index
    %421 = vector.load %arg8[%c0_155, %c0_156] : memref<25x128xf32, #tpu.memory_space<vmem>>, vector<1x128xf32>
    %422 = vector.broadcast %421 : vector<1x128xf32> to vector<32x128xf32>
    %423 = arith.mulf %420, %422 : vector<32x128xf32>
    %424 = arith.addf %417, %423 : vector<32x128xf32>
    %c16_i32_157 = arith.constant 16 : i32
    %425 = tpu.dynamic_rotate %419 by %c16_i32_157 dim 1 : vector<32x128xf32>, i32 -> vector<32x128xf32>
    %c1_158 = arith.constant 1 : index
    %c0_159 = arith.constant 0 : index
    %426 = vector.load %arg8[%c1_158, %c0_159] : memref<25x128xf32, #tpu.memory_space<vmem>>, vector<1x128xf32>
    %427 = vector.broadcast %426 : vector<1x128xf32> to vector<32x128xf32>
    %428 = arith.mulf %425, %427 : vector<32x128xf32>
    %429 = arith.addf %424, %428 : vector<32x128xf32>
    %c2_160 = arith.constant 2 : index
    %c0_161 = arith.constant 0 : index
    %430 = vector.load %arg8[%c2_160, %c0_161] : memref<25x128xf32, #tpu.memory_space<vmem>>, vector<1x128xf32>
    %431 = vector.broadcast %430 : vector<1x128xf32> to vector<32x128xf32>
    %432 = arith.mulf %419, %431 : vector<32x128xf32>
    %433 = arith.addf %429, %432 : vector<32x128xf32>
    %c112_i32_162 = arith.constant 112 : i32
    %434 = tpu.dynamic_rotate %419 by %c112_i32_162 dim 1 : vector<32x128xf32>, i32 -> vector<32x128xf32>
    %c3_163 = arith.constant 3 : index
    %c0_164 = arith.constant 0 : index
    %435 = vector.load %arg8[%c3_163, %c0_164] : memref<25x128xf32, #tpu.memory_space<vmem>>, vector<1x128xf32>
    %436 = vector.broadcast %435 : vector<1x128xf32> to vector<32x128xf32>
    %437 = arith.mulf %434, %436 : vector<32x128xf32>
    %438 = arith.addf %433, %437 : vector<32x128xf32>
    %c96_i32 = arith.constant 96 : i32
    %439 = tpu.dynamic_rotate %419 by %c96_i32 dim 1 : vector<32x128xf32>, i32 -> vector<32x128xf32>
    %c4_165 = arith.constant 4 : index
    %c0_166 = arith.constant 0 : index
    %440 = vector.load %arg8[%c4_165, %c0_166] : memref<25x128xf32, #tpu.memory_space<vmem>>, vector<1x128xf32>
    %441 = vector.broadcast %440 : vector<1x128xf32> to vector<32x128xf32>
    %442 = arith.mulf %439, %441 : vector<32x128xf32>
    %443 = arith.addf %438, %442 : vector<32x128xf32>
    %444 = vector.extract_strided_slice %187 {offsets = [0, 2, 0], sizes = [2, 16, 128], strides = [1, 1, 1]} : vector<2x24x128xf32> to vector<2x16x128xf32>
    %445 = vector.shape_cast %444 : vector<2x16x128xf32> to vector<32x128xf32>
    %c32_i32_167 = arith.constant 32 : i32
    %446 = tpu.dynamic_rotate %445 by %c32_i32_167 dim 1 : vector<32x128xf32>, i32 -> vector<32x128xf32>
    %c5_168 = arith.constant 5 : index
    %c0_169 = arith.constant 0 : index
    %447 = vector.load %arg8[%c5_168, %c0_169] : memref<25x128xf32, #tpu.memory_space<vmem>>, vector<1x128xf32>
    %448 = vector.broadcast %447 : vector<1x128xf32> to vector<32x128xf32>
    %449 = arith.mulf %446, %448 : vector<32x128xf32>
    %450 = arith.addf %443, %449 : vector<32x128xf32>
    %c16_i32_170 = arith.constant 16 : i32
    %451 = tpu.dynamic_rotate %445 by %c16_i32_170 dim 1 : vector<32x128xf32>, i32 -> vector<32x128xf32>
    %c6_171 = arith.constant 6 : index
    %c0_172 = arith.constant 0 : index
    %452 = vector.load %arg8[%c6_171, %c0_172] : memref<25x128xf32, #tpu.memory_space<vmem>>, vector<1x128xf32>
    %453 = vector.broadcast %452 : vector<1x128xf32> to vector<32x128xf32>
    %454 = arith.mulf %451, %453 : vector<32x128xf32>
    %455 = arith.addf %450, %454 : vector<32x128xf32>
    %c7_173 = arith.constant 7 : index
    %c0_174 = arith.constant 0 : index
    %456 = vector.load %arg8[%c7_173, %c0_174] : memref<25x128xf32, #tpu.memory_space<vmem>>, vector<1x128xf32>
    %457 = vector.broadcast %456 : vector<1x128xf32> to vector<32x128xf32>
    %458 = arith.mulf %445, %457 : vector<32x128xf32>
    %459 = arith.addf %455, %458 : vector<32x128xf32>
    %c112_i32_175 = arith.constant 112 : i32
    %460 = tpu.dynamic_rotate %445 by %c112_i32_175 dim 1 : vector<32x128xf32>, i32 -> vector<32x128xf32>
    %c8_176 = arith.constant 8 : index
    %c0_177 = arith.constant 0 : index
    %461 = vector.load %arg8[%c8_176, %c0_177] : memref<25x128xf32, #tpu.memory_space<vmem>>, vector<1x128xf32>
    %462 = vector.broadcast %461 : vector<1x128xf32> to vector<32x128xf32>
    %463 = arith.mulf %460, %462 : vector<32x128xf32>
    %464 = arith.addf %459, %463 : vector<32x128xf32>
    %c96_i32_178 = arith.constant 96 : i32
    %465 = tpu.dynamic_rotate %445 by %c96_i32_178 dim 1 : vector<32x128xf32>, i32 -> vector<32x128xf32>
    %c9_179 = arith.constant 9 : index
    %c0_180 = arith.constant 0 : index
    %466 = vector.load %arg8[%c9_179, %c0_180] : memref<25x128xf32, #tpu.memory_space<vmem>>, vector<1x128xf32>
    %467 = vector.broadcast %466 : vector<1x128xf32> to vector<32x128xf32>
    %468 = arith.mulf %465, %467 : vector<32x128xf32>
    %469 = arith.addf %464, %468 : vector<32x128xf32>
    %470 = vector.extract_strided_slice %187 {offsets = [0, 4, 0], sizes = [2, 16, 128], strides = [1, 1, 1]} : vector<2x24x128xf32> to vector<2x16x128xf32>
    %471 = vector.shape_cast %470 : vector<2x16x128xf32> to vector<32x128xf32>
    %c32_i32_181 = arith.constant 32 : i32
    %472 = tpu.dynamic_rotate %471 by %c32_i32_181 dim 1 : vector<32x128xf32>, i32 -> vector<32x128xf32>
    %c10_182 = arith.constant 10 : index
    %c0_183 = arith.constant 0 : index
    %473 = vector.load %arg8[%c10_182, %c0_183] : memref<25x128xf32, #tpu.memory_space<vmem>>, vector<1x128xf32>
    %474 = vector.broadcast %473 : vector<1x128xf32> to vector<32x128xf32>
    %475 = arith.mulf %472, %474 : vector<32x128xf32>
    %476 = arith.addf %469, %475 : vector<32x128xf32>
    %c16_i32_184 = arith.constant 16 : i32
    %477 = tpu.dynamic_rotate %471 by %c16_i32_184 dim 1 : vector<32x128xf32>, i32 -> vector<32x128xf32>
    %c11_185 = arith.constant 11 : index
    %c0_186 = arith.constant 0 : index
    %478 = vector.load %arg8[%c11_185, %c0_186] : memref<25x128xf32, #tpu.memory_space<vmem>>, vector<1x128xf32>
    %479 = vector.broadcast %478 : vector<1x128xf32> to vector<32x128xf32>
    %480 = arith.mulf %477, %479 : vector<32x128xf32>
    %481 = arith.addf %476, %480 : vector<32x128xf32>
    %c12_187 = arith.constant 12 : index
    %c0_188 = arith.constant 0 : index
    %482 = vector.load %arg8[%c12_187, %c0_188] : memref<25x128xf32, #tpu.memory_space<vmem>>, vector<1x128xf32>
    %483 = vector.broadcast %482 : vector<1x128xf32> to vector<32x128xf32>
    %484 = arith.mulf %471, %483 : vector<32x128xf32>
    %485 = arith.addf %481, %484 : vector<32x128xf32>
    %c112_i32_189 = arith.constant 112 : i32
    %486 = tpu.dynamic_rotate %471 by %c112_i32_189 dim 1 : vector<32x128xf32>, i32 -> vector<32x128xf32>
    %c13_190 = arith.constant 13 : index
    %c0_191 = arith.constant 0 : index
    %487 = vector.load %arg8[%c13_190, %c0_191] : memref<25x128xf32, #tpu.memory_space<vmem>>, vector<1x128xf32>
    %488 = vector.broadcast %487 : vector<1x128xf32> to vector<32x128xf32>
    %489 = arith.mulf %486, %488 : vector<32x128xf32>
    %490 = arith.addf %485, %489 : vector<32x128xf32>
    %c96_i32_192 = arith.constant 96 : i32
    %491 = tpu.dynamic_rotate %471 by %c96_i32_192 dim 1 : vector<32x128xf32>, i32 -> vector<32x128xf32>
    %c14_193 = arith.constant 14 : index
    %c0_194 = arith.constant 0 : index
    %492 = vector.load %arg8[%c14_193, %c0_194] : memref<25x128xf32, #tpu.memory_space<vmem>>, vector<1x128xf32>
    %493 = vector.broadcast %492 : vector<1x128xf32> to vector<32x128xf32>
    %494 = arith.mulf %491, %493 : vector<32x128xf32>
    %495 = arith.addf %490, %494 : vector<32x128xf32>
    %496 = vector.extract_strided_slice %187 {offsets = [0, 6, 0], sizes = [2, 16, 128], strides = [1, 1, 1]} : vector<2x24x128xf32> to vector<2x16x128xf32>
    %497 = vector.shape_cast %496 : vector<2x16x128xf32> to vector<32x128xf32>
    %c32_i32_195 = arith.constant 32 : i32
    %498 = tpu.dynamic_rotate %497 by %c32_i32_195 dim 1 : vector<32x128xf32>, i32 -> vector<32x128xf32>
    %c15_196 = arith.constant 15 : index
    %c0_197 = arith.constant 0 : index
    %499 = vector.load %arg8[%c15_196, %c0_197] : memref<25x128xf32, #tpu.memory_space<vmem>>, vector<1x128xf32>
    %500 = vector.broadcast %499 : vector<1x128xf32> to vector<32x128xf32>
    %501 = arith.mulf %498, %500 : vector<32x128xf32>
    %502 = arith.addf %495, %501 : vector<32x128xf32>
    %c16_i32_198 = arith.constant 16 : i32
    %503 = tpu.dynamic_rotate %497 by %c16_i32_198 dim 1 : vector<32x128xf32>, i32 -> vector<32x128xf32>
    %c16_199 = arith.constant 16 : index
    %c0_200 = arith.constant 0 : index
    %504 = vector.load %arg8[%c16_199, %c0_200] : memref<25x128xf32, #tpu.memory_space<vmem>>, vector<1x128xf32>
    %505 = vector.broadcast %504 : vector<1x128xf32> to vector<32x128xf32>
    %506 = arith.mulf %503, %505 : vector<32x128xf32>
    %507 = arith.addf %502, %506 : vector<32x128xf32>
    %c17_201 = arith.constant 17 : index
    %c0_202 = arith.constant 0 : index
    %508 = vector.load %arg8[%c17_201, %c0_202] : memref<25x128xf32, #tpu.memory_space<vmem>>, vector<1x128xf32>
    %509 = vector.broadcast %508 : vector<1x128xf32> to vector<32x128xf32>
    %510 = arith.mulf %497, %509 : vector<32x128xf32>
    %511 = arith.addf %507, %510 : vector<32x128xf32>
    %c112_i32_203 = arith.constant 112 : i32
    %512 = tpu.dynamic_rotate %497 by %c112_i32_203 dim 1 : vector<32x128xf32>, i32 -> vector<32x128xf32>
    %c18_204 = arith.constant 18 : index
    %c0_205 = arith.constant 0 : index
    %513 = vector.load %arg8[%c18_204, %c0_205] : memref<25x128xf32, #tpu.memory_space<vmem>>, vector<1x128xf32>
    %514 = vector.broadcast %513 : vector<1x128xf32> to vector<32x128xf32>
    %515 = arith.mulf %512, %514 : vector<32x128xf32>
    %516 = arith.addf %511, %515 : vector<32x128xf32>
    %c96_i32_206 = arith.constant 96 : i32
    %517 = tpu.dynamic_rotate %497 by %c96_i32_206 dim 1 : vector<32x128xf32>, i32 -> vector<32x128xf32>
    %c19_207 = arith.constant 19 : index
    %c0_208 = arith.constant 0 : index
    %518 = vector.load %arg8[%c19_207, %c0_208] : memref<25x128xf32, #tpu.memory_space<vmem>>, vector<1x128xf32>
    %519 = vector.broadcast %518 : vector<1x128xf32> to vector<32x128xf32>
    %520 = arith.mulf %517, %519 : vector<32x128xf32>
    %521 = arith.addf %516, %520 : vector<32x128xf32>
    %522 = vector.extract_strided_slice %187 {offsets = [0, 8, 0], sizes = [2, 16, 128], strides = [1, 1, 1]} : vector<2x24x128xf32> to vector<2x16x128xf32>
    %523 = vector.shape_cast %522 : vector<2x16x128xf32> to vector<32x128xf32>
    %c32_i32_209 = arith.constant 32 : i32
    %524 = tpu.dynamic_rotate %523 by %c32_i32_209 dim 1 : vector<32x128xf32>, i32 -> vector<32x128xf32>
    %c20_210 = arith.constant 20 : index
    %c0_211 = arith.constant 0 : index
    %525 = vector.load %arg8[%c20_210, %c0_211] : memref<25x128xf32, #tpu.memory_space<vmem>>, vector<1x128xf32>
    %526 = vector.broadcast %525 : vector<1x128xf32> to vector<32x128xf32>
    %527 = arith.mulf %524, %526 : vector<32x128xf32>
    %528 = arith.addf %521, %527 : vector<32x128xf32>
    %c16_i32_212 = arith.constant 16 : i32
    %529 = tpu.dynamic_rotate %523 by %c16_i32_212 dim 1 : vector<32x128xf32>, i32 -> vector<32x128xf32>
    %c21_213 = arith.constant 21 : index
    %c0_214 = arith.constant 0 : index
    %530 = vector.load %arg8[%c21_213, %c0_214] : memref<25x128xf32, #tpu.memory_space<vmem>>, vector<1x128xf32>
    %531 = vector.broadcast %530 : vector<1x128xf32> to vector<32x128xf32>
    %532 = arith.mulf %529, %531 : vector<32x128xf32>
    %533 = arith.addf %528, %532 : vector<32x128xf32>
    %c22_215 = arith.constant 22 : index
    %c0_216 = arith.constant 0 : index
    %534 = vector.load %arg8[%c22_215, %c0_216] : memref<25x128xf32, #tpu.memory_space<vmem>>, vector<1x128xf32>
    %535 = vector.broadcast %534 : vector<1x128xf32> to vector<32x128xf32>
    %536 = arith.mulf %523, %535 : vector<32x128xf32>
    %537 = arith.addf %533, %536 : vector<32x128xf32>
    %c112_i32_217 = arith.constant 112 : i32
    %538 = tpu.dynamic_rotate %523 by %c112_i32_217 dim 1 : vector<32x128xf32>, i32 -> vector<32x128xf32>
    %c23_218 = arith.constant 23 : index
    %c0_219 = arith.constant 0 : index
    %539 = vector.load %arg8[%c23_218, %c0_219] : memref<25x128xf32, #tpu.memory_space<vmem>>, vector<1x128xf32>
    %540 = vector.broadcast %539 : vector<1x128xf32> to vector<32x128xf32>
    %541 = arith.mulf %538, %540 : vector<32x128xf32>
    %542 = arith.addf %537, %541 : vector<32x128xf32>
    %c96_i32_220 = arith.constant 96 : i32
    %543 = tpu.dynamic_rotate %523 by %c96_i32_220 dim 1 : vector<32x128xf32>, i32 -> vector<32x128xf32>
    %c24_221 = arith.constant 24 : index
    %c0_222 = arith.constant 0 : index
    %544 = vector.load %arg8[%c24_221, %c0_222] : memref<25x128xf32, #tpu.memory_space<vmem>>, vector<1x128xf32>
    %545 = vector.broadcast %544 : vector<1x128xf32> to vector<32x128xf32>
    %546 = arith.mulf %543, %545 : vector<32x128xf32>
    %547 = arith.addf %542, %546 : vector<32x128xf32>
    %c6_223 = arith.constant 6 : index
    %548 = memref.load %arg1[%c6_223] : memref<8xf32, #tpu.memory_space<smem>>
    %549 = arith.truncf %416 : vector<32x128xf32> to vector<32x128xbf16>
    %c0_224 = arith.constant 0 : index
    %c0_225 = arith.constant 0 : index
    %550 = vector.load %arg13[%c0_224, %c0_225] : memref<128x128xbf16, #tpu.memory_space<vmem>>, vector<128x128xbf16>
    %cst_226 = arith.constant dense<0.000000e+00> : vector<32x128xf32>
    %551 = tpu.matmul %549, %550, %cst_226 {dimension_numbers = #tpu.dot_dimension_numbers<[1], [0], [0], [1], [0, 0, 1, 1], [], []>} : vector<32x128xbf16>, vector<128x128xbf16>, vector<32x128xf32> -> vector<32x128xf32>
    %cst_227 = arith.constant dense<0.000000e+00> : vector<128xf32>
    %552 = vector.multi_reduction <add>, %551, %cst_227 [0] : vector<32x128xf32> to vector<128xf32>
    %553 = vector.shape_cast %552 : vector<128xf32> to vector<1x128xf32>
    %c8_i32_228 = arith.constant 8 : i32
    %554 = tpu.dynamic_rotate %553 by %c8_i32_228 dim 1 : vector<1x128xf32>, i32 -> vector<1x128xf32>
    %555 = arith.addf %553, %554 : vector<1x128xf32>
    %c16_i32_229 = arith.constant 16 : i32
    %556 = tpu.dynamic_rotate %555 by %c16_i32_229 dim 1 : vector<1x128xf32>, i32 -> vector<1x128xf32>
    %557 = arith.addf %555, %556 : vector<1x128xf32>
    %c32_i32_230 = arith.constant 32 : i32
    %558 = tpu.dynamic_rotate %557 by %c32_i32_230 dim 1 : vector<1x128xf32>, i32 -> vector<1x128xf32>
    %559 = arith.addf %557, %558 : vector<1x128xf32>
    %c64_i32_231 = arith.constant 64 : i32
    %560 = tpu.dynamic_rotate %559 by %c64_i32_231 dim 1 : vector<1x128xf32>, i32 -> vector<1x128xf32>
    %561 = arith.addf %559, %560 : vector<1x128xf32>
    %cst_232 = arith.constant 0.001953125 : f32
    %562 = vector.broadcast %cst_232 : f32 to vector<1x128xf32>
    %563 = arith.mulf %561, %562 : vector<1x128xf32>
    %564 = vector.broadcast %563 : vector<1x128xf32> to vector<32x128xf32>
    %565 = arith.subf %551, %564 : vector<32x128xf32>
    %566 = arith.mulf %565, %565 : vector<32x128xf32>
    %cst_233 = arith.constant dense<0.000000e+00> : vector<128xf32>
    %567 = vector.multi_reduction <add>, %566, %cst_233 [0] : vector<32x128xf32> to vector<128xf32>
    %568 = vector.shape_cast %567 : vector<128xf32> to vector<1x128xf32>
    %c8_i32_234 = arith.constant 8 : i32
    %569 = tpu.dynamic_rotate %568 by %c8_i32_234 dim 1 : vector<1x128xf32>, i32 -> vector<1x128xf32>
    %570 = arith.addf %568, %569 : vector<1x128xf32>
    %c16_i32_235 = arith.constant 16 : i32
    %571 = tpu.dynamic_rotate %570 by %c16_i32_235 dim 1 : vector<1x128xf32>, i32 -> vector<1x128xf32>
    %572 = arith.addf %570, %571 : vector<1x128xf32>
    %c32_i32_236 = arith.constant 32 : i32
    %573 = tpu.dynamic_rotate %572 by %c32_i32_236 dim 1 : vector<1x128xf32>, i32 -> vector<1x128xf32>
    %574 = arith.addf %572, %573 : vector<1x128xf32>
    %c64_i32_237 = arith.constant 64 : i32
    %575 = tpu.dynamic_rotate %574 by %c64_i32_237 dim 1 : vector<1x128xf32>, i32 -> vector<1x128xf32>
    %576 = arith.addf %574, %575 : vector<1x128xf32>
    %cst_238 = arith.constant 0.001953125 : f32
    %577 = vector.broadcast %cst_238 : f32 to vector<1x128xf32>
    %578 = arith.mulf %576, %577 : vector<1x128xf32>
    %cst_239 = arith.constant 9.99999974E-6 : f32
    %579 = vector.broadcast %cst_239 : f32 to vector<1x128xf32>
    %580 = arith.addf %578, %579 : vector<1x128xf32>
    %581 = math.rsqrt %580 : vector<1x128xf32>
    %582 = vector.broadcast %581 : vector<1x128xf32> to vector<32x128xf32>
    %583 = arith.mulf %565, %582 : vector<32x128xf32>
    %584 = vector.broadcast %548 : f32 to vector<32x128xf32>
    %585 = arith.mulf %584, %583 : vector<32x128xf32>
    %586 = arith.addf %185, %585 : vector<32x128xf32>
    %c7_240 = arith.constant 7 : index
    %587 = memref.load %arg1[%c7_240] : memref<8xf32, #tpu.memory_space<smem>>
    %588 = arith.truncf %547 : vector<32x128xf32> to vector<32x128xbf16>
    %c0_241 = arith.constant 0 : index
    %c0_242 = arith.constant 0 : index
    %589 = vector.load %arg14[%c0_241, %c0_242] : memref<128x128xbf16, #tpu.memory_space<vmem>>, vector<128x128xbf16>
    %cst_243 = arith.constant dense<0.000000e+00> : vector<32x128xf32>
    %590 = tpu.matmul %588, %589, %cst_243 {dimension_numbers = #tpu.dot_dimension_numbers<[1], [0], [0], [1], [0, 0, 1, 1], [], []>} : vector<32x128xbf16>, vector<128x128xbf16>, vector<32x128xf32> -> vector<32x128xf32>
    %cst_244 = arith.constant dense<0.000000e+00> : vector<128xf32>
    %591 = vector.multi_reduction <add>, %590, %cst_244 [0] : vector<32x128xf32> to vector<128xf32>
    %592 = vector.shape_cast %591 : vector<128xf32> to vector<1x128xf32>
    %c8_i32_245 = arith.constant 8 : i32
    %593 = tpu.dynamic_rotate %592 by %c8_i32_245 dim 1 : vector<1x128xf32>, i32 -> vector<1x128xf32>
    %594 = arith.addf %592, %593 : vector<1x128xf32>
    %c16_i32_246 = arith.constant 16 : i32
    %595 = tpu.dynamic_rotate %594 by %c16_i32_246 dim 1 : vector<1x128xf32>, i32 -> vector<1x128xf32>
    %596 = arith.addf %594, %595 : vector<1x128xf32>
    %c32_i32_247 = arith.constant 32 : i32
    %597 = tpu.dynamic_rotate %596 by %c32_i32_247 dim 1 : vector<1x128xf32>, i32 -> vector<1x128xf32>
    %598 = arith.addf %596, %597 : vector<1x128xf32>
    %c64_i32_248 = arith.constant 64 : i32
    %599 = tpu.dynamic_rotate %598 by %c64_i32_248 dim 1 : vector<1x128xf32>, i32 -> vector<1x128xf32>
    %600 = arith.addf %598, %599 : vector<1x128xf32>
    %cst_249 = arith.constant 0.001953125 : f32
    %601 = vector.broadcast %cst_249 : f32 to vector<1x128xf32>
    %602 = arith.mulf %600, %601 : vector<1x128xf32>
    %603 = vector.broadcast %602 : vector<1x128xf32> to vector<32x128xf32>
    %604 = arith.subf %590, %603 : vector<32x128xf32>
    %605 = arith.mulf %604, %604 : vector<32x128xf32>
    %cst_250 = arith.constant dense<0.000000e+00> : vector<128xf32>
    %606 = vector.multi_reduction <add>, %605, %cst_250 [0] : vector<32x128xf32> to vector<128xf32>
    %607 = vector.shape_cast %606 : vector<128xf32> to vector<1x128xf32>
    %c8_i32_251 = arith.constant 8 : i32
    %608 = tpu.dynamic_rotate %607 by %c8_i32_251 dim 1 : vector<1x128xf32>, i32 -> vector<1x128xf32>
    %609 = arith.addf %607, %608 : vector<1x128xf32>
    %c16_i32_252 = arith.constant 16 : i32
    %610 = tpu.dynamic_rotate %609 by %c16_i32_252 dim 1 : vector<1x128xf32>, i32 -> vector<1x128xf32>
    %611 = arith.addf %609, %610 : vector<1x128xf32>
    %c32_i32_253 = arith.constant 32 : i32
    %612 = tpu.dynamic_rotate %611 by %c32_i32_253 dim 1 : vector<1x128xf32>, i32 -> vector<1x128xf32>
    %613 = arith.addf %611, %612 : vector<1x128xf32>
    %c64_i32_254 = arith.constant 64 : i32
    %614 = tpu.dynamic_rotate %613 by %c64_i32_254 dim 1 : vector<1x128xf32>, i32 -> vector<1x128xf32>
    %615 = arith.addf %613, %614 : vector<1x128xf32>
    %cst_255 = arith.constant 0.001953125 : f32
    %616 = vector.broadcast %cst_255 : f32 to vector<1x128xf32>
    %617 = arith.mulf %615, %616 : vector<1x128xf32>
    %cst_256 = arith.constant 9.99999974E-6 : f32
    %618 = vector.broadcast %cst_256 : f32 to vector<1x128xf32>
    %619 = arith.addf %617, %618 : vector<1x128xf32>
    %620 = math.rsqrt %619 : vector<1x128xf32>
    %621 = vector.broadcast %620 : vector<1x128xf32> to vector<32x128xf32>
    %622 = arith.mulf %604, %621 : vector<32x128xf32>
    %623 = vector.broadcast %587 : f32 to vector<32x128xf32>
    %624 = arith.mulf %623, %622 : vector<32x128xf32>
    %625 = arith.addf %586, %624 : vector<32x128xf32>
    %626 = arith.truncf %236 : vector<32x128xf32> to vector<32x128xbf16>
    %c0_257 = arith.constant 0 : index
    %c0_258 = arith.constant 0 : index
    %627 = vector.load %arg9[%c0_257, %c0_258] : memref<128x128xbf16, #tpu.memory_space<vmem>>, vector<128x128xbf16>
    %cst_259 = arith.constant dense<0.000000e+00> : vector<32x128xf32>
    %628 = tpu.matmul %626, %627, %cst_259 {dimension_numbers = #tpu.dot_dimension_numbers<[1], [0], [0], [1], [0, 0, 1, 1], [], []>} : vector<32x128xbf16>, vector<128x128xbf16>, vector<32x128xf32> -> vector<32x128xf32>
    %cst_260 = arith.constant dense<0.000000e+00> : vector<128xf32>
    %629 = vector.multi_reduction <add>, %628, %cst_260 [0] : vector<32x128xf32> to vector<128xf32>
    %630 = vector.shape_cast %629 : vector<128xf32> to vector<1x128xf32>
    %c8_i32_261 = arith.constant 8 : i32
    %631 = tpu.dynamic_rotate %630 by %c8_i32_261 dim 1 : vector<1x128xf32>, i32 -> vector<1x128xf32>
    %632 = arith.addf %630, %631 : vector<1x128xf32>
    %c16_i32_262 = arith.constant 16 : i32
    %633 = tpu.dynamic_rotate %632 by %c16_i32_262 dim 1 : vector<1x128xf32>, i32 -> vector<1x128xf32>
    %634 = arith.addf %632, %633 : vector<1x128xf32>
    %c32_i32_263 = arith.constant 32 : i32
    %635 = tpu.dynamic_rotate %634 by %c32_i32_263 dim 1 : vector<1x128xf32>, i32 -> vector<1x128xf32>
    %636 = arith.addf %634, %635 : vector<1x128xf32>
    %c64_i32_264 = arith.constant 64 : i32
    %637 = tpu.dynamic_rotate %636 by %c64_i32_264 dim 1 : vector<1x128xf32>, i32 -> vector<1x128xf32>
    %638 = arith.addf %636, %637 : vector<1x128xf32>
    %cst_265 = arith.constant 0.001953125 : f32
    %639 = vector.broadcast %cst_265 : f32 to vector<1x128xf32>
    %640 = arith.mulf %638, %639 : vector<1x128xf32>
    %641 = vector.broadcast %640 : vector<1x128xf32> to vector<32x128xf32>
    %642 = arith.subf %628, %641 : vector<32x128xf32>
    %643 = arith.mulf %642, %642 : vector<32x128xf32>
    %cst_266 = arith.constant dense<0.000000e+00> : vector<128xf32>
    %644 = vector.multi_reduction <add>, %643, %cst_266 [0] : vector<32x128xf32> to vector<128xf32>
    %645 = vector.shape_cast %644 : vector<128xf32> to vector<1x128xf32>
    %c8_i32_267 = arith.constant 8 : i32
    %646 = tpu.dynamic_rotate %645 by %c8_i32_267 dim 1 : vector<1x128xf32>, i32 -> vector<1x128xf32>
    %647 = arith.addf %645, %646 : vector<1x128xf32>
    %c16_i32_268 = arith.constant 16 : i32
    %648 = tpu.dynamic_rotate %647 by %c16_i32_268 dim 1 : vector<1x128xf32>, i32 -> vector<1x128xf32>
    %649 = arith.addf %647, %648 : vector<1x128xf32>
    %c32_i32_269 = arith.constant 32 : i32
    %650 = tpu.dynamic_rotate %649 by %c32_i32_269 dim 1 : vector<1x128xf32>, i32 -> vector<1x128xf32>
    %651 = arith.addf %649, %650 : vector<1x128xf32>
    %c64_i32_270 = arith.constant 64 : i32
    %652 = tpu.dynamic_rotate %651 by %c64_i32_270 dim 1 : vector<1x128xf32>, i32 -> vector<1x128xf32>
    %653 = arith.addf %651, %652 : vector<1x128xf32>
    %cst_271 = arith.constant 0.001953125 : f32
    %654 = vector.broadcast %cst_271 : f32 to vector<1x128xf32>
    %655 = arith.mulf %653, %654 : vector<1x128xf32>
    %cst_272 = arith.constant 9.99999974E-6 : f32
    %656 = vector.broadcast %cst_272 : f32 to vector<1x128xf32>
    %657 = arith.addf %655, %656 : vector<1x128xf32>
    %658 = math.rsqrt %657 : vector<1x128xf32>
    %659 = vector.broadcast %658 : vector<1x128xf32> to vector<32x128xf32>
    %660 = arith.mulf %642, %659 : vector<32x128xf32>
    %cst_273 = arith.constant 0.000000e+00 : f32
    %661 = vector.broadcast %cst_273 : f32 to vector<32x128xf32>
    %662 = arith.maximumf %660, %661 : vector<32x128xf32>
    %663 = vector.shape_cast %662 : vector<32x128xf32> to vector<2x16x128xf32>
    %c0_274 = arith.constant 0 : index
    %c8_275 = arith.constant 8 : index
    %c0_276 = arith.constant 0 : index
    %664 = vector.load %arg16[%c0_274, %c8_275, %c0_276] : memref<2x32x128xf32, #tpu.memory_space<vmem>>, vector<2x16x128xf32>
    tpu.vector_store %arg16[%c0_274, %c8_275, %c0_276], %663 {strides = array<i32>} : memref<2x32x128xf32, #tpu.memory_space<vmem>>, vector<2x16x128xf32>,
    %cst_277 = arith.constant 0.000000e+00 : f32
    %665 = vector.broadcast %cst_277 : f32 to vector<32x128xf32>
    %c0_278 = arith.constant 0 : index
    %c7_279 = arith.constant 7 : index
    %c0_280 = arith.constant 0 : index
    %666 = vector.load %arg16[%c0_278, %c7_279, %c0_280] : memref<2x32x128xf32, #tpu.memory_space<vmem>>, vector<2x16x128xf32>
    %667 = vector.shape_cast %666 : vector<2x16x128xf32> to vector<32x128xf32>
    %c8_i32_281 = arith.constant 8 : i32
    %668 = tpu.dynamic_rotate %667 by %c8_i32_281 dim 1 : vector<32x128xf32>, i32 -> vector<32x128xf32>
    %c0_282 = arith.constant 0 : index
    %c0_283 = arith.constant 0 : index
    %669 = vector.load %arg4[%c0_282, %c0_283] : memref<9x128xf32, #tpu.memory_space<vmem>>, vector<1x128xf32>
    %670 = vector.broadcast %669 : vector<1x128xf32> to vector<32x128xf32>
    %671 = arith.mulf %668, %670 : vector<32x128xf32>
    %672 = arith.addf %665, %671 : vector<32x128xf32>
    %c1_284 = arith.constant 1 : index
    %c0_285 = arith.constant 0 : index
    %673 = vector.load %arg4[%c1_284, %c0_285] : memref<9x128xf32, #tpu.memory_space<vmem>>, vector<1x128xf32>
    %674 = vector.broadcast %673 : vector<1x128xf32> to vector<32x128xf32>
    %675 = arith.mulf %667, %674 : vector<32x128xf32>
    %676 = arith.addf %672, %675 : vector<32x128xf32>
    %c120_i32_286 = arith.constant 120 : i32
    %677 = tpu.dynamic_rotate %667 by %c120_i32_286 dim 1 : vector<32x128xf32>, i32 -> vector<32x128xf32>
    %c2_287 = arith.constant 2 : index
    %c0_288 = arith.constant 0 : index
    %678 = vector.load %arg4[%c2_287, %c0_288] : memref<9x128xf32, #tpu.memory_space<vmem>>, vector<1x128xf32>
    %679 = vector.broadcast %678 : vector<1x128xf32> to vector<32x128xf32>
    %680 = arith.mulf %677, %679 : vector<32x128xf32>
    %681 = arith.addf %676, %680 : vector<32x128xf32>
    %c0_289 = arith.constant 0 : index
    %c8_290 = arith.constant 8 : index
    %c0_291 = arith.constant 0 : index
    %682 = vector.load %arg16[%c0_289, %c8_290, %c0_291] : memref<2x32x128xf32, #tpu.memory_space<vmem>>, vector<2x16x128xf32>
    %683 = vector.shape_cast %682 : vector<2x16x128xf32> to vector<32x128xf32>
    %c8_i32_292 = arith.constant 8 : i32
    %684 = tpu.dynamic_rotate %683 by %c8_i32_292 dim 1 : vector<32x128xf32>, i32 -> vector<32x128xf32>
    %c3_293 = arith.constant 3 : index
    %c0_294 = arith.constant 0 : index
    %685 = vector.load %arg4[%c3_293, %c0_294] : memref<9x128xf32, #tpu.memory_space<vmem>>, vector<1x128xf32>
    %686 = vector.broadcast %685 : vector<1x128xf32> to vector<32x128xf32>
    %687 = arith.mulf %684, %686 : vector<32x128xf32>
    %688 = arith.addf %681, %687 : vector<32x128xf32>
    %c4_295 = arith.constant 4 : index
    %c0_296 = arith.constant 0 : index
    %689 = vector.load %arg4[%c4_295, %c0_296] : memref<9x128xf32, #tpu.memory_space<vmem>>, vector<1x128xf32>
    %690 = vector.broadcast %689 : vector<1x128xf32> to vector<32x128xf32>
    %691 = arith.mulf %683, %690 : vector<32x128xf32>
    %692 = arith.addf %688, %691 : vector<32x128xf32>
    %c120_i32_297 = arith.constant 120 : i32
    %693 = tpu.dynamic_rotate %683 by %c120_i32_297 dim 1 : vector<32x128xf32>, i32 -> vector<32x128xf32>
    %c5_298 = arith.constant 5 : index
    %c0_299 = arith.constant 0 : index
    %694 = vector.load %arg4[%c5_298, %c0_299] : memref<9x128xf32, #tpu.memory_space<vmem>>, vector<1x128xf32>
    %695 = vector.broadcast %694 : vector<1x128xf32> to vector<32x128xf32>
    %696 = arith.mulf %693, %695 : vector<32x128xf32>
    %697 = arith.addf %692, %696 : vector<32x128xf32>
    %c0_300 = arith.constant 0 : index
    %c9_301 = arith.constant 9 : index
    %c0_302 = arith.constant 0 : index
    %698 = vector.load %arg16[%c0_300, %c9_301, %c0_302] : memref<2x32x128xf32, #tpu.memory_space<vmem>>, vector<2x16x128xf32>
    %699 = vector.shape_cast %698 : vector<2x16x128xf32> to vector<32x128xf32>
    %c8_i32_303 = arith.constant 8 : i32
    %700 = tpu.dynamic_rotate %699 by %c8_i32_303 dim 1 : vector<32x128xf32>, i32 -> vector<32x128xf32>
    %c6_304 = arith.constant 6 : index
    %c0_305 = arith.constant 0 : index
    %701 = vector.load %arg4[%c6_304, %c0_305] : memref<9x128xf32, #tpu.memory_space<vmem>>, vector<1x128xf32>
    %702 = vector.broadcast %701 : vector<1x128xf32> to vector<32x128xf32>
    %703 = arith.mulf %700, %702 : vector<32x128xf32>
    %704 = arith.addf %697, %703 : vector<32x128xf32>
    %c7_306 = arith.constant 7 : index
    %c0_307 = arith.constant 0 : index
    %705 = vector.load %arg4[%c7_306, %c0_307] : memref<9x128xf32, #tpu.memory_space<vmem>>, vector<1x128xf32>
    %706 = vector.broadcast %705 : vector<1x128xf32> to vector<32x128xf32>
    %707 = arith.mulf %699, %706 : vector<32x128xf32>
    %708 = arith.addf %704, %707 : vector<32x128xf32>
    %c120_i32_308 = arith.constant 120 : i32
    %709 = tpu.dynamic_rotate %699 by %c120_i32_308 dim 1 : vector<32x128xf32>, i32 -> vector<32x128xf32>
    %c8_309 = arith.constant 8 : index
    %c0_310 = arith.constant 0 : index
    %710 = vector.load %arg4[%c8_309, %c0_310] : memref<9x128xf32, #tpu.memory_space<vmem>>, vector<1x128xf32>
    %711 = vector.broadcast %710 : vector<1x128xf32> to vector<32x128xf32>
    %712 = arith.mulf %709, %711 : vector<32x128xf32>
    %713 = arith.addf %708, %712 : vector<32x128xf32>
    %714 = arith.truncf %713 : vector<32x128xf32> to vector<32x128xbf16>
    %c0_311 = arith.constant 0 : index
    %c0_312 = arith.constant 0 : index
    %715 = vector.load %arg10[%c0_311, %c0_312] : memref<128x128xbf16, #tpu.memory_space<vmem>>, vector<128x128xbf16>
    %cst_313 = arith.constant dense<0.000000e+00> : vector<32x128xf32>
    %716 = tpu.matmul %714, %715, %cst_313 {dimension_numbers = #tpu.dot_dimension_numbers<[1], [0], [0], [1], [0, 0, 1, 1], [], []>} : vector<32x128xbf16>, vector<128x128xbf16>, vector<32x128xf32> -> vector<32x128xf32>
    %cst_314 = arith.constant dense<0.000000e+00> : vector<128xf32>
    %717 = vector.multi_reduction <add>, %716, %cst_314 [0] : vector<32x128xf32> to vector<128xf32>
    %718 = vector.shape_cast %717 : vector<128xf32> to vector<1x128xf32>
    %c8_i32_315 = arith.constant 8 : i32
    %719 = tpu.dynamic_rotate %718 by %c8_i32_315 dim 1 : vector<1x128xf32>, i32 -> vector<1x128xf32>
    %720 = arith.addf %718, %719 : vector<1x128xf32>
    %c16_i32_316 = arith.constant 16 : i32
    %721 = tpu.dynamic_rotate %720 by %c16_i32_316 dim 1 : vector<1x128xf32>, i32 -> vector<1x128xf32>
    %722 = arith.addf %720, %721 : vector<1x128xf32>
    %c32_i32_317 = arith.constant 32 : i32
    %723 = tpu.dynamic_rotate %722 by %c32_i32_317 dim 1 : vector<1x128xf32>, i32 -> vector<1x128xf32>
    %724 = arith.addf %722, %723 : vector<1x128xf32>
    %c64_i32_318 = arith.constant 64 : i32
    %725 = tpu.dynamic_rotate %724 by %c64_i32_318 dim 1 : vector<1x128xf32>, i32 -> vector<1x128xf32>
    %726 = arith.addf %724, %725 : vector<1x128xf32>
    %cst_319 = arith.constant 0.001953125 : f32
    %727 = vector.broadcast %cst_319 : f32 to vector<1x128xf32>
    %728 = arith.mulf %726, %727 : vector<1x128xf32>
    %729 = vector.broadcast %728 : vector<1x128xf32> to vector<32x128xf32>
    %730 = arith.subf %716, %729 : vector<32x128xf32>
    %731 = arith.mulf %730, %730 : vector<32x128xf32>
    %cst_320 = arith.constant dense<0.000000e+00> : vector<128xf32>
    %732 = vector.multi_reduction <add>, %731, %cst_320 [0] : vector<32x128xf32> to vector<128xf32>
    %733 = vector.shape_cast %732 : vector<128xf32> to vector<1x128xf32>
    %c8_i32_321 = arith.constant 8 : i32
    %734 = tpu.dynamic_rotate %733 by %c8_i32_321 dim 1 : vector<1x128xf32>, i32 -> vector<1x128xf32>
    %735 = arith.addf %733, %734 : vector<1x128xf32>
    %c16_i32_322 = arith.constant 16 : i32
    %736 = tpu.dynamic_rotate %735 by %c16_i32_322 dim 1 : vector<1x128xf32>, i32 -> vector<1x128xf32>
    %737 = arith.addf %735, %736 : vector<1x128xf32>
    %c32_i32_323 = arith.constant 32 : i32
    %738 = tpu.dynamic_rotate %737 by %c32_i32_323 dim 1 : vector<1x128xf32>, i32 -> vector<1x128xf32>
    %739 = arith.addf %737, %738 : vector<1x128xf32>
    %c64_i32_324 = arith.constant 64 : i32
    %740 = tpu.dynamic_rotate %739 by %c64_i32_324 dim 1 : vector<1x128xf32>, i32 -> vector<1x128xf32>
    %741 = arith.addf %739, %740 : vector<1x128xf32>
    %cst_325 = arith.constant 0.001953125 : f32
    %742 = vector.broadcast %cst_325 : f32 to vector<1x128xf32>
    %743 = arith.mulf %741, %742 : vector<1x128xf32>
    %cst_326 = arith.constant 9.99999974E-6 : f32
    %744 = vector.broadcast %cst_326 : f32 to vector<1x128xf32>
    %745 = arith.addf %743, %744 : vector<1x128xf32>
    %746 = math.rsqrt %745 : vector<1x128xf32>
    %747 = vector.broadcast %746 : vector<1x128xf32> to vector<32x128xf32>
    %748 = arith.mulf %730, %747 : vector<32x128xf32>
    %c4_327 = arith.constant 4 : index
    %749 = memref.load %arg1[%c4_327] : memref<8xf32, #tpu.memory_space<smem>>
    %750 = vector.broadcast %749 : f32 to vector<32x128xf32>
    %751 = arith.mulf %750, %748 : vector<32x128xf32>
    %752 = arith.addf %625, %751 : vector<32x128xf32>
    %753 = arith.truncf %367 : vector<32x128xf32> to vector<32x128xbf16>
    %c0_328 = arith.constant 0 : index
    %c0_329 = arith.constant 0 : index
    %754 = vector.load %arg11[%c0_328, %c0_329] : memref<128x128xbf16, #tpu.memory_space<vmem>>, vector<128x128xbf16>
    %cst_330 = arith.constant dense<0.000000e+00> : vector<32x128xf32>
    %755 = tpu.matmul %753, %754, %cst_330 {dimension_numbers = #tpu.dot_dimension_numbers<[1], [0], [0], [1], [0, 0, 1, 1], [], []>} : vector<32x128xbf16>, vector<128x128xbf16>, vector<32x128xf32> -> vector<32x128xf32>
    %cst_331 = arith.constant dense<0.000000e+00> : vector<128xf32>
    %756 = vector.multi_reduction <add>, %755, %cst_331 [0] : vector<32x128xf32> to vector<128xf32>
    %757 = vector.shape_cast %756 : vector<128xf32> to vector<1x128xf32>
    %c8_i32_332 = arith.constant 8 : i32
    %758 = tpu.dynamic_rotate %757 by %c8_i32_332 dim 1 : vector<1x128xf32>, i32 -> vector<1x128xf32>
    %759 = arith.addf %757, %758 : vector<1x128xf32>
    %c16_i32_333 = arith.constant 16 : i32
    %760 = tpu.dynamic_rotate %759 by %c16_i32_333 dim 1 : vector<1x128xf32>, i32 -> vector<1x128xf32>
    %761 = arith.addf %759, %760 : vector<1x128xf32>
    %c32_i32_334 = arith.constant 32 : i32
    %762 = tpu.dynamic_rotate %761 by %c32_i32_334 dim 1 : vector<1x128xf32>, i32 -> vector<1x128xf32>
    %763 = arith.addf %761, %762 : vector<1x128xf32>
    %c64_i32_335 = arith.constant 64 : i32
    %764 = tpu.dynamic_rotate %763 by %c64_i32_335 dim 1 : vector<1x128xf32>, i32 -> vector<1x128xf32>
    %765 = arith.addf %763, %764 : vector<1x128xf32>
    %cst_336 = arith.constant 0.001953125 : f32
    %766 = vector.broadcast %cst_336 : f32 to vector<1x128xf32>
    %767 = arith.mulf %765, %766 : vector<1x128xf32>
    %768 = vector.broadcast %767 : vector<1x128xf32> to vector<32x128xf32>
    %769 = arith.subf %755, %768 : vector<32x128xf32>
    %770 = arith.mulf %769, %769 : vector<32x128xf32>
    %cst_337 = arith.constant dense<0.000000e+00> : vector<128xf32>
    %771 = vector.multi_reduction <add>, %770, %cst_337 [0] : vector<32x128xf32> to vector<128xf32>
    %772 = vector.shape_cast %771 : vector<128xf32> to vector<1x128xf32>
    %c8_i32_338 = arith.constant 8 : i32
    %773 = tpu.dynamic_rotate %772 by %c8_i32_338 dim 1 : vector<1x128xf32>, i32 -> vector<1x128xf32>
    %774 = arith.addf %772, %773 : vector<1x128xf32>
    %c16_i32_339 = arith.constant 16 : i32
    %775 = tpu.dynamic_rotate %774 by %c16_i32_339 dim 1 : vector<1x128xf32>, i32 -> vector<1x128xf32>
    %776 = arith.addf %774, %775 : vector<1x128xf32>
    %c32_i32_340 = arith.constant 32 : i32
    %777 = tpu.dynamic_rotate %776 by %c32_i32_340 dim 1 : vector<1x128xf32>, i32 -> vector<1x128xf32>
    %778 = arith.addf %776, %777 : vector<1x128xf32>
    %c64_i32_341 = arith.constant 64 : i32
    %779 = tpu.dynamic_rotate %778 by %c64_i32_341 dim 1 : vector<1x128xf32>, i32 -> vector<1x128xf32>
    %780 = arith.addf %778, %779 : vector<1x128xf32>
    %cst_342 = arith.constant 0.001953125 : f32
    %781 = vector.broadcast %cst_342 : f32 to vector<1x128xf32>
    %782 = arith.mulf %780, %781 : vector<1x128xf32>
    %cst_343 = arith.constant 9.99999974E-6 : f32
    %783 = vector.broadcast %cst_343 : f32 to vector<1x128xf32>
    %784 = arith.addf %782, %783 : vector<1x128xf32>
    %785 = math.rsqrt %784 : vector<1x128xf32>
    %786 = vector.broadcast %785 : vector<1x128xf32> to vector<32x128xf32>
    %787 = arith.mulf %769, %786 : vector<32x128xf32>
    %cst_344 = arith.constant 0.000000e+00 : f32
    %788 = vector.broadcast %cst_344 : f32 to vector<32x128xf32>
    %789 = arith.maximumf %787, %788 : vector<32x128xf32>
    %790 = vector.shape_cast %789 : vector<32x128xf32> to vector<2x16x128xf32>
    %c0_345 = arith.constant 0 : index
    %c8_346 = arith.constant 8 : index
    %c0_347 = arith.constant 0 : index
    %791 = vector.load %arg16[%c0_345, %c8_346, %c0_347] : memref<2x32x128xf32, #tpu.memory_space<vmem>>, vector<2x16x128xf32>
    tpu.vector_store %arg16[%c0_345, %c8_346, %c0_347], %790 {strides = array<i32>} : memref<2x32x128xf32, #tpu.memory_space<vmem>>, vector<2x16x128xf32>,
    %cst_348 = arith.constant 0.000000e+00 : f32
    %792 = vector.broadcast %cst_348 : f32 to vector<32x128xf32>
    %c0_349 = arith.constant 0 : index
    %c6_350 = arith.constant 6 : index
    %c0_351 = arith.constant 0 : index
    %793 = vector.load %arg16[%c0_349, %c6_350, %c0_351] : memref<2x32x128xf32, #tpu.memory_space<vmem>>, vector<2x16x128xf32>
    %794 = vector.shape_cast %793 : vector<2x16x128xf32> to vector<32x128xf32>
    %c16_i32_352 = arith.constant 16 : i32
    %795 = tpu.dynamic_rotate %794 by %c16_i32_352 dim 1 : vector<32x128xf32>, i32 -> vector<32x128xf32>
    %c0_353 = arith.constant 0 : index
    %c0_354 = arith.constant 0 : index
    %796 = vector.load %arg6[%c0_353, %c0_354] : memref<25x128xf32, #tpu.memory_space<vmem>>, vector<1x128xf32>
    %797 = vector.broadcast %796 : vector<1x128xf32> to vector<32x128xf32>
    %798 = arith.mulf %795, %797 : vector<32x128xf32>
    %799 = arith.addf %792, %798 : vector<32x128xf32>
    %c8_i32_355 = arith.constant 8 : i32
    %800 = tpu.dynamic_rotate %794 by %c8_i32_355 dim 1 : vector<32x128xf32>, i32 -> vector<32x128xf32>
    %c1_356 = arith.constant 1 : index
    %c0_357 = arith.constant 0 : index
    %801 = vector.load %arg6[%c1_356, %c0_357] : memref<25x128xf32, #tpu.memory_space<vmem>>, vector<1x128xf32>
    %802 = vector.broadcast %801 : vector<1x128xf32> to vector<32x128xf32>
    %803 = arith.mulf %800, %802 : vector<32x128xf32>
    %804 = arith.addf %799, %803 : vector<32x128xf32>
    %c2_358 = arith.constant 2 : index
    %c0_359 = arith.constant 0 : index
    %805 = vector.load %arg6[%c2_358, %c0_359] : memref<25x128xf32, #tpu.memory_space<vmem>>, vector<1x128xf32>
    %806 = vector.broadcast %805 : vector<1x128xf32> to vector<32x128xf32>
    %807 = arith.mulf %794, %806 : vector<32x128xf32>
    %808 = arith.addf %804, %807 : vector<32x128xf32>
    %c120_i32_360 = arith.constant 120 : i32
    %809 = tpu.dynamic_rotate %794 by %c120_i32_360 dim 1 : vector<32x128xf32>, i32 -> vector<32x128xf32>
    %c3_361 = arith.constant 3 : index
    %c0_362 = arith.constant 0 : index
    %810 = vector.load %arg6[%c3_361, %c0_362] : memref<25x128xf32, #tpu.memory_space<vmem>>, vector<1x128xf32>
    %811 = vector.broadcast %810 : vector<1x128xf32> to vector<32x128xf32>
    %812 = arith.mulf %809, %811 : vector<32x128xf32>
    %813 = arith.addf %808, %812 : vector<32x128xf32>
    %c112_i32_363 = arith.constant 112 : i32
    %814 = tpu.dynamic_rotate %794 by %c112_i32_363 dim 1 : vector<32x128xf32>, i32 -> vector<32x128xf32>
    %c4_364 = arith.constant 4 : index
    %c0_365 = arith.constant 0 : index
    %815 = vector.load %arg6[%c4_364, %c0_365] : memref<25x128xf32, #tpu.memory_space<vmem>>, vector<1x128xf32>
    %816 = vector.broadcast %815 : vector<1x128xf32> to vector<32x128xf32>
    %817 = arith.mulf %814, %816 : vector<32x128xf32>
    %818 = arith.addf %813, %817 : vector<32x128xf32>
    %c0_366 = arith.constant 0 : index
    %c7_367 = arith.constant 7 : index
    %c0_368 = arith.constant 0 : index
    %819 = vector.load %arg16[%c0_366, %c7_367, %c0_368] : memref<2x32x128xf32, #tpu.memory_space<vmem>>, vector<2x16x128xf32>
    %820 = vector.shape_cast %819 : vector<2x16x128xf32> to vector<32x128xf32>
    %c16_i32_369 = arith.constant 16 : i32
    %821 = tpu.dynamic_rotate %820 by %c16_i32_369 dim 1 : vector<32x128xf32>, i32 -> vector<32x128xf32>
    %c5_370 = arith.constant 5 : index
    %c0_371 = arith.constant 0 : index
    %822 = vector.load %arg6[%c5_370, %c0_371] : memref<25x128xf32, #tpu.memory_space<vmem>>, vector<1x128xf32>
    %823 = vector.broadcast %822 : vector<1x128xf32> to vector<32x128xf32>
    %824 = arith.mulf %821, %823 : vector<32x128xf32>
    %825 = arith.addf %818, %824 : vector<32x128xf32>
    %c8_i32_372 = arith.constant 8 : i32
    %826 = tpu.dynamic_rotate %820 by %c8_i32_372 dim 1 : vector<32x128xf32>, i32 -> vector<32x128xf32>
    %c6_373 = arith.constant 6 : index
    %c0_374 = arith.constant 0 : index
    %827 = vector.load %arg6[%c6_373, %c0_374] : memref<25x128xf32, #tpu.memory_space<vmem>>, vector<1x128xf32>
    %828 = vector.broadcast %827 : vector<1x128xf32> to vector<32x128xf32>
    %829 = arith.mulf %826, %828 : vector<32x128xf32>
    %830 = arith.addf %825, %829 : vector<32x128xf32>
    %c7_375 = arith.constant 7 : index
    %c0_376 = arith.constant 0 : index
    %831 = vector.load %arg6[%c7_375, %c0_376] : memref<25x128xf32, #tpu.memory_space<vmem>>, vector<1x128xf32>
    %832 = vector.broadcast %831 : vector<1x128xf32> to vector<32x128xf32>
    %833 = arith.mulf %820, %832 : vector<32x128xf32>
    %834 = arith.addf %830, %833 : vector<32x128xf32>
    %c120_i32_377 = arith.constant 120 : i32
    %835 = tpu.dynamic_rotate %820 by %c120_i32_377 dim 1 : vector<32x128xf32>, i32 -> vector<32x128xf32>
    %c8_378 = arith.constant 8 : index
    %c0_379 = arith.constant 0 : index
    %836 = vector.load %arg6[%c8_378, %c0_379] : memref<25x128xf32, #tpu.memory_space<vmem>>, vector<1x128xf32>
    %837 = vector.broadcast %836 : vector<1x128xf32> to vector<32x128xf32>
    %838 = arith.mulf %835, %837 : vector<32x128xf32>
    %839 = arith.addf %834, %838 : vector<32x128xf32>
    %c112_i32_380 = arith.constant 112 : i32
    %840 = tpu.dynamic_rotate %820 by %c112_i32_380 dim 1 : vector<32x128xf32>, i32 -> vector<32x128xf32>
    %c9_381 = arith.constant 9 : index
    %c0_382 = arith.constant 0 : index
    %841 = vector.load %arg6[%c9_381, %c0_382] : memref<25x128xf32, #tpu.memory_space<vmem>>, vector<1x128xf32>
    %842 = vector.broadcast %841 : vector<1x128xf32> to vector<32x128xf32>
    %843 = arith.mulf %840, %842 : vector<32x128xf32>
    %844 = arith.addf %839, %843 : vector<32x128xf32>
    %c0_383 = arith.constant 0 : index
    %c8_384 = arith.constant 8 : index
    %c0_385 = arith.constant 0 : index
    %845 = vector.load %arg16[%c0_383, %c8_384, %c0_385] : memref<2x32x128xf32, #tpu.memory_space<vmem>>, vector<2x16x128xf32>
    %846 = vector.shape_cast %845 : vector<2x16x128xf32> to vector<32x128xf32>
    %c16_i32_386 = arith.constant 16 : i32
    %847 = tpu.dynamic_rotate %846 by %c16_i32_386 dim 1 : vector<32x128xf32>, i32 -> vector<32x128xf32>
    %c10_387 = arith.constant 10 : index
    %c0_388 = arith.constant 0 : index
    %848 = vector.load %arg6[%c10_387, %c0_388] : memref<25x128xf32, #tpu.memory_space<vmem>>, vector<1x128xf32>
    %849 = vector.broadcast %848 : vector<1x128xf32> to vector<32x128xf32>
    %850 = arith.mulf %847, %849 : vector<32x128xf32>
    %851 = arith.addf %844, %850 : vector<32x128xf32>
    %c8_i32_389 = arith.constant 8 : i32
    %852 = tpu.dynamic_rotate %846 by %c8_i32_389 dim 1 : vector<32x128xf32>, i32 -> vector<32x128xf32>
    %c11_390 = arith.constant 11 : index
    %c0_391 = arith.constant 0 : index
    %853 = vector.load %arg6[%c11_390, %c0_391] : memref<25x128xf32, #tpu.memory_space<vmem>>, vector<1x128xf32>
    %854 = vector.broadcast %853 : vector<1x128xf32> to vector<32x128xf32>
    %855 = arith.mulf %852, %854 : vector<32x128xf32>
    %856 = arith.addf %851, %855 : vector<32x128xf32>
    %c12_392 = arith.constant 12 : index
    %c0_393 = arith.constant 0 : index
    %857 = vector.load %arg6[%c12_392, %c0_393] : memref<25x128xf32, #tpu.memory_space<vmem>>, vector<1x128xf32>
    %858 = vector.broadcast %857 : vector<1x128xf32> to vector<32x128xf32>
    %859 = arith.mulf %846, %858 : vector<32x128xf32>
    %860 = arith.addf %856, %859 : vector<32x128xf32>
    %c120_i32_394 = arith.constant 120 : i32
    %861 = tpu.dynamic_rotate %846 by %c120_i32_394 dim 1 : vector<32x128xf32>, i32 -> vector<32x128xf32>
    %c13_395 = arith.constant 13 : index
    %c0_396 = arith.constant 0 : index
    %862 = vector.load %arg6[%c13_395, %c0_396] : memref<25x128xf32, #tpu.memory_space<vmem>>, vector<1x128xf32>
    %863 = vector.broadcast %862 : vector<1x128xf32> to vector<32x128xf32>
    %864 = arith.mulf %861, %863 : vector<32x128xf32>
    %865 = arith.addf %860, %864 : vector<32x128xf32>
    %c112_i32_397 = arith.constant 112 : i32
    %866 = tpu.dynamic_rotate %846 by %c112_i32_397 dim 1 : vector<32x128xf32>, i32 -> vector<32x128xf32>
    %c14_398 = arith.constant 14 : index
    %c0_399 = arith.constant 0 : index
    %867 = vector.load %arg6[%c14_398, %c0_399] : memref<25x128xf32, #tpu.memory_space<vmem>>, vector<1x128xf32>
    %868 = vector.broadcast %867 : vector<1x128xf32> to vector<32x128xf32>
    %869 = arith.mulf %866, %868 : vector<32x128xf32>
    %870 = arith.addf %865, %869 : vector<32x128xf32>
    %c0_400 = arith.constant 0 : index
    %c9_401 = arith.constant 9 : index
    %c0_402 = arith.constant 0 : index
    %871 = vector.load %arg16[%c0_400, %c9_401, %c0_402] : memref<2x32x128xf32, #tpu.memory_space<vmem>>, vector<2x16x128xf32>
    %872 = vector.shape_cast %871 : vector<2x16x128xf32> to vector<32x128xf32>
    %c16_i32_403 = arith.constant 16 : i32
    %873 = tpu.dynamic_rotate %872 by %c16_i32_403 dim 1 : vector<32x128xf32>, i32 -> vector<32x128xf32>
    %c15_404 = arith.constant 15 : index
    %c0_405 = arith.constant 0 : index
    %874 = vector.load %arg6[%c15_404, %c0_405] : memref<25x128xf32, #tpu.memory_space<vmem>>, vector<1x128xf32>
    %875 = vector.broadcast %874 : vector<1x128xf32> to vector<32x128xf32>
    %876 = arith.mulf %873, %875 : vector<32x128xf32>
    %877 = arith.addf %870, %876 : vector<32x128xf32>
    %c8_i32_406 = arith.constant 8 : i32
    %878 = tpu.dynamic_rotate %872 by %c8_i32_406 dim 1 : vector<32x128xf32>, i32 -> vector<32x128xf32>
    %c16_407 = arith.constant 16 : index
    %c0_408 = arith.constant 0 : index
    %879 = vector.load %arg6[%c16_407, %c0_408] : memref<25x128xf32, #tpu.memory_space<vmem>>, vector<1x128xf32>
    %880 = vector.broadcast %879 : vector<1x128xf32> to vector<32x128xf32>
    %881 = arith.mulf %878, %880 : vector<32x128xf32>
    %882 = arith.addf %877, %881 : vector<32x128xf32>
    %c17_409 = arith.constant 17 : index
    %c0_410 = arith.constant 0 : index
    %883 = vector.load %arg6[%c17_409, %c0_410] : memref<25x128xf32, #tpu.memory_space<vmem>>, vector<1x128xf32>
    %884 = vector.broadcast %883 : vector<1x128xf32> to vector<32x128xf32>
    %885 = arith.mulf %872, %884 : vector<32x128xf32>
    %886 = arith.addf %882, %885 : vector<32x128xf32>
    %c120_i32_411 = arith.constant 120 : i32
    %887 = tpu.dynamic_rotate %872 by %c120_i32_411 dim 1 : vector<32x128xf32>, i32 -> vector<32x128xf32>
    %c18_412 = arith.constant 18 : index
    %c0_413 = arith.constant 0 : index
    %888 = vector.load %arg6[%c18_412, %c0_413] : memref<25x128xf32, #tpu.memory_space<vmem>>, vector<1x128xf32>
    %889 = vector.broadcast %888 : vector<1x128xf32> to vector<32x128xf32>
    %890 = arith.mulf %887, %889 : vector<32x128xf32>
    %891 = arith.addf %886, %890 : vector<32x128xf32>
    %c112_i32_414 = arith.constant 112 : i32
    %892 = tpu.dynamic_rotate %872 by %c112_i32_414 dim 1 : vector<32x128xf32>, i32 -> vector<32x128xf32>
    %c19_415 = arith.constant 19 : index
    %c0_416 = arith.constant 0 : index
    %893 = vector.load %arg6[%c19_415, %c0_416] : memref<25x128xf32, #tpu.memory_space<vmem>>, vector<1x128xf32>
    %894 = vector.broadcast %893 : vector<1x128xf32> to vector<32x128xf32>
    %895 = arith.mulf %892, %894 : vector<32x128xf32>
    %896 = arith.addf %891, %895 : vector<32x128xf32>
    %c0_417 = arith.constant 0 : index
    %c10_418 = arith.constant 10 : index
    %c0_419 = arith.constant 0 : index
    %897 = vector.load %arg16[%c0_417, %c10_418, %c0_419] : memref<2x32x128xf32, #tpu.memory_space<vmem>>, vector<2x16x128xf32>
    %898 = vector.shape_cast %897 : vector<2x16x128xf32> to vector<32x128xf32>
    %c16_i32_420 = arith.constant 16 : i32
    %899 = tpu.dynamic_rotate %898 by %c16_i32_420 dim 1 : vector<32x128xf32>, i32 -> vector<32x128xf32>
    %c20_421 = arith.constant 20 : index
    %c0_422 = arith.constant 0 : index
    %900 = vector.load %arg6[%c20_421, %c0_422] : memref<25x128xf32, #tpu.memory_space<vmem>>, vector<1x128xf32>
    %901 = vector.broadcast %900 : vector<1x128xf32> to vector<32x128xf32>
    %902 = arith.mulf %899, %901 : vector<32x128xf32>
    %903 = arith.addf %896, %902 : vector<32x128xf32>
    %c8_i32_423 = arith.constant 8 : i32
    %904 = tpu.dynamic_rotate %898 by %c8_i32_423 dim 1 : vector<32x128xf32>, i32 -> vector<32x128xf32>
    %c21_424 = arith.constant 21 : index
    %c0_425 = arith.constant 0 : index
    %905 = vector.load %arg6[%c21_424, %c0_425] : memref<25x128xf32, #tpu.memory_space<vmem>>, vector<1x128xf32>
    %906 = vector.broadcast %905 : vector<1x128xf32> to vector<32x128xf32>
    %907 = arith.mulf %904, %906 : vector<32x128xf32>
    %908 = arith.addf %903, %907 : vector<32x128xf32>
    %c22_426 = arith.constant 22 : index
    %c0_427 = arith.constant 0 : index
    %909 = vector.load %arg6[%c22_426, %c0_427] : memref<25x128xf32, #tpu.memory_space<vmem>>, vector<1x128xf32>
    %910 = vector.broadcast %909 : vector<1x128xf32> to vector<32x128xf32>
    %911 = arith.mulf %898, %910 : vector<32x128xf32>
    %912 = arith.addf %908, %911 : vector<32x128xf32>
    %c120_i32_428 = arith.constant 120 : i32
    %913 = tpu.dynamic_rotate %898 by %c120_i32_428 dim 1 : vector<32x128xf32>, i32 -> vector<32x128xf32>
    %c23_429 = arith.constant 23 : index
    %c0_430 = arith.constant 0 : index
    %914 = vector.load %arg6[%c23_429, %c0_430] : memref<25x128xf32, #tpu.memory_space<vmem>>, vector<1x128xf32>
    %915 = vector.broadcast %914 : vector<1x128xf32> to vector<32x128xf32>
    %916 = arith.mulf %913, %915 : vector<32x128xf32>
    %917 = arith.addf %912, %916 : vector<32x128xf32>
    %c112_i32_431 = arith.constant 112 : i32
    %918 = tpu.dynamic_rotate %898 by %c112_i32_431 dim 1 : vector<32x128xf32>, i32 -> vector<32x128xf32>
    %c24_432 = arith.constant 24 : index
    %c0_433 = arith.constant 0 : index
    %919 = vector.load %arg6[%c24_432, %c0_433] : memref<25x128xf32, #tpu.memory_space<vmem>>, vector<1x128xf32>
    %920 = vector.broadcast %919 : vector<1x128xf32> to vector<32x128xf32>
    %921 = arith.mulf %918, %920 : vector<32x128xf32>
    %922 = arith.addf %917, %921 : vector<32x128xf32>
    %923 = arith.truncf %922 : vector<32x128xf32> to vector<32x128xbf16>
    %c0_434 = arith.constant 0 : index
    %c0_435 = arith.constant 0 : index
    %924 = vector.load %arg12[%c0_434, %c0_435] : memref<128x128xbf16, #tpu.memory_space<vmem>>, vector<128x128xbf16>
    %cst_436 = arith.constant dense<0.000000e+00> : vector<32x128xf32>
    %925 = tpu.matmul %923, %924, %cst_436 {dimension_numbers = #tpu.dot_dimension_numbers<[1], [0], [0], [1], [0, 0, 1, 1], [], []>} : vector<32x128xbf16>, vector<128x128xbf16>, vector<32x128xf32> -> vector<32x128xf32>
    %cst_437 = arith.constant dense<0.000000e+00> : vector<128xf32>
    %926 = vector.multi_reduction <add>, %925, %cst_437 [0] : vector<32x128xf32> to vector<128xf32>
    %927 = vector.shape_cast %926 : vector<128xf32> to vector<1x128xf32>
    %c8_i32_438 = arith.constant 8 : i32
    %928 = tpu.dynamic_rotate %927 by %c8_i32_438 dim 1 : vector<1x128xf32>, i32 -> vector<1x128xf32>
    %929 = arith.addf %927, %928 : vector<1x128xf32>
    %c16_i32_439 = arith.constant 16 : i32
    %930 = tpu.dynamic_rotate %929 by %c16_i32_439 dim 1 : vector<1x128xf32>, i32 -> vector<1x128xf32>
    %931 = arith.addf %929, %930 : vector<1x128xf32>
    %c32_i32_440 = arith.constant 32 : i32
    %932 = tpu.dynamic_rotate %931 by %c32_i32_440 dim 1 : vector<1x128xf32>, i32 -> vector<1x128xf32>
    %933 = arith.addf %931, %932 : vector<1x128xf32>
    %c64_i32_441 = arith.constant 64 : i32
    %934 = tpu.dynamic_rotate %933 by %c64_i32_441 dim 1 : vector<1x128xf32>, i32 -> vector<1x128xf32>
    %935 = arith.addf %933, %934 : vector<1x128xf32>
    %cst_442 = arith.constant 0.001953125 : f32
    %936 = vector.broadcast %cst_442 : f32 to vector<1x128xf32>
    %937 = arith.mulf %935, %936 : vector<1x128xf32>
    %938 = vector.broadcast %937 : vector<1x128xf32> to vector<32x128xf32>
    %939 = arith.subf %925, %938 : vector<32x128xf32>
    %940 = arith.mulf %939, %939 : vector<32x128xf32>
    %cst_443 = arith.constant dense<0.000000e+00> : vector<128xf32>
    %941 = vector.multi_reduction <add>, %940, %cst_443 [0] : vector<32x128xf32> to vector<128xf32>
    %942 = vector.shape_cast %941 : vector<128xf32> to vector<1x128xf32>
    %c8_i32_444 = arith.constant 8 : i32
    %943 = tpu.dynamic_rotate %942 by %c8_i32_444 dim 1 : vector<1x128xf32>, i32 -> vector<1x128xf32>
    %944 = arith.addf %942, %943 : vector<1x128xf32>
    %c16_i32_445 = arith.constant 16 : i32
    %945 = tpu.dynamic_rotate %944 by %c16_i32_445 dim 1 : vector<1x128xf32>, i32 -> vector<1x128xf32>
    %946 = arith.addf %944, %945 : vector<1x128xf32>
    %c32_i32_446 = arith.constant 32 : i32
    %947 = tpu.dynamic_rotate %946 by %c32_i32_446 dim 1 : vector<1x128xf32>, i32 -> vector<1x128xf32>
    %948 = arith.addf %946, %947 : vector<1x128xf32>
    %c64_i32_447 = arith.constant 64 : i32
    %949 = tpu.dynamic_rotate %948 by %c64_i32_447 dim 1 : vector<1x128xf32>, i32 -> vector<1x128xf32>
    %950 = arith.addf %948, %949 : vector<1x128xf32>
    %cst_448 = arith.constant 0.001953125 : f32
    %951 = vector.broadcast %cst_448 : f32 to vector<1x128xf32>
    %952 = arith.mulf %950, %951 : vector<1x128xf32>
    %cst_449 = arith.constant 9.99999974E-6 : f32
    %953 = vector.broadcast %cst_449 : f32 to vector<1x128xf32>
    %954 = arith.addf %952, %953 : vector<1x128xf32>
    %955 = math.rsqrt %954 : vector<1x128xf32>
    %956 = vector.broadcast %955 : vector<1x128xf32> to vector<32x128xf32>
    %957 = arith.mulf %939, %956 : vector<32x128xf32>
    %c5_450 = arith.constant 5 : index
    %958 = memref.load %arg1[%c5_450] : memref<8xf32, #tpu.memory_space<smem>>
    %959 = vector.broadcast %958 : f32 to vector<32x128xf32>
    %960 = arith.mulf %959, %957 : vector<32x128xf32>
    %961 = arith.addf %752, %960 : vector<32x128xf32>
    %c0_451 = arith.constant 0 : index
    %c0_452 = arith.constant 0 : index
    %962 = vector.load %arg15[%c0_451, %c0_452] : memref<32x128xf32, #tpu.memory_space<vmem>>, vector<32x128xf32>
    tpu.vector_store %arg15[%c0_451, %c0_452], %961 {strides = array<i32>} : memref<32x128xf32, #tpu.memory_space<vmem>>, vector<32x128xf32>,
    return
  }
  func.func @transform_0(%arg0: i32, %arg1: memref<8xf32, #tpu.memory_space<smem>>) -> (i32, i32, i32) {
    %c0_i32 = arith.constant 0 : i32
    %c0_i32_0 = arith.constant 0 : i32
    %c0_i32_1 = arith.constant 0 : i32
    %c0_i32_2 = arith.constant 0 : i32
    return %c0_i32, %c0_i32_0, %c0_i32_1 : i32, i32, i32
  }
  func.func @transform_1(%arg0: i32, %arg1: memref<8xf32, #tpu.memory_space<smem>>) -> (i32, i32) {
    %c0_i32 = arith.constant 0 : i32
    %c0_i32_0 = arith.constant 0 : i32
    %c0_i32_1 = arith.constant 0 : i32
    return %c0_i32, %c0_i32_0 : i32, i32
  }
  func.func @transform_2(%arg0: i32, %arg1: memref<8xf32, #tpu.memory_space<smem>>) -> (i32, i32) {
    %c0_i32 = arith.constant 0 : i32
    %c0_i32_0 = arith.constant 0 : i32
    %c0_i32_1 = arith.constant 0 : i32
    return %c0_i32, %c0_i32_0 : i32, i32
  }
  func.func @transform_3(%arg0: i32, %arg1: memref<8xf32, #tpu.memory_space<smem>>) -> (i32, i32) {
    %c0_i32 = arith.constant 0 : i32
    %c0_i32_0 = arith.constant 0 : i32
    %c0_i32_1 = arith.constant 0 : i32
    return %c0_i32, %c0_i32_0 : i32, i32
  }
  func.func @transform_4(%arg0: i32, %arg1: memref<8xf32, #tpu.memory_space<smem>>) -> (i32, i32) {
    %c0_i32 = arith.constant 0 : i32
    %c0_i32_0 = arith.constant 0 : i32
    %c0_i32_1 = arith.constant 0 : i32
    return %c0_i32, %c0_i32_0 : i32, i32
  }
  func.func @transform_5(%arg0: i32, %arg1: memref<8xf32, #tpu.memory_space<smem>>) -> (i32, i32) {
    %c0_i32 = arith.constant 0 : i32
    %c0_i32_0 = arith.constant 0 : i32
    %c0_i32_1 = arith.constant 0 : i32
    return %c0_i32, %c0_i32_0 : i32, i32
  }
  func.func @transform_6(%arg0: i32, %arg1: memref<8xf32, #tpu.memory_space<smem>>) -> (i32, i32) {
    %c0_i32 = arith.constant 0 : i32
    %c0_i32_0 = arith.constant 0 : i32
    %c0_i32_1 = arith.constant 0 : i32
    return %c0_i32, %c0_i32_0 : i32, i32
  }
  func.func @transform_7(%arg0: i32, %arg1: memref<8xf32, #tpu.memory_space<smem>>) -> (i32, i32) {
    %c0_i32 = arith.constant 0 : i32
    %c0_i32_0 = arith.constant 0 : i32
    %c0_i32_1 = arith.constant 0 : i32
    return %c0_i32, %c0_i32_0 : i32, i32
  }
  func.func @transform_8(%arg0: i32, %arg1: memref<8xf32, #tpu.memory_space<smem>>) -> (i32, i32) {
    %c0_i32 = arith.constant 0 : i32
    %c0_i32_0 = arith.constant 0 : i32
    %c0_i32_1 = arith.constant 0 : i32
    return %c0_i32, %c0_i32_0 : i32, i32
  }
  func.func @transform_9(%arg0: i32, %arg1: memref<8xf32, #tpu.memory_space<smem>>) -> (i32, i32) {
    %c0_i32 = arith.constant 0 : i32
    %c0_i32_0 = arith.constant 0 : i32
    %c0_i32_1 = arith.constant 0 : i32
    return %c0_i32, %c0_i32_0 : i32, i32
  }
  func.func @transform_10(%arg0: i32, %arg1: memref<8xf32, #tpu.memory_space<smem>>) -> (i32, i32) {
    %c0_i32 = arith.constant 0 : i32
    %c0_i32_0 = arith.constant 0 : i32
    %c0_i32_1 = arith.constant 0 : i32
    return %c0_i32, %c0_i32_0 : i32, i32
  }
  func.func @transform_11(%arg0: i32, %arg1: memref<8xf32, #tpu.memory_space<smem>>) -> (i32, i32) {
    %c0_i32 = arith.constant 0 : i32
    %c0_i32_0 = arith.constant 0 : i32
    %c0_i32_1 = arith.constant 0 : i32
    return %c0_i32, %c0_i32_0 : i32, i32
  }
  func.func @transform_12(%arg0: i32, %arg1: memref<8xf32, #tpu.memory_space<smem>>) -> (i32, i32) {
    %c0_i32 = arith.constant 0 : i32
    %c0_i32_0 = arith.constant 0 : i32
    %c0_i32_1 = arith.constant 0 : i32
    return %c0_i32, %c0_i32_0 : i32, i32
  }
  func.func @transform_13(%arg0: i32, %arg1: memref<8xf32, #tpu.memory_space<smem>>) -> (i32, i32) {
    %c0_i32 = arith.constant 0 : i32
    %c0_i32_0 = arith.constant 0 : i32
    %c0_i32_1 = arith.constant 0 : i32
    return %c0_i32, %c0_i32_0 : i32, i32
  }
}

</mosaic_0001>

<llo_original>
// kernel: mixed_op_forward.1
$region0: #{mixed_op_forward.1}
  #allocation0 [shape = 'u32[]', space=smem, size = 0x4, offset = 0x4, fixed_abs, tag = 'smem constant byte address 0x4 - core index']
  #allocation1 [shape = 'u32[144,128]{1,0:T(1,128)}', space=vmem, size = 0x12000, scoped, tag = 'internal scratch']
  #allocation2 [shape = 'f32[2,32,128]{2,1,0:T(8,128)}', space=vmem, size = 0x8000, scoped, tag = 'scratch operand']
  #allocation3 [shape = 's32[1]{0}', space=sflag, size = 0x4, scoped, tag = 'scoped memory for mixed_op_forward.1']
  #allocation4 [shape = 'u8[512]{0}', space=smem, size = 0x200, scoped, tag = 'prefetched SMEM operand 0']
  %s0 = inlined_call_operand.vmem [shape: f32[8], index: 0, kind: input, shape index: {}]
  %s1 = inlined_call_operand.vmem [shape: f32[2,24,128], index: 1, kind: input, shape index: {}]
  %s2 = inlined_call_operand.vmem [shape: f32[9,128], index: 2, kind: input, shape index: {}]
  %s3 = inlined_call_operand.vmem [shape: f32[9,128], index: 3, kind: input, shape index: {}]
  %s4 = inlined_call_operand.vmem [shape: f32[25,128], index: 4, kind: input, shape index: {}]
  %s5 = inlined_call_operand.vmem [shape: f32[25,128], index: 5, kind: input, shape index: {}]
  %s6 = inlined_call_operand.vmem [shape: f32[9,128], index: 6, kind: input, shape index: {}]
  %s7 = inlined_call_operand.vmem [shape: f32[25,128], index: 7, kind: input, shape index: {}]
  %s8 = inlined_call_operand.vmem [shape: bf16[128,128], index: 8, kind: input, shape index: {}]
  %s9 = inlined_call_operand.vmem [shape: bf16[128,128], index: 9, kind: input, shape index: {}]
  %s10 = inlined_call_operand.vmem [shape: bf16[128,128], index: 10, kind: input, shape index: {}]
  %s11 = inlined_call_operand.vmem [shape: bf16[128,128], index: 11, kind: input, shape index: {}]
  %s12 = inlined_call_operand.vmem [shape: bf16[128,128], index: 12, kind: input, shape index: {}]
  %s13 = inlined_call_operand.vmem [shape: bf16[128,128], index: 13, kind: input, shape index: {}]
  %s14 = inlined_call_operand.vmem [shape: f32[32,128], index: 14, kind: output, shape index: {}]
  %s15 = sld [smem:[#allocation0]]
  $region62: #{mixed_op_forward.1} parent=0
    _
  %s17 = ssub.s32 1, %s15
  %s18 = scalar_select 0, %s17, %s15
  %s19 = sshll.u32 %s0, 4
  %s20 = int_to_ptr.vmem [resolvable:$true] %s19
  %22 = dma.vmem_to_smem %s20, 16, [#allocation4], [#allocation3]
  %23 = dma.done [#allocation3], 16
  %24 = sfence
  // Predicated region
  $region2: #{mixed_op_forward.1} parent=0 // pred_check
    _
  $region3: #{mixed_op_forward.1} parent=0 // pred_check_branch
    %26 = sbr.rel (0) target = $region5
  $region4: #{mixed_op_forward.1} parent=0 // pred_region
    _
  $region5: #{mixed_op_forward.1} parent=0 // pred_fallthru
    _
  // Predicated region
  $region6: #{mixed_op_forward.1} parent=0 // pred_check
    _
  $region7: #{mixed_op_forward.1} parent=0 // pred_check_branch
    %28 = sbr.rel (0) target = $region9
  $region8: #{mixed_op_forward.1} parent=0 // pred_region
    _
  $region9: #{mixed_op_forward.1} parent=0 // pred_fallthru
    _
  // Predicated region
  $region10: #{mixed_op_forward.1} parent=0 // pred_check
    _
  $region11: #{mixed_op_forward.1} parent=0 // pred_check_branch
    %30 = sbr.rel (0) target = $region13
  $region12: #{mixed_op_forward.1} parent=0 // pred_region
    _
  $region13: #{mixed_op_forward.1} parent=0 // pred_fallthru
    _
  // Predicated region
  $region14: #{mixed_op_forward.1} parent=0 // pred_check
    _
  $region15: #{mixed_op_forward.1} parent=0 // pred_check_branch
    %32 = sbr.rel (0) target = $region17
  $region16: #{mixed_op_forward.1} parent=0 // pred_region
    _
  $region17: #{mixed_op_forward.1} parent=0 // pred_fallthru
    _
  // Predicated region
  $region18: #{mixed_op_forward.1} parent=0 // pred_check
    _
  $region19: #{mixed_op_forward.1} parent=0 // pred_check_branch
    %34 = sbr.rel (0) target = $region21
  $region20: #{mixed_op_forward.1} parent=0 // pred_region
    _
  $region21: #{mixed_op_forward.1} parent=0 // pred_fallthru
    _
  // Predicated region
  $region22: #{mixed_op_forward.1} parent=0 // pred_check
    _
  $region23: #{mixed_op_forward.1} parent=0 // pred_check_branch
    %36 = sbr.rel (0) target = $region25
  $region24: #{mixed_op_forward.1} parent=0 // pred_region
    _
  $region25: #{mixed_op_forward.1} parent=0 // pred_fallthru
    _
  // Predicated region
  $region26: #{mixed_op_forward.1} parent=0 // pred_check
    _
  $region27: #{mixed_op_forward.1} parent=0 // pred_check_branch
    %38 = sbr.rel (0) target = $region29
  $region28: #{mixed_op_forward.1} parent=0 // pred_region
    _
  $region29: #{mixed_op_forward.1} parent=0 // pred_fallthru
    _
  // Predicated region
  $region30: #{mixed_op_forward.1} parent=0 // pred_check
    _
  $region31: #{mixed_op_forward.1} parent=0 // pred_check_branch
    %40 = sbr.rel (0) target = $region33
  $region32: #{mixed_op_forward.1} parent=0 // pred_region
    _
  $region33: #{mixed_op_forward.1} parent=0 // pred_fallthru
    _
  // Predicated region
  $region34: #{mixed_op_forward.1} parent=0 // pred_check
    _
  $region35: #{mixed_op_forward.1} parent=0 // pred_check_branch
    %42 = sbr.rel (0) target = $region37
  $region36: #{mixed_op_forward.1} parent=0 // pred_region
    _
  $region37: #{mixed_op_forward.1} parent=0 // pred_fallthru
    _
  // Predicated region
  $region38: #{mixed_op_forward.1} parent=0 // pred_check
    _
  $region39: #{mixed_op_forward.1} parent=0 // pred_check_branch
    %44 = sbr.rel (0) target = $region41
  $region40: #{mixed_op_forward.1} parent=0 // pred_region
    _
  $region41: #{mixed_op_forward.1} parent=0 // pred_fallthru
    _
  // Predicated region
  $region42: #{mixed_op_forward.1} parent=0 // pred_check
    _
  $region43: #{mixed_op_forward.1} parent=0 // pred_check_branch
    %46 = sbr.rel (0) target = $region45
  $region44: #{mixed_op_forward.1} parent=0 // pred_region
    _
  $region45: #{mixed_op_forward.1} parent=0 // pred_fallthru
    _
  // Predicated region
  $region46: #{mixed_op_forward.1} parent=0 // pred_check
    _
  $region47: #{mixed_op_forward.1} parent=0 // pred_check_branch
    %48 = sbr.rel (0) target = $region49
  $region48: #{mixed_op_forward.1} parent=0 // pred_region
    _
  $region49: #{mixed_op_forward.1} parent=0 // pred_fallthru
    _
  // Predicated region
  $region50: #{mixed_op_forward.1} parent=0 // pred_check
    _
  $region51: #{mixed_op_forward.1} parent=0 // pred_check_branch
    %50 = sbr.rel (0) target = $region53
  $region52: #{mixed_op_forward.1} parent=0 // pred_region
    _
  $region53: #{mixed_op_forward.1} parent=0 // pred_fallthru
    _
  %v52 = vld [vmem:[%s1] sm:$0xff]
  %v53 = vld [vmem:[%s1 + $0x8] sm:$0xff]
  %v54 = vld [vmem:[%s1 + $0x10] sm:$0xff]
  %v55 = vld [vmem:[%s1 + $0x18] sm:$0xff]
  %v56 = vld [vmem:[%s1 + $0x20] sm:$0xff]
  %v57 = vld [vmem:[%s1 + $0x28] sm:$0xff]
  %58 = vst [vmem:[#allocation2] sm:$0xff] 0.0
  %59 = vst [vmem:[#allocation2 + $0x20] sm:$0xff] 0.0
  %60 = vst [vmem:[#allocation2 + $0x18] sm:$0xff] 0.0
  %61 = vst [vmem:[#allocation2 + $0x38] sm:$0xff] 0.0
  %v62 = vlaneseq
  %v63 = vshrl.u32 %v62, 7
  %v64 = vadd.s32 %v63, 8
  %v65 = vlaneseq
  %v66 = vand.u32 %v65, 127
  %vm67 = vcmp.ge.s32.totalorder %v63, 1
  %vm68 = vcmp.ge.s32.totalorder %v64, 1
  %vm69 = vcmp.le.s32.totalorder %v63, 14
  %vm70 = vcmp.le.s32.totalorder %v64, 14
  %vm71 = vcmp.ge.s32.totalorder %v66, 8
  %vm72 = vcmp.lt.s32.totalorder %v66, 120
  %v73 = vsel %vm71, 1, 0
  %v74 = vcvt.s32.f32 %v73
  %v75 = vsel %vm72, 1, 0
  %v76 = vcvt.s32.f32 %v75
  %v77 = vsel %vm67, 1, 0
  %v78 = vsel %vm68, 1, 0
  %v79 = vcvt.s32.f32 %v77
  %v80 = vcvt.s32.f32 %v78
  %v81 = vadd.f32 %v79, 1.0
  %v82 = vadd.f32 %v80, 1.0
  %v83 = vsel %vm69, 1, 0
  %v84 = vsel %vm70, 1, 0
  %v85 = vcvt.s32.f32 %v83
  %v86 = vcvt.s32.f32 %v84
  %v87 = vadd.f32 %v81, %v85
  %v88 = vadd.f32 %v82, %v86
  %v89 = vadd.f32 %v74, 1.0
  %v90 = vadd.f32 %v89, %v76
  %v91 = vmul.f32 %v87, %v90
  %v92 = vmul.f32 %v88, %v90
  %v93 = vrcp.pop %v91
  %v94 = vmul.f32 1.0, %v93
  %v95 = vrcp.pop %v92
  %v96 = vmul.f32 1.0, %v95
  %vm103 = vcmask 1043456
  %v104 = vrot.slane %v52, 4
  %v105 = vrot.slane %v53, 4
  %v106 = vsel %vm103, %v104, %v105
  %v107 = vrot.slane %v54, 4
  %v108 = vsel %vm103, %v105, %v107
  %v109 = vrot.slane %v55, 4
  %v110 = vrot.slane %v56, 4
  %v111 = vsel %vm103, %v109, %v110
  %v112 = vrot.slane %v57, 4
  %v113 = vsel %vm103, %v110, %v112
  %vm118 = vcmask 1044480
  %v119 = vrot.slane %v52, 3
  %v120 = vrot.slane %v53, 3
  %v121 = vsel %vm118, %v119, %v120
  %v122 = vrot.slane %v54, 3
  %v123 = vsel %vm118, %v120, %v122
  %v124 = vrot.slane %v55, 3
  %v125 = vrot.slane %v56, 3
  %v126 = vsel %vm118, %v124, %v125
  %v127 = vrot.slane %v57, 3
  %v128 = vsel %vm118, %v125, %v127
  %133 = vrot.lane.b32.xlu0 %v121, 8
  %v134 = vpop.permute.xlu0 %133
  %135 = vrot.lane.b32.xlu0 %v123, 8
  %v136 = vpop.permute.xlu0 %135
  %137 = vrot.lane.b32.xlu0 %v126, 8
  %v138 = vpop.permute.xlu0 %137
  %139 = vrot.lane.b32.xlu0 %v128, 8
  %v140 = vpop.permute.xlu0 %139
  %v141 = vmul.f32 %v134, %v74
  %v142 = vmul.f32 %v136, %v74
  %v143 = vmul.f32 %v138, %v74
  %v144 = vmul.f32 %v140, %v74
  %v145 = vadd.f32 %v106, %v141
  %v146 = vadd.f32 %v108, %v142
  %v147 = vadd.f32 %v111, %v143
  %v148 = vadd.f32 %v113, %v144
  %vm149 = vcmp.eq.s32.totalorder %v73, 1
  %v150 = vsel %vm149, %v134, -inf
  %v151 = vsel %vm149, %v136, -inf
  %v152 = vsel %vm149, %v138, -inf
  %v153 = vsel %vm149, %v140, -inf
  %v154 = vsel %vm67, %v150, -inf
  %v155 = vsel %vm68, %v151, -inf
  %v156 = vsel %vm67, %v152, -inf
  %v157 = vsel %vm68, %v153, -inf
  %v158 = vmax.f32 %v106, %v154
  %v159 = vmax.f32 %v108, %v155
  %v160 = vmax.f32 %v111, %v156
  %v161 = vmax.f32 %v113, %v157
  %v162 = vadd.f32 %v145, %v121
  %v163 = vadd.f32 %v146, %v123
  %v164 = vadd.f32 %v147, %v126
  %v165 = vadd.f32 %v148, %v128
  %v166 = vsel %vm67, %v121, -inf
  %v167 = vsel %vm68, %v123, -inf
  %v168 = vsel %vm67, %v126, -inf
  %v169 = vsel %vm68, %v128, -inf
  %v170 = vmax.f32 %v158, %v166
  %v171 = vmax.f32 %v159, %v167
  %v172 = vmax.f32 %v160, %v168
  %v173 = vmax.f32 %v161, %v169
  %174 = vrot.lane.b32.xlu0 %v121, 120
  %v175 = vpop.permute.xlu0 %174
  %176 = vrot.lane.b32.xlu0 %v123, 120
  %v177 = vpop.permute.xlu0 %176
  %178 = vrot.lane.b32.xlu0 %v126, 120
  %v179 = vpop.permute.xlu0 %178
  %180 = vrot.lane.b32.xlu0 %v128, 120
  %v181 = vpop.permute.xlu0 %180
  %v182 = vmul.f32 %v175, %v76
  %v183 = vmul.f32 %v177, %v76
  %v184 = vmul.f32 %v179, %v76
  %v185 = vmul.f32 %v181, %v76
  %v186 = vadd.f32 %v162, %v182
  %v187 = vadd.f32 %v163, %v183
  %v188 = vadd.f32 %v164, %v184
  %v189 = vadd.f32 %v165, %v185
  %vm190 = vcmp.eq.s32.totalorder %v75, 1
  %v191 = vsel %vm190, %v175, -inf
  %v192 = vsel %vm190, %v177, -inf
  %v193 = vsel %vm190, %v179, -inf
  %v194 = vsel %vm190, %v181, -inf
  %v195 = vsel %vm67, %v191, -inf
  %v196 = vsel %vm68, %v192, -inf
  %v197 = vsel %vm67, %v193, -inf
  %v198 = vsel %vm68, %v194, -inf
  %v199 = vmax.f32 %v170, %v195
  %v200 = vmax.f32 %v171, %v196
  %v201 = vmax.f32 %v172, %v197
  %v202 = vmax.f32 %v173, %v198
  %203 = vrot.lane.b32.xlu0 %v106, 8
  %v204 = vpop.permute.xlu0 %203
  %205 = vrot.lane.b32.xlu0 %v108, 8
  %v206 = vpop.permute.xlu0 %205
  %207 = vrot.lane.b32.xlu0 %v111, 8
  %v208 = vpop.permute.xlu0 %207
  %209 = vrot.lane.b32.xlu0 %v113, 8
  %v210 = vpop.permute.xlu0 %209
  %v211 = vmul.f32 %v204, %v74
  %v212 = vmul.f32 %v206, %v74
  %v213 = vmul.f32 %v208, %v74
  %v214 = vmul.f32 %v210, %v74
  %v215 = vadd.f32 %v186, %v211
  %v216 = vadd.f32 %v187, %v212
  %v217 = vadd.f32 %v188, %v213
  %v218 = vadd.f32 %v189, %v214
  %v219 = vsel %vm149, %v204, -inf
  %v220 = vsel %vm149, %v206, -inf
  %v221 = vsel %vm149, %v208, -inf
  %v222 = vsel %vm149, %v210, -inf
  %v223 = vmax.f32 %v199, %v219
  %v224 = vmax.f32 %v200, %v220
  %v225 = vmax.f32 %v201, %v221
  %v226 = vmax.f32 %v202, %v222
  %227 = vrot.lane.b32.xlu0 %v106, 120
  %v228 = vpop.permute.xlu0 %227
  %229 = vrot.lane.b32.xlu0 %v108, 120
  %v230 = vpop.permute.xlu0 %229
  %231 = vrot.lane.b32.xlu0 %v111, 120
  %v232 = vpop.permute.xlu0 %231
  %233 = vrot.lane.b32.xlu0 %v113, 120
  %v234 = vpop.permute.xlu0 %233
  %v235 = vmul.f32 %v228, %v76
  %v236 = vmul.f32 %v230, %v76
  %v237 = vmul.f32 %v232, %v76
  %v238 = vmul.f32 %v234, %v76
  %v239 = vadd.f32 %v215, %v235
  %v240 = vadd.f32 %v216, %v236
  %v241 = vadd.f32 %v217, %v237
  %v242 = vadd.f32 %v218, %v238
  %v243 = vsel %vm190, %v228, -inf
  %v244 = vsel %vm190, %v230, -inf
  %v245 = vsel %vm190, %v232, -inf
  %v246 = vsel %vm190, %v234, -inf
  %v247 = vmax.f32 %v223, %v243
  %v248 = vmax.f32 %v224, %v244
  %v249 = vmax.f32 %v225, %v245
  %v250 = vmax.f32 %v226, %v246
  %vm251 = vcmask 1042432
  %v252 = vrot.slane %v52, 5
  %v253 = vrot.slane %v53, 5
  %v254 = vsel %vm251, %v252, %v253
  %v255 = vrot.slane %v54, 5
  %v256 = vsel %vm251, %v253, %v255
  %v257 = vrot.slane %v55, 5
  %v258 = vrot.slane %v56, 5
  %v259 = vsel %vm251, %v257, %v258
  %v260 = vrot.slane %v57, 5
  %v261 = vsel %vm251, %v258, %v260
  %266 = vrot.lane.b32.xlu0 %v254, 8
  %v267 = vpop.permute.xlu0 %266
  %268 = vrot.lane.b32.xlu0 %v256, 8
  %v269 = vpop.permute.xlu0 %268
  %270 = vrot.lane.b32.xlu0 %v259, 8
  %v271 = vpop.permute.xlu0 %270
  %272 = vrot.lane.b32.xlu0 %v261, 8
  %v273 = vpop.permute.xlu0 %272
  %v274 = vmul.f32 %v267, %v74
  %v275 = vmul.f32 %v269, %v74
  %v276 = vmul.f32 %v271, %v74
  %v277 = vmul.f32 %v273, %v74
  %v278 = vadd.f32 %v239, %v274
  %v279 = vadd.f32 %v240, %v275
  %v280 = vadd.f32 %v241, %v276
  %v281 = vadd.f32 %v242, %v277
  %v282 = vsel %vm149, %v267, -inf
  %v283 = vsel %vm149, %v269, -inf
  %v284 = vsel %vm149, %v271, -inf
  %v285 = vsel %vm149, %v273, -inf
  %v286 = vsel %vm69, %v282, -inf
  %v287 = vsel %vm70, %v283, -inf
  %v288 = vsel %vm69, %v284, -inf
  %v289 = vsel %vm70, %v285, -inf
  %v290 = vmax.f32 %v247, %v286
  %v291 = vmax.f32 %v248, %v287
  %v292 = vmax.f32 %v249, %v288
  %v293 = vmax.f32 %v250, %v289
  %v294 = vadd.f32 %v278, %v254
  %v295 = vadd.f32 %v279, %v256
  %v296 = vadd.f32 %v280, %v259
  %v297 = vadd.f32 %v281, %v261
  %v298 = vsel %vm69, %v254, -inf
  %v299 = vsel %vm70, %v256, -inf
  %v300 = vsel %vm69, %v259, -inf
  %v301 = vsel %vm70, %v261, -inf
  %v302 = vmax.f32 %v290, %v298
  %v303 = vmax.f32 %v291, %v299
  %v304 = vmax.f32 %v292, %v300
  %v305 = vmax.f32 %v293, %v301
  %306 = vrot.lane.b32.xlu0 %v254, 120
  %v307 = vpop.permute.xlu0 %306
  %308 = vrot.lane.b32.xlu0 %v256, 120
  %v309 = vpop.permute.xlu0 %308
  %310 = vrot.lane.b32.xlu0 %v259, 120
  %v311 = vpop.permute.xlu0 %310
  %312 = vrot.lane.b32.xlu0 %v261, 120
  %v313 = vpop.permute.xlu0 %312
  %v314 = vmul.f32 %v307, %v76
  %v315 = vmul.f32 %v309, %v76
  %v316 = vmul.f32 %v311, %v76
  %v317 = vmul.f32 %v313, %v76
  %v318 = vadd.f32 %v294, %v314
  %v319 = vadd.f32 %v295, %v315
  %v320 = vadd.f32 %v296, %v316
  %v321 = vadd.f32 %v297, %v317
  %v322 = vsel %vm190, %v307, -inf
  %v323 = vsel %vm190, %v309, -inf
  %v324 = vsel %vm190, %v311, -inf
  %v325 = vsel %vm190, %v313, -inf
  %v326 = vsel %vm69, %v322, -inf
  %v327 = vsel %vm70, %v323, -inf
  %v328 = vsel %vm69, %v324, -inf
  %v329 = vsel %vm70, %v325, -inf
  %v330 = vmax.f32 %v302, %v326
  %v331 = vmax.f32 %v303, %v327
  %v332 = vmax.f32 %v304, %v328
  %v333 = vmax.f32 %v305, %v329
  %v334 = vmul.f32 %v318, %v94
  %v335 = vmul.f32 %v319, %v96
  %v336 = vmul.f32 %v320, %v94
  %v337 = vmul.f32 %v321, %v96
  %s338 = sld [smem:[#allocation4 + $0x3]]
  %v339 = vstv %s338
  %v340 = vmul.f32 %v339, %v106
  %v341 = vmul.f32 %v339, %v108
  %v342 = vmul.f32 %v339, %v111
  %v343 = vmul.f32 %v339, %v113
  %s344 = sld [smem:[#allocation4 + $0x1]]
  %v345 = vadd.f32 %v330, %v331
  %v346 = vadd.f32 %v345, %v332
  %v347 = vadd.f32 %v346, %v333
  %v348 = vrot.slane %v347, 4
  %v349 = vadd.f32 %v347, %v348
  %v350 = vrot.slane %v349, 2
  %v351 = vadd.f32 %v349, %v350
  %v352 = vrot.slane %v351, 1
  %v353 = vadd.f32 %v351, %v352
  %354 = vrot.lane.b32.xlu0 %v353, 8
  %v355 = vpop.permute.xlu0 %354
  %v356 = vadd.f32 %v353, %v355
  %357 = vrot.lane.b32.xlu0 %v356, 16
  %v358 = vpop.permute.xlu0 %357
  %v359 = vadd.f32 %v356, %v358
  %360 = vrot.lane.b32.xlu0 %v359, 32
  %v361 = vpop.permute.xlu0 %360
  %v362 = vadd.f32 %v359, %v361
  %363 = vrot.lane.b32.xlu0 %v362, 64
  %v364 = vpop.permute.xlu0 %363
  %v365 = vadd.f32 %v362, %v364
  %v366 = vmul.f32 %v365, 0.001953125
  %v367 = vlaneseq
  %v368 = vshrl.u32 %v367, 7
  %v369 = vsub.s32 0, %v368
  %v370 = vrot.slane %v366, %v369
  %v371 = vsub.f32 %v330, %v370
  %v372 = vsub.f32 %v331, %v370
  %v373 = vsub.f32 %v332, %v370
  %v374 = vsub.f32 %v333, %v370
  %v375 = vmul.f32 %v371, %v371
  %v376 = vmul.f32 %v372, %v372
  %v377 = vmul.f32 %v373, %v373
  %v378 = vmul.f32 %v374, %v374
  %v379 = vadd.f32 %v375, %v376
  %v380 = vadd.f32 %v379, %v377
  %v381 = vadd.f32 %v380, %v378
  %v382 = vrot.slane %v381, 4
  %v383 = vadd.f32 %v381, %v382
  %v384 = vrot.slane %v383, 2
  %v385 = vadd.f32 %v383, %v384
  %v386 = vrot.slane %v385, 1
  %v387 = vadd.f32 %v385, %v386
  %388 = vrot.lane.b32.xlu0 %v387, 8
  %v389 = vpop.permute.xlu0 %388
  %v390 = vadd.f32 %v387, %v389
  %391 = vrot.lane.b32.xlu0 %v390, 16
  %v392 = vpop.permute.xlu0 %391
  %v393 = vadd.f32 %v390, %v392
  %394 = vrot.lane.b32.xlu0 %v393, 32
  %v395 = vpop.permute.xlu0 %394
  %v396 = vadd.f32 %v393, %v395
  %397 = vrot.lane.b32.xlu0 %v396, 64
  %v398 = vpop.permute.xlu0 %397
  %v399 = vadd.f32 %v396, %v398
  %v400 = vmul.f32 %v399, 0.001953125
  %v401 = vadd.f32 %v400, 1e-05
  %v402 = vrsqrt.pop %v401
  %v403 = vlaneseq
  %v404 = vshrl.u32 %v403, 7
  %v405 = vsub.s32 0, %v404
  %v406 = vrot.slane %v402, %v405
  %v407 = vmul.f32 %v371, %v406
  %v408 = vmul.f32 %v372, %v406
  %v409 = vmul.f32 %v373, %v406
  %v410 = vmul.f32 %v374, %v406
  %v411 = vstv %s344
  %v412 = vmul.f32 %v411, %v407
  %v413 = vmul.f32 %v411, %v408
  %v414 = vmul.f32 %v411, %v409
  %v415 = vmul.f32 %v411, %v410
  %v416 = vadd.f32 %v340, %v412
  %v417 = vadd.f32 %v341, %v413
  %v418 = vadd.f32 %v342, %v414
  %v419 = vadd.f32 %v343, %v415
  %s420 = sld [smem:[#allocation4 + $0x2]]
  %v421 = vadd.f32 %v334, %v335
  %v422 = vadd.f32 %v421, %v336
  %v423 = vadd.f32 %v422, %v337
  %v424 = vrot.slane %v423, 4
  %v425 = vadd.f32 %v423, %v424
  %v426 = vrot.slane %v425, 2
  %v427 = vadd.f32 %v425, %v426
  %v428 = vrot.slane %v427, 1
  %v429 = vadd.f32 %v427, %v428
  %430 = vrot.lane.b32.xlu0 %v429, 8
  %v431 = vpop.permute.xlu0 %430
  %v432 = vadd.f32 %v429, %v431
  %433 = vrot.lane.b32.xlu0 %v432, 16
  %v434 = vpop.permute.xlu0 %433
  %v435 = vadd.f32 %v432, %v434
  %436 = vrot.lane.b32.xlu0 %v435, 32
  %v437 = vpop.permute.xlu0 %436
  %v438 = vadd.f32 %v435, %v437
  %439 = vrot.lane.b32.xlu0 %v438, 64
  %v440 = vpop.permute.xlu0 %439
  %v441 = vadd.f32 %v438, %v440
  %v442 = vmul.f32 %v441, 0.001953125
  %v443 = vlaneseq
  %v444 = vshrl.u32 %v443, 7
  %v445 = vsub.s32 0, %v444
  %v446 = vrot.slane %v442, %v445
  %v447 = vsub.f32 %v334, %v446
  %v448 = vsub.f32 %v335, %v446
  %v449 = vsub.f32 %v336, %v446
  %v450 = vsub.f32 %v337, %v446
  %v451 = vmul.f32 %v447, %v447
  %v452 = vmul.f32 %v448, %v448
  %v453 = vmul.f32 %v449, %v449
  %v454 = vmul.f32 %v450, %v450
  %v455 = vadd.f32 %v451, %v452
  %v456 = vadd.f32 %v455, %v453
  %v457 = vadd.f32 %v456, %v454
  %v458 = vrot.slane %v457, 4
  %v459 = vadd.f32 %v457, %v458
  %v460 = vrot.slane %v459, 2
  %v461 = vadd.f32 %v459, %v460
  %v462 = vrot.slane %v461, 1
  %v463 = vadd.f32 %v461, %v462
  %464 = vrot.lane.b32.xlu0 %v463, 8
  %v465 = vpop.permute.xlu0 %464
  %v466 = vadd.f32 %v463, %v465
  %467 = vrot.lane.b32.xlu0 %v466, 16
  %v468 = vpop.permute.xlu0 %467
  %v469 = vadd.f32 %v466, %v468
  %470 = vrot.lane.b32.xlu0 %v469, 32
  %v471 = vpop.permute.xlu0 %470
  %v472 = vadd.f32 %v469, %v471
  %473 = vrot.lane.b32.xlu0 %v472, 64
  %v474 = vpop.permute.xlu0 %473
  %v475 = vadd.f32 %v472, %v474
  %v476 = vmul.f32 %v475, 0.001953125
  %v477 = vadd.f32 %v476, 1e-05
  %v478 = vrsqrt.pop %v477
  %v479 = vlaneseq
  %v480 = vshrl.u32 %v479, 7
  %v481 = vsub.s32 0, %v480
  %v482 = vrot.slane %v478, %v481
  %v483 = vmul.f32 %v447, %v482
  %v484 = vmul.f32 %v448, %v482
  %v485 = vmul.f32 %v449, %v482
  %v486 = vmul.f32 %v450, %v482
  %v487 = vstv %s420
  %v488 = vmul.f32 %v487, %v483
  %v489 = vmul.f32 %v487, %v484
  %v490 = vmul.f32 %v487, %v485
  %v491 = vmul.f32 %v487, %v486
  %v492 = vadd.f32 %v416, %v488
  %v493 = vadd.f32 %v417, %v489
  %v494 = vadd.f32 %v418, %v490
  %v495 = vadd.f32 %v419, %v491
  %v496 = vmax.f32 %v52, 0.0
  %v497 = vmax.f32 %v53, 0.0
  %v498 = vmax.f32 %v54, 0.0
  %v499 = vmax.f32 %v55, 0.0
  %v500 = vmax.f32 %v56, 0.0
  %v501 = vmax.f32 %v57, 0.0
  %v508 = vrot.slane %v496, 3
  %v509 = vrot.slane %v497, 3
  %v510 = vsel %vm118, %v508, %v509
  %v511 = vrot.slane %v498, 3
  %v512 = vsel %vm118, %v509, %v511
  %v513 = vrot.slane %v499, 3
  %v514 = vrot.slane %v500, 3
  %v515 = vsel %vm118, %v513, %v514
  %v516 = vrot.slane %v501, 3
  %v517 = vsel %vm118, %v514, %v516
  %522 = vrot.lane.b32.xlu0 %v510, 8
  %v523 = vpop.permute.xlu0 %522
  %524 = vrot.lane.b32.xlu0 %v512, 8
  %v525 = vpop.permute.xlu0 %524
  %526 = vrot.lane.b32.xlu0 %v515, 8
  %v527 = vpop.permute.xlu0 %526
  %528 = vrot.lane.b32.xlu0 %v517, 8
  %v529 = vpop.permute.xlu0 %528
  %v530 = vld [vmem:[%s2] sm:$0x1]
  %v531 = vlaneseq
  %v532 = vshrl.u32 %v531, 7
  %v533 = vsub.s32 0, %v532
  %v534 = vrot.slane %v530, %v533
  %v535 = vmul.f32 %v523, %v534
  %v536 = vmul.f32 %v525, %v534
  %v537 = vmul.f32 %v527, %v534
  %v538 = vmul.f32 %v529, %v534
  %v539 = vadd.f32 %v535, 0.0
  %v540 = vadd.f32 %v536, 0.0
  %v541 = vadd.f32 %v537, 0.0
  %v542 = vadd.f32 %v538, 0.0
  %v543 = vld [vmem:[%s2 + $0x1] sm:$0x1]
  %v544 = vlaneseq
  %v545 = vshrl.u32 %v544, 7
  %v546 = vsub.s32 0, %v545
  %v547 = vrot.slane %v543, %v546
  %v548 = vmul.f32 %v510, %v547
  %v549 = vmul.f32 %v512, %v547
  %v550 = vmul.f32 %v515, %v547
  %v551 = vmul.f32 %v517, %v547
  %v552 = vadd.f32 %v539, %v548
  %v553 = vadd.f32 %v540, %v549
  %v554 = vadd.f32 %v541, %v550
  %v555 = vadd.f32 %v542, %v551
  %556 = vrot.lane.b32.xlu0 %v510, 120
  %v557 = vpop.permute.xlu0 %556
  %558 = vrot.lane.b32.xlu0 %v512, 120
  %v559 = vpop.permute.xlu0 %558
  %560 = vrot.lane.b32.xlu0 %v515, 120
  %v561 = vpop.permute.xlu0 %560
  %562 = vrot.lane.b32.xlu0 %v517, 120
  %v563 = vpop.permute.xlu0 %562
  %v564 = vld [vmem:[%s2 + $0x2] sm:$0x1]
  %v565 = vlaneseq
  %v566 = vshrl.u32 %v565, 7
  %v567 = vsub.s32 0, %v566
  %v568 = vrot.slane %v564, %v567
  %v569 = vmul.f32 %v557, %v568
  %v570 = vmul.f32 %v559, %v568
  %v571 = vmul.f32 %v561, %v568
  %v572 = vmul.f32 %v563, %v568
  %v573 = vadd.f32 %v552, %v569
  %v574 = vadd.f32 %v553, %v570
  %v575 = vadd.f32 %v554, %v571
  %v576 = vadd.f32 %v555, %v572
  %v577 = vrot.slane %v496, 4
  %v578 = vrot.slane %v497, 4
  %v579 = vsel %vm103, %v577, %v578
  %v580 = vrot.slane %v498, 4
  %v581 = vsel %vm103, %v578, %v580
  %v582 = vrot.slane %v499, 4
  %v583 = vrot.slane %v500, 4
  %v584 = vsel %vm103, %v582, %v583
  %v585 = vrot.slane %v501, 4
  %v586 = vsel %vm103, %v583, %v585
  %591 = vrot.lane.b32.xlu0 %v579, 8
  %v592 = vpop.permute.xlu0 %591
  %593 = vrot.lane.b32.xlu0 %v581, 8
  %v594 = vpop.permute.xlu0 %593
  %595 = vrot.lane.b32.xlu0 %v584, 8
  %v596 = vpop.permute.xlu0 %595
  %597 = vrot.lane.b32.xlu0 %v586, 8
  %v598 = vpop.permute.xlu0 %597
  %v599 = vld [vmem:[%s2 + $0x3] sm:$0x1]
  %v600 = vlaneseq
  %v601 = vshrl.u32 %v600, 7
  %v602 = vsub.s32 0, %v601
  %v603 = vrot.slane %v599, %v602
  %v604 = vmul.f32 %v592, %v603
  %v605 = vmul.f32 %v594, %v603
  %v606 = vmul.f32 %v596, %v603
  %v607 = vmul.f32 %v598, %v603
  %v608 = vadd.f32 %v573, %v604
  %v609 = vadd.f32 %v574, %v605
  %v610 = vadd.f32 %v575, %v606
  %v611 = vadd.f32 %v576, %v607
  %v612 = vld [vmem:[%s2 + $0x4] sm:$0x1]
  %v613 = vlaneseq
  %v614 = vshrl.u32 %v613, 7
  %v615 = vsub.s32 0, %v614
  %v616 = vrot.slane %v612, %v615
  %v617 = vmul.f32 %v579, %v616
  %v618 = vmul.f32 %v581, %v616
  %v619 = vmul.f32 %v584, %v616
  %v620 = vmul.f32 %v586, %v616
  %v621 = vadd.f32 %v608, %v617
  %v622 = vadd.f32 %v609, %v618
  %v623 = vadd.f32 %v610, %v619
  %v624 = vadd.f32 %v611, %v620
  %625 = vrot.lane.b32.xlu0 %v579, 120
  %v626 = vpop.permute.xlu0 %625
  %627 = vrot.lane.b32.xlu0 %v581, 120
  %v628 = vpop.permute.xlu0 %627
  %629 = vrot.lane.b32.xlu0 %v584, 120
  %v630 = vpop.permute.xlu0 %629
  %631 = vrot.lane.b32.xlu0 %v586, 120
  %v632 = vpop.permute.xlu0 %631
  %v633 = vld [vmem:[%s2 + $0x5] sm:$0x1]
  %v634 = vlaneseq
  %v635 = vshrl.u32 %v634, 7
  %v636 = vsub.s32 0, %v635
  %v637 = vrot.slane %v633, %v636
  %v638 = vmul.f32 %v626, %v637
  %v639 = vmul.f32 %v628, %v637
  %v640 = vmul.f32 %v630, %v637
  %v641 = vmul.f32 %v632, %v637
  %v642 = vadd.f32 %v621, %v638
  %v643 = vadd.f32 %v622, %v639
  %v644 = vadd.f32 %v623, %v640
  %v645 = vadd.f32 %v624, %v641
  %v646 = vrot.slane %v496, 5
  %v647 = vrot.slane %v497, 5
  %v648 = vsel %vm251, %v646, %v647
  %v649 = vrot.slane %v498, 5
  %v650 = vsel %vm251, %v647, %v649
  %v651 = vrot.slane %v499, 5
  %v652 = vrot.slane %v500, 5
  %v653 = vsel %vm251, %v651, %v652
  %v654 = vrot.slane %v501, 5
  %v655 = vsel %vm251, %v652, %v654
  %660 = vrot.lane.b32.xlu0 %v648, 8
  %v661 = vpop.permute.xlu0 %660
  %662 = vrot.lane.b32.xlu0 %v650, 8
  %v663 = vpop.permute.xlu0 %662
  %664 = vrot.lane.b32.xlu0 %v653, 8
  %v665 = vpop.permute.xlu0 %664
  %666 = vrot.lane.b32.xlu0 %v655, 8
  %v667 = vpop.permute.xlu0 %666
  %v668 = vld [vmem:[%s2 + $0x6] sm:$0x1]
  %v669 = vlaneseq
  %v670 = vshrl.u32 %v669, 7
  %v671 = vsub.s32 0, %v670
  %v672 = vrot.slane %v668, %v671
  %v673 = vmul.f32 %v661, %v672
  %v674 = vmul.f32 %v663, %v672
  %v675 = vmul.f32 %v665, %v672
  %v676 = vmul.f32 %v667, %v672
  %v677 = vadd.f32 %v642, %v673
  %v678 = vadd.f32 %v643, %v674
  %v679 = vadd.f32 %v644, %v675
  %v680 = vadd.f32 %v645, %v676
  %v681 = vld [vmem:[%s2 + $0x7] sm:$0x1]
  %v682 = vlaneseq
  %v683 = vshrl.u32 %v682, 7
  %v684 = vsub.s32 0, %v683
  %v685 = vrot.slane %v681, %v684
  %v686 = vmul.f32 %v648, %v685
  %v687 = vmul.f32 %v650, %v685
  %v688 = vmul.f32 %v653, %v685
  %v689 = vmul.f32 %v655, %v685
  %v690 = vadd.f32 %v677, %v686
  %v691 = vadd.f32 %v678, %v687
  %v692 = vadd.f32 %v679, %v688
  %v693 = vadd.f32 %v680, %v689
  %694 = vrot.lane.b32.xlu0 %v648, 120
  %v695 = vpop.permute.xlu0 %694
  %696 = vrot.lane.b32.xlu0 %v650, 120
  %v697 = vpop.permute.xlu0 %696
  %698 = vrot.lane.b32.xlu0 %v653, 120
  %v699 = vpop.permute.xlu0 %698
  %700 = vrot.lane.b32.xlu0 %v655, 120
  %v701 = vpop.permute.xlu0 %700
  %v702 = vld [vmem:[%s2 + $0x8] sm:$0x1]
  %v703 = vlaneseq
  %v704 = vshrl.u32 %v703, 7
  %v705 = vsub.s32 0, %v704
  %v706 = vrot.slane %v702, %v705
  %v707 = vmul.f32 %v695, %v706
  %v708 = vmul.f32 %v697, %v706
  %v709 = vmul.f32 %v699, %v706
  %v710 = vmul.f32 %v701, %v706
  %v711 = vadd.f32 %v690, %v707
  %v712 = vadd.f32 %v691, %v708
  %v713 = vadd.f32 %v692, %v709
  %v714 = vadd.f32 %v693, %v710
  %vm715 = vcmask 1045504
  %v716 = vrot.slane %v496, 2
  %v717 = vrot.slane %v497, 2
  %v718 = vsel %vm715, %v716, %v717
  %v719 = vrot.slane %v498, 2
  %v720 = vsel %vm715, %v717, %v719
  %v721 = vrot.slane %v499, 2
  %v722 = vrot.slane %v500, 2
  %v723 = vsel %vm715, %v721, %v722
  %v724 = vrot.slane %v501, 2
  %v725 = vsel %vm715, %v722, %v724
  %730 = vrot.lane.b32.xlu0 %v718, 16
  %v731 = vpop.permute.xlu0 %730
  %732 = vrot.lane.b32.xlu0 %v720, 16
  %v733 = vpop.permute.xlu0 %732
  %734 = vrot.lane.b32.xlu0 %v723, 16
  %v735 = vpop.permute.xlu0 %734
  %736 = vrot.lane.b32.xlu0 %v725, 16
  %v737 = vpop.permute.xlu0 %736
  %v738 = vld [vmem:[%s4] sm:$0x1]
  %v739 = vlaneseq
  %v740 = vshrl.u32 %v739, 7
  %v741 = vsub.s32 0, %v740
  %v742 = vrot.slane %v738, %v741
  %v743 = vmul.f32 %v731, %v742
  %v744 = vmul.f32 %v733, %v742
  %v745 = vmul.f32 %v735, %v742
  %v746 = vmul.f32 %v737, %v742
  %v747 = vadd.f32 %v743, 0.0
  %v748 = vadd.f32 %v744, 0.0
  %v749 = vadd.f32 %v745, 0.0
  %v750 = vadd.f32 %v746, 0.0
  %751 = vrot.lane.b32.xlu0 %v718, 8
  %v752 = vpop.permute.xlu0 %751
  %753 = vrot.lane.b32.xlu0 %v720, 8
  %v754 = vpop.permute.xlu0 %753
  %755 = vrot.lane.b32.xlu0 %v723, 8
  %v756 = vpop.permute.xlu0 %755
  %757 = vrot.lane.b32.xlu0 %v725, 8
  %v758 = vpop.permute.xlu0 %757
  %v759 = vld [vmem:[%s4 + $0x1] sm:$0x1]
  %v760 = vlaneseq
  %v761 = vshrl.u32 %v760, 7
  %v762 = vsub.s32 0, %v761
  %v763 = vrot.slane %v759, %v762
  %v764 = vmul.f32 %v752, %v763
  %v765 = vmul.f32 %v754, %v763
  %v766 = vmul.f32 %v756, %v763
  %v767 = vmul.f32 %v758, %v763
  %v768 = vadd.f32 %v747, %v764
  %v769 = vadd.f32 %v748, %v765
  %v770 = vadd.f32 %v749, %v766
  %v771 = vadd.f32 %v750, %v767
  %v772 = vld [vmem:[%s4 + $0x2] sm:$0x1]
  %v773 = vlaneseq
  %v774 = vshrl.u32 %v773, 7
  %v775 = vsub.s32 0, %v774
  %v776 = vrot.slane %v772, %v775
  %v777 = vmul.f32 %v718, %v776
  %v778 = vmul.f32 %v720, %v776
  %v779 = vmul.f32 %v723, %v776
  %v780 = vmul.f32 %v725, %v776
  %v781 = vadd.f32 %v768, %v777
  %v782 = vadd.f32 %v769, %v778
  %v783 = vadd.f32 %v770, %v779
  %v784 = vadd.f32 %v771, %v780
  %785 = vrot.lane.b32.xlu0 %v718, 120
  %v786 = vpop.permute.xlu0 %785
  %787 = vrot.lane.b32.xlu0 %v720, 120
  %v788 = vpop.permute.xlu0 %787
  %789 = vrot.lane.b32.xlu0 %v723, 120
  %v790 = vpop.permute.xlu0 %789
  %791 = vrot.lane.b32.xlu0 %v725, 120
  %v792 = vpop.permute.xlu0 %791
  %v793 = vld [vmem:[%s4 + $0x3] sm:$0x1]
  %v794 = vlaneseq
  %v795 = vshrl.u32 %v794, 7
  %v796 = vsub.s32 0, %v795
  %v797 = vrot.slane %v793, %v796
  %v798 = vmul.f32 %v786, %v797
  %v799 = vmul.f32 %v788, %v797
  %v800 = vmul.f32 %v790, %v797
  %v801 = vmul.f32 %v792, %v797
  %v802 = vadd.f32 %v781, %v798
  %v803 = vadd.f32 %v782, %v799
  %v804 = vadd.f32 %v783, %v800
  %v805 = vadd.f32 %v784, %v801
  %806 = vrot.lane.b32.xlu0 %v718, 112
  %v807 = vpop.permute.xlu0 %806
  %808 = vrot.lane.b32.xlu0 %v720, 112
  %v809 = vpop.permute.xlu0 %808
  %810 = vrot.lane.b32.xlu0 %v723, 112
  %v811 = vpop.permute.xlu0 %810
  %812 = vrot.lane.b32.xlu0 %v725, 112
  %v813 = vpop.permute.xlu0 %812
  %v814 = vld [vmem:[%s4 + $0x4] sm:$0x1]
  %v815 = vlaneseq
  %v816 = vshrl.u32 %v815, 7
  %v817 = vsub.s32 0, %v816
  %v818 = vrot.slane %v814, %v817
  %v819 = vmul.f32 %v807, %v818
  %v820 = vmul.f32 %v809, %v818
  %v821 = vmul.f32 %v811, %v818
  %v822 = vmul.f32 %v813, %v818
  %v823 = vadd.f32 %v802, %v819
  %v824 = vadd.f32 %v803, %v820
  %v825 = vadd.f32 %v804, %v821
  %v826 = vadd.f32 %v805, %v822
  %827 = vrot.lane.b32.xlu0 %v510, 16
  %v828 = vpop.permute.xlu0 %827
  %829 = vrot.lane.b32.xlu0 %v512, 16
  %v830 = vpop.permute.xlu0 %829
  %831 = vrot.lane.b32.xlu0 %v515, 16
  %v832 = vpop.permute.xlu0 %831
  %833 = vrot.lane.b32.xlu0 %v517, 16
  %v834 = vpop.permute.xlu0 %833
  %v835 = vld [vmem:[%s4 + $0x5] sm:$0x1]
  %v836 = vlaneseq
  %v837 = vshrl.u32 %v836, 7
  %v838 = vsub.s32 0, %v837
  %v839 = vrot.slane %v835, %v838
  %v840 = vmul.f32 %v828, %v839
  %v841 = vmul.f32 %v830, %v839
  %v842 = vmul.f32 %v832, %v839
  %v843 = vmul.f32 %v834, %v839
  %v844 = vadd.f32 %v823, %v840
  %v845 = vadd.f32 %v824, %v841
  %v846 = vadd.f32 %v825, %v842
  %v847 = vadd.f32 %v826, %v843
  %v848 = vld [vmem:[%s4 + $0x6] sm:$0x1]
  %v849 = vlaneseq
  %v850 = vshrl.u32 %v849, 7
  %v851 = vsub.s32 0, %v850
  %v852 = vrot.slane %v848, %v851
  %v853 = vmul.f32 %v523, %v852
  %v854 = vmul.f32 %v525, %v852
  %v855 = vmul.f32 %v527, %v852
  %v856 = vmul.f32 %v529, %v852
  %v857 = vadd.f32 %v844, %v853
  %v858 = vadd.f32 %v845, %v854
  %v859 = vadd.f32 %v846, %v855
  %v860 = vadd.f32 %v847, %v856
  %v861 = vld [vmem:[%s4 + $0x7] sm:$0x1]
  %v862 = vlaneseq
  %v863 = vshrl.u32 %v862, 7
  %v864 = vsub.s32 0, %v863
  %v865 = vrot.slane %v861, %v864
  %v866 = vmul.f32 %v510, %v865
  %v867 = vmul.f32 %v512, %v865
  %v868 = vmul.f32 %v515, %v865
  %v869 = vmul.f32 %v517, %v865
  %v870 = vadd.f32 %v857, %v866
  %v871 = vadd.f32 %v858, %v867
  %v872 = vadd.f32 %v859, %v868
  %v873 = vadd.f32 %v860, %v869
  %v874 = vld [vmem:[%s4 + $0x8] sm:$0x1]
  %v875 = vlaneseq
  %v876 = vshrl.u32 %v875, 7
  %v877 = vsub.s32 0, %v876
  %v878 = vrot.slane %v874, %v877
  %v879 = vmul.f32 %v557, %v878
  %v880 = vmul.f32 %v559, %v878
  %v881 = vmul.f32 %v561, %v878
  %v882 = vmul.f32 %v563, %v878
  %v883 = vadd.f32 %v870, %v879
  %v884 = vadd.f32 %v871, %v880
  %v885 = vadd.f32 %v872, %v881
  %v886 = vadd.f32 %v873, %v882
  %887 = vrot.lane.b32.xlu0 %v510, 112
  %v888 = vpop.permute.xlu0 %887
  %889 = vrot.lane.b32.xlu0 %v512, 112
  %v890 = vpop.permute.xlu0 %889
  %891 = vrot.lane.b32.xlu0 %v515, 112
  %v892 = vpop.permute.xlu0 %891
  %893 = vrot.lane.b32.xlu0 %v517, 112
  %v894 = vpop.permute.xlu0 %893
  %v895 = vld [vmem:[%s4 + $0x9] sm:$0x1]
  %v896 = vlaneseq
  %v897 = vshrl.u32 %v896, 7
  %v898 = vsub.s32 0, %v897
  %v899 = vrot.slane %v895, %v898
  %v900 = vmul.f32 %v888, %v899
  %v901 = vmul.f32 %v890, %v899
  %v902 = vmul.f32 %v892, %v899
  %v903 = vmul.f32 %v894, %v899
  %v904 = vadd.f32 %v883, %v900
  %v905 = vadd.f32 %v884, %v901
  %v906 = vadd.f32 %v885, %v902
  %v907 = vadd.f32 %v886, %v903
  %908 = vrot.lane.b32.xlu0 %v579, 16
  %v909 = vpop.permute.xlu0 %908
  %910 = vrot.lane.b32.xlu0 %v581, 16
  %v911 = vpop.permute.xlu0 %910
  %912 = vrot.lane.b32.xlu0 %v584, 16
  %v913 = vpop.permute.xlu0 %912
  %914 = vrot.lane.b32.xlu0 %v586, 16
  %v915 = vpop.permute.xlu0 %914
  %v916 = vld [vmem:[%s4 + $0xa] sm:$0x1]
  %v917 = vlaneseq
  %v918 = vshrl.u32 %v917, 7
  %v919 = vsub.s32 0, %v918
  %v920 = vrot.slane %v916, %v919
  %v921 = vmul.f32 %v909, %v920
  %v922 = vmul.f32 %v911, %v920
  %v923 = vmul.f32 %v913, %v920
  %v924 = vmul.f32 %v915, %v920
  %v925 = vadd.f32 %v904, %v921
  %v926 = vadd.f32 %v905, %v922
  %v927 = vadd.f32 %v906, %v923
  %v928 = vadd.f32 %v907, %v924
  %v929 = vld [vmem:[%s4 + $0xb] sm:$0x1]
  %v930 = vlaneseq
  %v931 = vshrl.u32 %v930, 7
  %v932 = vsub.s32 0, %v931
  %v933 = vrot.slane %v929, %v932
  %v934 = vmul.f32 %v592, %v933
  %v935 = vmul.f32 %v594, %v933
  %v936 = vmul.f32 %v596, %v933
  %v937 = vmul.f32 %v598, %v933
  %v938 = vadd.f32 %v925, %v934
  %v939 = vadd.f32 %v926, %v935
  %v940 = vadd.f32 %v927, %v936
  %v941 = vadd.f32 %v928, %v937
  %v942 = vld [vmem:[%s4 + $0xc] sm:$0x1]
  %v943 = vlaneseq
  %v944 = vshrl.u32 %v943, 7
  %v945 = vsub.s32 0, %v944
  %v946 = vrot.slane %v942, %v945
  %v947 = vmul.f32 %v579, %v946
  %v948 = vmul.f32 %v581, %v946
  %v949 = vmul.f32 %v584, %v946
  %v950 = vmul.f32 %v586, %v946
  %v951 = vadd.f32 %v938, %v947
  %v952 = vadd.f32 %v939, %v948
  %v953 = vadd.f32 %v940, %v949
  %v954 = vadd.f32 %v941, %v950
  %v955 = vld [vmem:[%s4 + $0xd] sm:$0x1]
  %v956 = vlaneseq
  %v957 = vshrl.u32 %v956, 7
  %v958 = vsub.s32 0, %v957
  %v959 = vrot.slane %v955, %v958
  %v960 = vmul.f32 %v626, %v959
  %v961 = vmul.f32 %v628, %v959
  %v962 = vmul.f32 %v630, %v959
  %v963 = vmul.f32 %v632, %v959
  %v964 = vadd.f32 %v951, %v960
  %v965 = vadd.f32 %v952, %v961
  %v966 = vadd.f32 %v953, %v962
  %v967 = vadd.f32 %v954, %v963
  %968 = vrot.lane.b32.xlu0 %v579, 112
  %v969 = vpop.permute.xlu0 %968
  %970 = vrot.lane.b32.xlu0 %v581, 112
  %v971 = vpop.permute.xlu0 %970
  %972 = vrot.lane.b32.xlu0 %v584, 112
  %v973 = vpop.permute.xlu0 %972
  %974 = vrot.lane.b32.xlu0 %v586, 112
  %v975 = vpop.permute.xlu0 %974
  %v976 = vld [vmem:[%s4 + $0xe] sm:$0x1]
  %v977 = vlaneseq
  %v978 = vshrl.u32 %v977, 7
  %v979 = vsub.s32 0, %v978
  %v980 = vrot.slane %v976, %v979
  %v981 = vmul.f32 %v969, %v980
  %v982 = vmul.f32 %v971, %v980
  %v983 = vmul.f32 %v973, %v980
  %v984 = vmul.f32 %v975, %v980
  %v985 = vadd.f32 %v964, %v981
  %v986 = vadd.f32 %v965, %v982
  %v987 = vadd.f32 %v966, %v983
  %v988 = vadd.f32 %v967, %v984
  %989 = vrot.lane.b32.xlu0 %v648, 16
  %v990 = vpop.permute.xlu0 %989
  %991 = vrot.lane.b32.xlu0 %v650, 16
  %v992 = vpop.permute.xlu0 %991
  %993 = vrot.lane.b32.xlu0 %v653, 16
  %v994 = vpop.permute.xlu0 %993
  %995 = vrot.lane.b32.xlu0 %v655, 16
  %v996 = vpop.permute.xlu0 %995
  %v997 = vld [vmem:[%s4 + $0xf] sm:$0x1]
  %v998 = vlaneseq
  %v999 = vshrl.u32 %v998, 7
  %v1000 = vsub.s32 0, %v999
  %v1001 = vrot.slane %v997, %v1000
  %v1002 = vmul.f32 %v990, %v1001
  %v1003 = vmul.f32 %v992, %v1001
  %v1004 = vmul.f32 %v994, %v1001
  %v1005 = vmul.f32 %v996, %v1001
  %v1006 = vadd.f32 %v985, %v1002
  %v1007 = vadd.f32 %v986, %v1003
  %v1008 = vadd.f32 %v987, %v1004
  %v1009 = vadd.f32 %v988, %v1005
  %v1010 = vld [vmem:[%s4 + $0x10] sm:$0x1]
  %v1011 = vlaneseq
  %v1012 = vshrl.u32 %v1011, 7
  %v1013 = vsub.s32 0, %v1012
  %v1014 = vrot.slane %v1010, %v1013
  %v1015 = vmul.f32 %v661, %v1014
  %v1016 = vmul.f32 %v663, %v1014
  %v1017 = vmul.f32 %v665, %v1014
  %v1018 = vmul.f32 %v667, %v1014
  %v1019 = vadd.f32 %v1006, %v1015
  %v1020 = vadd.f32 %v1007, %v1016
  %v1021 = vadd.f32 %v1008, %v1017
  %v1022 = vadd.f32 %v1009, %v1018
  %v1023 = vld [vmem:[%s4 + $0x11] sm:$0x1]
  %v1024 = vlaneseq
  %v1025 = vshrl.u32 %v1024, 7
  %v1026 = vsub.s32 0, %v1025
  %v1027 = vrot.slane %v1023, %v1026
  %v1028 = vmul.f32 %v648, %v1027
  %v1029 = vmul.f32 %v650, %v1027
  %v1030 = vmul.f32 %v653, %v1027
  %v1031 = vmul.f32 %v655, %v1027
  %v1032 = vadd.f32 %v1019, %v1028
  %v1033 = vadd.f32 %v1020, %v1029
  %v1034 = vadd.f32 %v1021, %v1030
  %v1035 = vadd.f32 %v1022, %v1031
  %v1036 = vld [vmem:[%s4 + $0x12] sm:$0x1]
  %v1037 = vlaneseq
  %v1038 = vshrl.u32 %v1037, 7
  %v1039 = vsub.s32 0, %v1038
  %v1040 = vrot.slane %v1036, %v1039
  %v1041 = vmul.f32 %v695, %v1040
  %v1042 = vmul.f32 %v697, %v1040
  %v1043 = vmul.f32 %v699, %v1040
  %v1044 = vmul.f32 %v701, %v1040
  %v1045 = vadd.f32 %v1032, %v1041
  %v1046 = vadd.f32 %v1033, %v1042
  %v1047 = vadd.f32 %v1034, %v1043
  %v1048 = vadd.f32 %v1035, %v1044
  %1049 = vrot.lane.b32.xlu0 %v648, 112
  %v1050 = vpop.permute.xlu0 %1049
  %1051 = vrot.lane.b32.xlu0 %v650, 112
  %v1052 = vpop.permute.xlu0 %1051
  %1053 = vrot.lane.b32.xlu0 %v653, 112
  %v1054 = vpop.permute.xlu0 %1053
  %1055 = vrot.lane.b32.xlu0 %v655, 112
  %v1056 = vpop.permute.xlu0 %1055
  %v1057 = vld [vmem:[%s4 + $0x13] sm:$0x1]
  %v1058 = vlaneseq
  %v1059 = vshrl.u32 %v1058, 7
  %v1060 = vsub.s32 0, %v1059
  %v1061 = vrot.slane %v1057, %v1060
  %v1062 = vmul.f32 %v1050, %v1061
  %v1063 = vmul.f32 %v1052, %v1061
  %v1064 = vmul.f32 %v1054, %v1061
  %v1065 = vmul.f32 %v1056, %v1061
  %v1066 = vadd.f32 %v1045, %v1062
  %v1067 = vadd.f32 %v1046, %v1063
  %v1068 = vadd.f32 %v1047, %v1064
  %v1069 = vadd.f32 %v1048, %v1065
  %vm1070 = vcmask 1041408
  %v1071 = vrot.slane %v496, 6
  %v1072 = vrot.slane %v497, 6
  %v1073 = vsel %vm1070, %v1071, %v1072
  %v1074 = vrot.slane %v498, 6
  %v1075 = vsel %vm1070, %v1072, %v1074
  %v1076 = vrot.slane %v499, 6
  %v1077 = vrot.slane %v500, 6
  %v1078 = vsel %vm1070, %v1076, %v1077
  %v1079 = vrot.slane %v501, 6
  %v1080 = vsel %vm1070, %v1077, %v1079
  %1085 = vrot.lane.b32.xlu0 %v1073, 16
  %v1086 = vpop.permute.xlu0 %1085
  %1087 = vrot.lane.b32.xlu0 %v1075, 16
  %v1088 = vpop.permute.xlu0 %1087
  %1089 = vrot.lane.b32.xlu0 %v1078, 16
  %v1090 = vpop.permute.xlu0 %1089
  %1091 = vrot.lane.b32.xlu0 %v1080, 16
  %v1092 = vpop.permute.xlu0 %1091
  %v1093 = vld [vmem:[%s4 + $0x14] sm:$0x1]
  %v1094 = vlaneseq
  %v1095 = vshrl.u32 %v1094, 7
  %v1096 = vsub.s32 0, %v1095
  %v1097 = vrot.slane %v1093, %v1096
  %v1098 = vmul.f32 %v1086, %v1097
  %v1099 = vmul.f32 %v1088, %v1097
  %v1100 = vmul.f32 %v1090, %v1097
  %v1101 = vmul.f32 %v1092, %v1097
  %v1102 = vadd.f32 %v1066, %v1098
  %v1103 = vadd.f32 %v1067, %v1099
  %v1104 = vadd.f32 %v1068, %v1100
  %v1105 = vadd.f32 %v1069, %v1101
  %1106 = vrot.lane.b32.xlu0 %v1073, 8
  %v1107 = vpop.permute.xlu0 %1106
  %1108 = vrot.lane.b32.xlu0 %v1075, 8
  %v1109 = vpop.permute.xlu0 %1108
  %1110 = vrot.lane.b32.xlu0 %v1078, 8
  %v1111 = vpop.permute.xlu0 %1110
  %1112 = vrot.lane.b32.xlu0 %v1080, 8
  %v1113 = vpop.permute.xlu0 %1112
  %v1114 = vld [vmem:[%s4 + $0x15] sm:$0x1]
  %v1115 = vlaneseq
  %v1116 = vshrl.u32 %v1115, 7
  %v1117 = vsub.s32 0, %v1116
  %v1118 = vrot.slane %v1114, %v1117
  %v1119 = vmul.f32 %v1107, %v1118
  %v1120 = vmul.f32 %v1109, %v1118
  %v1121 = vmul.f32 %v1111, %v1118
  %v1122 = vmul.f32 %v1113, %v1118
  %v1123 = vadd.f32 %v1102, %v1119
  %v1124 = vadd.f32 %v1103, %v1120
  %v1125 = vadd.f32 %v1104, %v1121
  %v1126 = vadd.f32 %v1105, %v1122
  %v1127 = vld [vmem:[%s4 + $0x16] sm:$0x1]
  %v1128 = vlaneseq
  %v1129 = vshrl.u32 %v1128, 7
  %v1130 = vsub.s32 0, %v1129
  %v1131 = vrot.slane %v1127, %v1130
  %v1132 = vmul.f32 %v1073, %v1131
  %v1133 = vmul.f32 %v1075, %v1131
  %v1134 = vmul.f32 %v1078, %v1131
  %v1135 = vmul.f32 %v1080, %v1131
  %v1136 = vadd.f32 %v1123, %v1132
  %v1137 = vadd.f32 %v1124, %v1133
  %v1138 = vadd.f32 %v1125, %v1134
  %v1139 = vadd.f32 %v1126, %v1135
  %1140 = vrot.lane.b32.xlu0 %v1073, 120
  %v1141 = vpop.permute.xlu0 %1140
  %1142 = vrot.lane.b32.xlu0 %v1075, 120
  %v1143 = vpop.permute.xlu0 %1142
  %1144 = vrot.lane.b32.xlu0 %v1078, 120
  %v1145 = vpop.permute.xlu0 %1144
  %1146 = vrot.lane.b32.xlu0 %v1080, 120
  %v1147 = vpop.permute.xlu0 %1146
  %v1148 = vld [vmem:[%s4 + $0x17] sm:$0x1]
  %v1149 = vlaneseq
  %v1150 = vshrl.u32 %v1149, 7
  %v1151 = vsub.s32 0, %v1150
  %v1152 = vrot.slane %v1148, %v1151
  %v1153 = vmul.f32 %v1141, %v1152
  %v1154 = vmul.f32 %v1143, %v1152
  %v1155 = vmul.f32 %v1145, %v1152
  %v1156 = vmul.f32 %v1147, %v1152
  %v1157 = vadd.f32 %v1136, %v1153
  %v1158 = vadd.f32 %v1137, %v1154
  %v1159 = vadd.f32 %v1138, %v1155
  %v1160 = vadd.f32 %v1139, %v1156
  %1161 = vrot.lane.b32.xlu0 %v1073, 112
  %v1162 = vpop.permute.xlu0 %1161
  %1163 = vrot.lane.b32.xlu0 %v1075, 112
  %v1164 = vpop.permute.xlu0 %1163
  %1165 = vrot.lane.b32.xlu0 %v1078, 112
  %v1166 = vpop.permute.xlu0 %1165
  %1167 = vrot.lane.b32.xlu0 %v1080, 112
  %v1168 = vpop.permute.xlu0 %1167
  %v1169 = vld [vmem:[%s4 + $0x18] sm:$0x1]
  %v1170 = vlaneseq
  %v1171 = vshrl.u32 %v1170, 7
  %v1172 = vsub.s32 0, %v1171
  %v1173 = vrot.slane %v1169, %v1172
  %v1174 = vmul.f32 %v1162, %v1173
  %v1175 = vmul.f32 %v1164, %v1173
  %v1176 = vmul.f32 %v1166, %v1173
  %v1177 = vmul.f32 %v1168, %v1173
  %v1178 = vadd.f32 %v1157, %v1174
  %v1179 = vadd.f32 %v1158, %v1175
  %v1180 = vadd.f32 %v1159, %v1176
  %v1181 = vadd.f32 %v1160, %v1177
  %v1182 = vld [vmem:[%s6] sm:$0x1]
  %v1183 = vlaneseq
  %v1184 = vshrl.u32 %v1183, 7
  %v1185 = vsub.s32 0, %v1184
  %v1186 = vrot.slane %v1182, %v1185
  %v1187 = vmul.f32 %v731, %v1186
  %v1188 = vmul.f32 %v733, %v1186
  %v1189 = vmul.f32 %v735, %v1186
  %v1190 = vmul.f32 %v737, %v1186
  %v1191 = vadd.f32 %v1187, 0.0
  %v1192 = vadd.f32 %v1188, 0.0
  %v1193 = vadd.f32 %v1189, 0.0
  %v1194 = vadd.f32 %v1190, 0.0
  %v1195 = vld [vmem:[%s6 + $0x1] sm:$0x1]
  %v1196 = vlaneseq
  %v1197 = vshrl.u32 %v1196, 7
  %v1198 = vsub.s32 0, %v1197
  %v1199 = vrot.slane %v1195, %v1198
  %v1200 = vmul.f32 %v718, %v1199
  %v1201 = vmul.f32 %v720, %v1199
  %v1202 = vmul.f32 %v723, %v1199
  %v1203 = vmul.f32 %v725, %v1199
  %v1204 = vadd.f32 %v1191, %v1200
  %v1205 = vadd.f32 %v1192, %v1201
  %v1206 = vadd.f32 %v1193, %v1202
  %v1207 = vadd.f32 %v1194, %v1203
  %v1208 = vld [vmem:[%s6 + $0x2] sm:$0x1]
  %v1209 = vlaneseq
  %v1210 = vshrl.u32 %v1209, 7
  %v1211 = vsub.s32 0, %v1210
  %v1212 = vrot.slane %v1208, %v1211
  %v1213 = vmul.f32 %v807, %v1212
  %v1214 = vmul.f32 %v809, %v1212
  %v1215 = vmul.f32 %v811, %v1212
  %v1216 = vmul.f32 %v813, %v1212
  %v1217 = vadd.f32 %v1204, %v1213
  %v1218 = vadd.f32 %v1205, %v1214
  %v1219 = vadd.f32 %v1206, %v1215
  %v1220 = vadd.f32 %v1207, %v1216
  %v1221 = vld [vmem:[%s6 + $0x3] sm:$0x1]
  %v1222 = vlaneseq
  %v1223 = vshrl.u32 %v1222, 7
  %v1224 = vsub.s32 0, %v1223
  %v1225 = vrot.slane %v1221, %v1224
  %v1226 = vmul.f32 %v909, %v1225
  %v1227 = vmul.f32 %v911, %v1225
  %v1228 = vmul.f32 %v913, %v1225
  %v1229 = vmul.f32 %v915, %v1225
  %v1230 = vadd.f32 %v1217, %v1226
  %v1231 = vadd.f32 %v1218, %v1227
  %v1232 = vadd.f32 %v1219, %v1228
  %v1233 = vadd.f32 %v1220, %v1229
  %v1234 = vld [vmem:[%s6 + $0x4] sm:$0x1]
  %v1235 = vlaneseq
  %v1236 = vshrl.u32 %v1235, 7
  %v1237 = vsub.s32 0, %v1236
  %v1238 = vrot.slane %v1234, %v1237
  %v1239 = vmul.f32 %v579, %v1238
  %v1240 = vmul.f32 %v581, %v1238
  %v1241 = vmul.f32 %v584, %v1238
  %v1242 = vmul.f32 %v586, %v1238
  %v1243 = vadd.f32 %v1230, %v1239
  %v1244 = vadd.f32 %v1231, %v1240
  %v1245 = vadd.f32 %v1232, %v1241
  %v1246 = vadd.f32 %v1233, %v1242
  %v1247 = vld [vmem:[%s6 + $0x5] sm:$0x1]
  %v1248 = vlaneseq
  %v1249 = vshrl.u32 %v1248, 7
  %v1250 = vsub.s32 0, %v1249
  %v1251 = vrot.slane %v1247, %v1250
  %v1252 = vmul.f32 %v969, %v1251
  %v1253 = vmul.f32 %v971, %v1251
  %v1254 = vmul.f32 %v973, %v1251
  %v1255 = vmul.f32 %v975, %v1251
  %v1256 = vadd.f32 %v1243, %v1252
  %v1257 = vadd.f32 %v1244, %v1253
  %v1258 = vadd.f32 %v1245, %v1254
  %v1259 = vadd.f32 %v1246, %v1255
  %v1260 = vld [vmem:[%s6 + $0x6] sm:$0x1]
  %v1261 = vlaneseq
  %v1262 = vshrl.u32 %v1261, 7
  %v1263 = vsub.s32 0, %v1262
  %v1264 = vrot.slane %v1260, %v1263
  %v1265 = vmul.f32 %v1086, %v1264
  %v1266 = vmul.f32 %v1088, %v1264
  %v1267 = vmul.f32 %v1090, %v1264
  %v1268 = vmul.f32 %v1092, %v1264
  %v1269 = vadd.f32 %v1256, %v1265
  %v1270 = vadd.f32 %v1257, %v1266
  %v1271 = vadd.f32 %v1258, %v1267
  %v1272 = vadd.f32 %v1259, %v1268
  %v1273 = vld [vmem:[%s6 + $0x7] sm:$0x1]
  %v1274 = vlaneseq
  %v1275 = vshrl.u32 %v1274, 7
  %v1276 = vsub.s32 0, %v1275
  %v1277 = vrot.slane %v1273, %v1276
  %v1278 = vmul.f32 %v1073, %v1277
  %v1279 = vmul.f32 %v1075, %v1277
  %v1280 = vmul.f32 %v1078, %v1277
  %v1281 = vmul.f32 %v1080, %v1277
  %v1282 = vadd.f32 %v1269, %v1278
  %v1283 = vadd.f32 %v1270, %v1279
  %v1284 = vadd.f32 %v1271, %v1280
  %v1285 = vadd.f32 %v1272, %v1281
  %v1286 = vld [vmem:[%s6 + $0x8] sm:$0x1]
  %v1287 = vlaneseq
  %v1288 = vshrl.u32 %v1287, 7
  %v1289 = vsub.s32 0, %v1288
  %v1290 = vrot.slane %v1286, %v1289
  %v1291 = vmul.f32 %v1162, %v1290
  %v1292 = vmul.f32 %v1164, %v1290
  %v1293 = vmul.f32 %v1166, %v1290
  %v1294 = vmul.f32 %v1168, %v1290
  %v1295 = vadd.f32 %v1282, %v1291
  %v1296 = vadd.f32 %v1283, %v1292
  %v1297 = vadd.f32 %v1284, %v1293
  %v1298 = vadd.f32 %v1285, %v1294
  %1299 = vrot.lane.b32.xlu0 %v496, 32
  %v1300 = vpop.permute.xlu0 %1299
  %1301 = vrot.lane.b32.xlu0 %v497, 32
  %v1302 = vpop.permute.xlu0 %1301
  %1303 = vrot.lane.b32.xlu0 %v499, 32
  %v1304 = vpop.permute.xlu0 %1303
  %1305 = vrot.lane.b32.xlu0 %v500, 32
  %v1306 = vpop.permute.xlu0 %1305
  %v1307 = vld [vmem:[%s7] sm:$0x1]
  %v1308 = vlaneseq
  %v1309 = vshrl.u32 %v1308, 7
  %v1310 = vsub.s32 0, %v1309
  %v1311 = vrot.slane %v1307, %v1310
  %v1312 = vmul.f32 %v1300, %v1311
  %v1313 = vmul.f32 %v1302, %v1311
  %v1314 = vmul.f32 %v1304, %v1311
  %v1315 = vmul.f32 %v1306, %v1311
  %v1316 = vadd.f32 %v1312, 0.0
  %v1317 = vadd.f32 %v1313, 0.0
  %v1318 = vadd.f32 %v1314, 0.0
  %v1319 = vadd.f32 %v1315, 0.0
  %1320 = vrot.lane.b32.xlu0 %v496, 16
  %v1321 = vpop.permute.xlu0 %1320
  %1322 = vrot.lane.b32.xlu0 %v497, 16
  %v1323 = vpop.permute.xlu0 %1322
  %1324 = vrot.lane.b32.xlu0 %v499, 16
  %v1325 = vpop.permute.xlu0 %1324
  %1326 = vrot.lane.b32.xlu0 %v500, 16
  %v1327 = vpop.permute.xlu0 %1326
  %v1328 = vld [vmem:[%s7 + $0x1] sm:$0x1]
  %v1329 = vlaneseq
  %v1330 = vshrl.u32 %v1329, 7
  %v1331 = vsub.s32 0, %v1330
  %v1332 = vrot.slane %v1328, %v1331
  %v1333 = vmul.f32 %v1321, %v1332
  %v1334 = vmul.f32 %v1323, %v1332
  %v1335 = vmul.f32 %v1325, %v1332
  %v1336 = vmul.f32 %v1327, %v1332
  %v1337 = vadd.f32 %v1316, %v1333
  %v1338 = vadd.f32 %v1317, %v1334
  %v1339 = vadd.f32 %v1318, %v1335
  %v1340 = vadd.f32 %v1319, %v1336
  %v1341 = vld [vmem:[%s7 + $0x2] sm:$0x1]
  %v1342 = vlaneseq
  %v1343 = vshrl.u32 %v1342, 7
  %v1344 = vsub.s32 0, %v1343
  %v1345 = vrot.slane %v1341, %v1344
  %v1346 = vmul.f32 %v496, %v1345
  %v1347 = vmul.f32 %v497, %v1345
  %v1348 = vmul.f32 %v499, %v1345
  %v1349 = vmul.f32 %v500, %v1345
  %v1350 = vadd.f32 %v1337, %v1346
  %v1351 = vadd.f32 %v1338, %v1347
  %v1352 = vadd.f32 %v1339, %v1348
  %v1353 = vadd.f32 %v1340, %v1349
  %1354 = vrot.lane.b32.xlu0 %v496, 112
  %v1355 = vpop.permute.xlu0 %1354
  %1356 = vrot.lane.b32.xlu0 %v497, 112
  %v1357 = vpop.permute.xlu0 %1356
  %1358 = vrot.lane.b32.xlu0 %v499, 112
  %v1359 = vpop.permute.xlu0 %1358
  %1360 = vrot.lane.b32.xlu0 %v500, 112
  %v1361 = vpop.permute.xlu0 %1360
  %v1362 = vld [vmem:[%s7 + $0x3] sm:$0x1]
  %v1363 = vlaneseq
  %v1364 = vshrl.u32 %v1363, 7
  %v1365 = vsub.s32 0, %v1364
  %v1366 = vrot.slane %v1362, %v1365
  %v1367 = vmul.f32 %v1355, %v1366
  %v1368 = vmul.f32 %v1357, %v1366
  %v1369 = vmul.f32 %v1359, %v1366
  %v1370 = vmul.f32 %v1361, %v1366
  %v1371 = vadd.f32 %v1350, %v1367
  %v1372 = vadd.f32 %v1351, %v1368
  %v1373 = vadd.f32 %v1352, %v1369
  %v1374 = vadd.f32 %v1353, %v1370
  %1375 = vrot.lane.b32.xlu0 %v496, 96
  %v1376 = vpop.permute.xlu0 %1375
  %1377 = vrot.lane.b32.xlu0 %v497, 96
  %v1378 = vpop.permute.xlu0 %1377
  %1379 = vrot.lane.b32.xlu0 %v499, 96
  %v1380 = vpop.permute.xlu0 %1379
  %1381 = vrot.lane.b32.xlu0 %v500, 96
  %v1382 = vpop.permute.xlu0 %1381
  %v1383 = vld [vmem:[%s7 + $0x4] sm:$0x1]
  %v1384 = vlaneseq
  %v1385 = vshrl.u32 %v1384, 7
  %v1386 = vsub.s32 0, %v1385
  %v1387 = vrot.slane %v1383, %v1386
  %v1388 = vmul.f32 %v1376, %v1387
  %v1389 = vmul.f32 %v1378, %v1387
  %v1390 = vmul.f32 %v1380, %v1387
  %v1391 = vmul.f32 %v1382, %v1387
  %v1392 = vadd.f32 %v1371, %v1388
  %v1393 = vadd.f32 %v1372, %v1389
  %v1394 = vadd.f32 %v1373, %v1390
  %v1395 = vadd.f32 %v1374, %v1391
  %1396 = vrot.lane.b32.xlu0 %v718, 32
  %v1397 = vpop.permute.xlu0 %1396
  %1398 = vrot.lane.b32.xlu0 %v720, 32
  %v1399 = vpop.permute.xlu0 %1398
  %1400 = vrot.lane.b32.xlu0 %v723, 32
  %v1401 = vpop.permute.xlu0 %1400
  %1402 = vrot.lane.b32.xlu0 %v725, 32
  %v1403 = vpop.permute.xlu0 %1402
  %v1404 = vld [vmem:[%s7 + $0x5] sm:$0x1]
  %v1405 = vlaneseq
  %v1406 = vshrl.u32 %v1405, 7
  %v1407 = vsub.s32 0, %v1406
  %v1408 = vrot.slane %v1404, %v1407
  %v1409 = vmul.f32 %v1397, %v1408
  %v1410 = vmul.f32 %v1399, %v1408
  %v1411 = vmul.f32 %v1401, %v1408
  %v1412 = vmul.f32 %v1403, %v1408
  %v1413 = vadd.f32 %v1392, %v1409
  %v1414 = vadd.f32 %v1393, %v1410
  %v1415 = vadd.f32 %v1394, %v1411
  %v1416 = vadd.f32 %v1395, %v1412
  %v1417 = vld [vmem:[%s7 + $0x6] sm:$0x1]
  %v1418 = vlaneseq
  %v1419 = vshrl.u32 %v1418, 7
  %v1420 = vsub.s32 0, %v1419
  %v1421 = vrot.slane %v1417, %v1420
  %v1422 = vmul.f32 %v731, %v1421
  %v1423 = vmul.f32 %v733, %v1421
  %v1424 = vmul.f32 %v735, %v1421
  %v1425 = vmul.f32 %v737, %v1421
  %v1426 = vadd.f32 %v1413, %v1422
  %v1427 = vadd.f32 %v1414, %v1423
  %v1428 = vadd.f32 %v1415, %v1424
  %v1429 = vadd.f32 %v1416, %v1425
  %v1430 = vld [vmem:[%s7 + $0x7] sm:$0x1]
  %v1431 = vlaneseq
  %v1432 = vshrl.u32 %v1431, 7
  %v1433 = vsub.s32 0, %v1432
  %v1434 = vrot.slane %v1430, %v1433
  %v1435 = vmul.f32 %v718, %v1434
  %v1436 = vmul.f32 %v720, %v1434
  %v1437 = vmul.f32 %v723, %v1434
  %v1438 = vmul.f32 %v725, %v1434
  %v1439 = vadd.f32 %v1426, %v1435
  %v1440 = vadd.f32 %v1427, %v1436
  %v1441 = vadd.f32 %v1428, %v1437
  %v1442 = vadd.f32 %v1429, %v1438
  %v1443 = vld [vmem:[%s7 + $0x8] sm:$0x1]
  %v1444 = vlaneseq
  %v1445 = vshrl.u32 %v1444, 7
  %v1446 = vsub.s32 0, %v1445
  %v1447 = vrot.slane %v1443, %v1446
  %v1448 = vmul.f32 %v807, %v1447
  %v1449 = vmul.f32 %v809, %v1447
  %v1450 = vmul.f32 %v811, %v1447
  %v1451 = vmul.f32 %v813, %v1447
  %v1452 = vadd.f32 %v1439, %v1448
  %v1453 = vadd.f32 %v1440, %v1449
  %v1454 = vadd.f32 %v1441, %v1450
  %v1455 = vadd.f32 %v1442, %v1451
  %1456 = vrot.lane.b32.xlu0 %v718, 96
  %v1457 = vpop.permute.xlu0 %1456
  %1458 = vrot.lane.b32.xlu0 %v720, 96
  %v1459 = vpop.permute.xlu0 %1458
  %1460 = vrot.lane.b32.xlu0 %v723, 96
  %v1461 = vpop.permute.xlu0 %1460
  %1462 = vrot.lane.b32.xlu0 %v725, 96
  %v1463 = vpop.permute.xlu0 %1462
  %v1464 = vld [vmem:[%s7 + $0x9] sm:$0x1]
  %v1465 = vlaneseq
  %v1466 = vshrl.u32 %v1465, 7
  %v1467 = vsub.s32 0, %v1466
  %v1468 = vrot.slane %v1464, %v1467
  %v1469 = vmul.f32 %v1457, %v1468
  %v1470 = vmul.f32 %v1459, %v1468
  %v1471 = vmul.f32 %v1461, %v1468
  %v1472 = vmul.f32 %v1463, %v1468
  %v1473 = vadd.f32 %v1452, %v1469
  %v1474 = vadd.f32 %v1453, %v1470
  %v1475 = vadd.f32 %v1454, %v1471
  %v1476 = vadd.f32 %v1455, %v1472
  %1477 = vrot.lane.b32.xlu0 %v579, 32
  %v1478 = vpop.permute.xlu0 %1477
  %1479 = vrot.lane.b32.xlu0 %v581, 32
  %v1480 = vpop.permute.xlu0 %1479
  %1481 = vrot.lane.b32.xlu0 %v584, 32
  %v1482 = vpop.permute.xlu0 %1481
  %1483 = vrot.lane.b32.xlu0 %v586, 32
  %v1484 = vpop.permute.xlu0 %1483
  %v1485 = vld [vmem:[%s7 + $0xa] sm:$0x1]
  %v1486 = vlaneseq
  %v1487 = vshrl.u32 %v1486, 7
  %v1488 = vsub.s32 0, %v1487
  %v1489 = vrot.slane %v1485, %v1488
  %v1490 = vmul.f32 %v1478, %v1489
  %v1491 = vmul.f32 %v1480, %v1489
  %v1492 = vmul.f32 %v1482, %v1489
  %v1493 = vmul.f32 %v1484, %v1489
  %v1494 = vadd.f32 %v1473, %v1490
  %v1495 = vadd.f32 %v1474, %v1491
  %v1496 = vadd.f32 %v1475, %v1492
  %v1497 = vadd.f32 %v1476, %v1493
  %v1498 = vld [vmem:[%s7 + $0xb] sm:$0x1]
  %v1499 = vlaneseq
  %v1500 = vshrl.u32 %v1499, 7
  %v1501 = vsub.s32 0, %v1500
  %v1502 = vrot.slane %v1498, %v1501
  %v1503 = vmul.f32 %v909, %v1502
  %v1504 = vmul.f32 %v911, %v1502
  %v1505 = vmul.f32 %v913, %v1502
  %v1506 = vmul.f32 %v915, %v1502
  %v1507 = vadd.f32 %v1494, %v1503
  %v1508 = vadd.f32 %v1495, %v1504
  %v1509 = vadd.f32 %v1496, %v1505
  %v1510 = vadd.f32 %v1497, %v1506
  %v1511 = vld [vmem:[%s7 + $0xc] sm:$0x1]
  %v1512 = vlaneseq
  %v1513 = vshrl.u32 %v1512, 7
  %v1514 = vsub.s32 0, %v1513
  %v1515 = vrot.slane %v1511, %v1514
  %v1516 = vmul.f32 %v579, %v1515
  %v1517 = vmul.f32 %v581, %v1515
  %v1518 = vmul.f32 %v584, %v1515
  %v1519 = vmul.f32 %v586, %v1515
  %v1520 = vadd.f32 %v1507, %v1516
  %v1521 = vadd.f32 %v1508, %v1517
  %v1522 = vadd.f32 %v1509, %v1518
  %v1523 = vadd.f32 %v1510, %v1519
  %v1524 = vld [vmem:[%s7 + $0xd] sm:$0x1]
  %v1525 = vlaneseq
  %v1526 = vshrl.u32 %v1525, 7
  %v1527 = vsub.s32 0, %v1526
  %v1528 = vrot.slane %v1524, %v1527
  %v1529 = vmul.f32 %v969, %v1528
  %v1530 = vmul.f32 %v971, %v1528
  %v1531 = vmul.f32 %v973, %v1528
  %v1532 = vmul.f32 %v975, %v1528
  %v1533 = vadd.f32 %v1520, %v1529
  %v1534 = vadd.f32 %v1521, %v1530
  %v1535 = vadd.f32 %v1522, %v1531
  %v1536 = vadd.f32 %v1523, %v1532
  %1537 = vrot.lane.b32.xlu0 %v579, 96
  %v1538 = vpop.permute.xlu0 %1537
  %1539 = vrot.lane.b32.xlu0 %v581, 96
  %v1540 = vpop.permute.xlu0 %1539
  %1541 = vrot.lane.b32.xlu0 %v584, 96
  %v1542 = vpop.permute.xlu0 %1541
  %1543 = vrot.lane.b32.xlu0 %v586, 96
  %v1544 = vpop.permute.xlu0 %1543
  %v1545 = vld [vmem:[%s7 + $0xe] sm:$0x1]
  %v1546 = vlaneseq
  %v1547 = vshrl.u32 %v1546, 7
  %v1548 = vsub.s32 0, %v1547
  %v1549 = vrot.slane %v1545, %v1548
  %v1550 = vmul.f32 %v1538, %v1549
  %v1551 = vmul.f32 %v1540, %v1549
  %v1552 = vmul.f32 %v1542, %v1549
  %v1553 = vmul.f32 %v1544, %v1549
  %v1554 = vadd.f32 %v1533, %v1550
  %v1555 = vadd.f32 %v1534, %v1551
  %v1556 = vadd.f32 %v1535, %v1552
  %v1557 = vadd.f32 %v1536, %v1553
  %1558 = vrot.lane.b32.xlu0 %v1073, 32
  %v1559 = vpop.permute.xlu0 %1558
  %1560 = vrot.lane.b32.xlu0 %v1075, 32
  %v1561 = vpop.permute.xlu0 %1560
  %1562 = vrot.lane.b32.xlu0 %v1078, 32
  %v1563 = vpop.permute.xlu0 %1562
  %1564 = vrot.lane.b32.xlu0 %v1080, 32
  %v1565 = vpop.permute.xlu0 %1564
  %v1566 = vld [vmem:[%s7 + $0xf] sm:$0x1]
  %v1567 = vlaneseq
  %v1568 = vshrl.u32 %v1567, 7
  %v1569 = vsub.s32 0, %v1568
  %v1570 = vrot.slane %v1566, %v1569
  %v1571 = vmul.f32 %v1559, %v1570
  %v1572 = vmul.f32 %v1561, %v1570
  %v1573 = vmul.f32 %v1563, %v1570
  %v1574 = vmul.f32 %v1565, %v1570
  %v1575 = vadd.f32 %v1554, %v1571
  %v1576 = vadd.f32 %v1555, %v1572
  %v1577 = vadd.f32 %v1556, %v1573
  %v1578 = vadd.f32 %v1557, %v1574
  %v1579 = vld [vmem:[%s7 + $0x10] sm:$0x1]
  %v1580 = vlaneseq
  %v1581 = vshrl.u32 %v1580, 7
  %v1582 = vsub.s32 0, %v1581
  %v1583 = vrot.slane %v1579, %v1582
  %v1584 = vmul.f32 %v1086, %v1583
  %v1585 = vmul.f32 %v1088, %v1583
  %v1586 = vmul.f32 %v1090, %v1583
  %v1587 = vmul.f32 %v1092, %v1583
  %v1588 = vadd.f32 %v1575, %v1584
  %v1589 = vadd.f32 %v1576, %v1585
  %v1590 = vadd.f32 %v1577, %v1586
  %v1591 = vadd.f32 %v1578, %v1587
  %v1592 = vld [vmem:[%s7 + $0x11] sm:$0x1]
  %v1593 = vlaneseq
  %v1594 = vshrl.u32 %v1593, 7
  %v1595 = vsub.s32 0, %v1594
  %v1596 = vrot.slane %v1592, %v1595
  %v1597 = vmul.f32 %v1073, %v1596
  %v1598 = vmul.f32 %v1075, %v1596
  %v1599 = vmul.f32 %v1078, %v1596
  %v1600 = vmul.f32 %v1080, %v1596
  %v1601 = vadd.f32 %v1588, %v1597
  %v1602 = vadd.f32 %v1589, %v1598
  %v1603 = vadd.f32 %v1590, %v1599
  %v1604 = vadd.f32 %v1591, %v1600
  %v1605 = vld [vmem:[%s7 + $0x12] sm:$0x1]
  %v1606 = vlaneseq
  %v1607 = vshrl.u32 %v1606, 7
  %v1608 = vsub.s32 0, %v1607
  %v1609 = vrot.slane %v1605, %v1608
  %v1610 = vmul.f32 %v1162, %v1609
  %v1611 = vmul.f32 %v1164, %v1609
  %v1612 = vmul.f32 %v1166, %v1609
  %v1613 = vmul.f32 %v1168, %v1609
  %v1614 = vadd.f32 %v1601, %v1610
  %v1615 = vadd.f32 %v1602, %v1611
  %v1616 = vadd.f32 %v1603, %v1612
  %v1617 = vadd.f32 %v1604, %v1613
  %1618 = vrot.lane.b32.xlu0 %v1073, 96
  %v1619 = vpop.permute.xlu0 %1618
  %1620 = vrot.lane.b32.xlu0 %v1075, 96
  %v1621 = vpop.permute.xlu0 %1620
  %1622 = vrot.lane.b32.xlu0 %v1078, 96
  %v1623 = vpop.permute.xlu0 %1622
  %1624 = vrot.lane.b32.xlu0 %v1080, 96
  %v1625 = vpop.permute.xlu0 %1624
  %v1626 = vld [vmem:[%s7 + $0x13] sm:$0x1]
  %v1627 = vlaneseq
  %v1628 = vshrl.u32 %v1627, 7
  %v1629 = vsub.s32 0, %v1628
  %v1630 = vrot.slane %v1626, %v1629
  %v1631 = vmul.f32 %v1619, %v1630
  %v1632 = vmul.f32 %v1621, %v1630
  %v1633 = vmul.f32 %v1623, %v1630
  %v1634 = vmul.f32 %v1625, %v1630
  %v1635 = vadd.f32 %v1614, %v1631
  %v1636 = vadd.f32 %v1615, %v1632
  %v1637 = vadd.f32 %v1616, %v1633
  %v1638 = vadd.f32 %v1617, %v1634
  %1639 = vrot.lane.b32.xlu0 %v498, 32
  %v1640 = vpop.permute.xlu0 %1639
  %1641 = vrot.lane.b32.xlu0 %v501, 32
  %v1642 = vpop.permute.xlu0 %1641
  %v1643 = vld [vmem:[%s7 + $0x14] sm:$0x1]
  %v1644 = vlaneseq
  %v1645 = vshrl.u32 %v1644, 7
  %v1646 = vsub.s32 0, %v1645
  %v1647 = vrot.slane %v1643, %v1646
  %v1648 = vmul.f32 %v1302, %v1647
  %v1649 = vmul.f32 %v1640, %v1647
  %v1650 = vmul.f32 %v1306, %v1647
  %v1651 = vmul.f32 %v1642, %v1647
  %v1652 = vadd.f32 %v1635, %v1648
  %v1653 = vadd.f32 %v1636, %v1649
  %v1654 = vadd.f32 %v1637, %v1650
  %v1655 = vadd.f32 %v1638, %v1651
  %1656 = vrot.lane.b32.xlu0 %v498, 16
  %v1657 = vpop.permute.xlu0 %1656
  %1658 = vrot.lane.b32.xlu0 %v501, 16
  %v1659 = vpop.permute.xlu0 %1658
  %v1660 = vld [vmem:[%s7 + $0x15] sm:$0x1]
  %v1661 = vlaneseq
  %v1662 = vshrl.u32 %v1661, 7
  %v1663 = vsub.s32 0, %v1662
  %v1664 = vrot.slane %v1660, %v1663
  %v1665 = vmul.f32 %v1323, %v1664
  %v1666 = vmul.f32 %v1657, %v1664
  %v1667 = vmul.f32 %v1327, %v1664
  %v1668 = vmul.f32 %v1659, %v1664
  %v1669 = vadd.f32 %v1652, %v1665
  %v1670 = vadd.f32 %v1653, %v1666
  %v1671 = vadd.f32 %v1654, %v1667
  %v1672 = vadd.f32 %v1655, %v1668
  %v1673 = vld [vmem:[%s7 + $0x16] sm:$0x1]
  %v1674 = vlaneseq
  %v1675 = vshrl.u32 %v1674, 7
  %v1676 = vsub.s32 0, %v1675
  %v1677 = vrot.slane %v1673, %v1676
  %v1678 = vmul.f32 %v497, %v1677
  %v1679 = vmul.f32 %v498, %v1677
  %v1680 = vmul.f32 %v500, %v1677
  %v1681 = vmul.f32 %v501, %v1677
  %v1682 = vadd.f32 %v1669, %v1678
  %v1683 = vadd.f32 %v1670, %v1679
  %v1684 = vadd.f32 %v1671, %v1680
  %v1685 = vadd.f32 %v1672, %v1681
  %1686 = vrot.lane.b32.xlu0 %v498, 112
  %v1687 = vpop.permute.xlu0 %1686
  %1688 = vrot.lane.b32.xlu0 %v501, 112
  %v1689 = vpop.permute.xlu0 %1688
  %v1690 = vld [vmem:[%s7 + $0x17] sm:$0x1]
  %v1691 = vlaneseq
  %v1692 = vshrl.u32 %v1691, 7
  %v1693 = vsub.s32 0, %v1692
  %v1694 = vrot.slane %v1690, %v1693
  %v1695 = vmul.f32 %v1357, %v1694
  %v1696 = vmul.f32 %v1687, %v1694
  %v1697 = vmul.f32 %v1361, %v1694
  %v1698 = vmul.f32 %v1689, %v1694
  %v1699 = vadd.f32 %v1682, %v1695
  %v1700 = vadd.f32 %v1683, %v1696
  %v1701 = vadd.f32 %v1684, %v1697
  %v1702 = vadd.f32 %v1685, %v1698
  %1703 = vrot.lane.b32.xlu0 %v498, 96
  %v1704 = vpop.permute.xlu0 %1703
  %1705 = vrot.lane.b32.xlu0 %v501, 96
  %v1706 = vpop.permute.xlu0 %1705
  %v1707 = vld [vmem:[%s7 + $0x18] sm:$0x1]
  %v1708 = vlaneseq
  %v1709 = vshrl.u32 %v1708, 7
  %v1710 = vsub.s32 0, %v1709
  %v1711 = vrot.slane %v1707, %v1710
  %v1712 = vmul.f32 %v1378, %v1711
  %v1713 = vmul.f32 %v1704, %v1711
  %v1714 = vmul.f32 %v1382, %v1711
  %v1715 = vmul.f32 %v1706, %v1711
  %v1716 = vadd.f32 %v1699, %v1712
  %v1717 = vadd.f32 %v1700, %v1713
  %v1718 = vadd.f32 %v1701, %v1714
  %v1719 = vadd.f32 %v1702, %v1715
  %s1720 = sld [smem:[#allocation4 + $0x6]]
  %v1721 = vpack.c.bf16 %v1296, %v1295
  %v1722 = vpack.c.bf16 %v1298, %v1297
  %v1723 = vld [vmem:[%s12] sm:$0xf]
  %v1724 = vld [vmem:[%s12 + $0x4] sm:$0xf]
  %v1725 = vld [vmem:[%s12 + $0x8] sm:$0xf]
  %v1726 = vld [vmem:[%s12 + $0xc] sm:$0xf]
  %v1727 = vld [vmem:[%s12 + $0x10] sm:$0xf]
  %v1728 = vld [vmem:[%s12 + $0x14] sm:$0xf]
  %v1729 = vld [vmem:[%s12 + $0x18] sm:$0xf]
  %v1730 = vld [vmem:[%s12 + $0x1c] sm:$0xf]
  %v1731 = vld [vmem:[%s12 + $0x20] sm:$0xf]
  %v1732 = vld [vmem:[%s12 + $0x24] sm:$0xf]
  %v1733 = vld [vmem:[%s12 + $0x28] sm:$0xf]
  %v1734 = vld [vmem:[%s12 + $0x2c] sm:$0xf]
  %v1735 = vld [vmem:[%s12 + $0x30] sm:$0xf]
  %v1736 = vld [vmem:[%s12 + $0x34] sm:$0xf]
  %v1737 = vld [vmem:[%s12 + $0x38] sm:$0xf]
  %v1738 = vld [vmem:[%s12 + $0x3c] sm:$0xf]
  %v1755 = vunpack.c.l.b16 %v1723
  %v1756 = vunpack.c.l.b16 %v1724
  %v1757 = vunpack.c.l.b16 %v1725
  %v1758 = vunpack.c.l.b16 %v1726
  %v1759 = vunpack.c.l.b16 %v1727
  %v1760 = vunpack.c.l.b16 %v1728
  %v1761 = vunpack.c.l.b16 %v1729
  %v1762 = vunpack.c.l.b16 %v1730
  %v1763 = vunpack.c.l.b16 %v1731
  %v1764 = vunpack.c.l.b16 %v1732
  %v1765 = vunpack.c.l.b16 %v1733
  %v1766 = vunpack.c.l.b16 %v1734
  %v1767 = vunpack.c.l.b16 %v1735
  %v1768 = vunpack.c.l.b16 %v1736
  %v1769 = vunpack.c.l.b16 %v1737
  %v1770 = vunpack.c.l.b16 %v1738
  %v1771 = vpack.c.b16 %v1756, %v1755
  %v1772 = vpack.c.b16 %v1758, %v1757
  %v1773 = vpack.c.b16 %v1760, %v1759
  %v1774 = vpack.c.b16 %v1762, %v1761
  %v1775 = vpack.c.b16 %v1764, %v1763
  %v1776 = vpack.c.b16 %v1766, %v1765
  %v1777 = vpack.c.b16 %v1768, %v1767
  %v1778 = vpack.c.b16 %v1770, %v1769
  %1787 = vmatprep.subr.bf16.mxu0 0
  %1788 = vmatpush1.bf16.msra.mxu0 %v1778
  %1789 = vmatprep.subr.bf16.mxu0 0
  %1790 = vmatpush1.bf16.msra.mxu0 %v1777
  %1791 = vmatprep.subr.bf16.mxu0 0
  %1792 = vmatpush1.bf16.msra.mxu0 %v1776
  %1793 = vmatprep.subr.bf16.mxu0 0
  %1794 = vmatpush1.bf16.msra.mxu0 %v1775
  %1795 = vmatprep.subr.bf16.mxu0 0
  %1796 = vmatpush1.bf16.msra.mxu0 %v1774
  %1797 = vmatprep.subr.bf16.mxu0 0
  %1798 = vmatpush1.bf16.msra.mxu0 %v1773
  %1799 = vmatprep.subr.bf16.mxu0 0
  %1800 = vmatpush1.bf16.msra.mxu0 %v1772
  %1801 = vmatprep.subr.bf16.mxu0 0
  %1802 = vmatpush1.bf16.msra.mxu0 %v1771
  %1803 = vmatprep.subr.bf16.mxu0 0
  %1804 = vmatpush2.bf16.msra.mxu0 0
  %1805 = vmatprep.subr.bf16.mxu0 0
  %1806 = vmatpush2.bf16.msra.mxu0 0
  %1807 = vmatprep.subr.bf16.mxu0 0
  %1808 = vmatpush2.bf16.msra.mxu0 0
  %1809 = vmatprep.subr.bf16.mxu0 0
  %1810 = vmatpush2.bf16.msra.mxu0 0
  %1811 = vmatprep.subr.bf16.mxu0 0
  %1812 = vmatpush2.bf16.msra.mxu0 0
  %1813 = vmatprep.subr.bf16.mxu0 0
  %1814 = vmatpush2.bf16.msra.mxu0 0
  %1815 = vmatprep.subr.bf16.mxu0 0
  %1816 = vmatpush2.bf16.msra.mxu0 0
  %1817 = vmatprep.subr.bf16.mxu0 0
  %1818 = vmatpush2.bf16.msra.mxu0 0
  %1819 = vmatprep.mubr.bf16.mxu0 0
  %1820 = vmatmul.mubr.bf16.gmra.mxu0 %v1721
  %v1821 = vpop.f32.mrf.mxu0
  %v1822 = vadd.f32 0.0, %v1821
  %v1823 = vpop.f32.mrf.mxu0
  %v1824 = vpop.f32.mrf.mxu0
  %v1825 = vadd.f32 0.0, %v1824
  %v1826 = vpop.f32.mrf.mxu0
  %1827 = vmatprep.mubr.bf16.mxu0 0
  %1828 = vmatmul.mubr.bf16.gmra.mxu0 %v1722
  %v1829 = vpop.f32.mrf.mxu0
  %v1830 = vadd.f32 0.0, %v1829
  %v1831 = vpop.f32.mrf.mxu0
  %v1832 = vpop.f32.mrf.mxu0
  %v1833 = vadd.f32 0.0, %v1832
  %v1834 = vpop.f32.mrf.mxu0
  %1835 = vdwg.mxu0
  %v1836 = vadd.f32 %v1822, %v1825
  %v1837 = vadd.f32 %v1836, %v1830
  %v1838 = vadd.f32 %v1837, %v1833
  %v1839 = vrot.slane %v1838, 4
  %v1840 = vadd.f32 %v1838, %v1839
  %v1841 = vrot.slane %v1840, 2
  %v1842 = vadd.f32 %v1840, %v1841
  %v1843 = vrot.slane %v1842, 1
  %v1844 = vadd.f32 %v1842, %v1843
  %1845 = vrot.lane.b32.xlu0 %v1844, 8
  %v1846 = vpop.permute.xlu0 %1845
  %v1847 = vadd.f32 %v1844, %v1846
  %1848 = vrot.lane.b32.xlu0 %v1847, 16
  %v1849 = vpop.permute.xlu0 %1848
  %v1850 = vadd.f32 %v1847, %v1849
  %1851 = vrot.lane.b32.xlu0 %v1850, 32
  %v1852 = vpop.permute.xlu0 %1851
  %v1853 = vadd.f32 %v1850, %v1852
  %1854 = vrot.lane.b32.xlu0 %v1853, 64
  %v1855 = vpop.permute.xlu0 %1854
  %v1856 = vadd.f32 %v1853, %v1855
  %v1857 = vmul.f32 %v1856, 0.001953125
  %v1858 = vlaneseq
  %v1859 = vshrl.u32 %v1858, 7
  %v1860 = vsub.s32 0, %v1859
  %v1861 = vrot.slane %v1857, %v1860
  %v1862 = vsub.f32 %v1822, %v1861
  %v1863 = vsub.f32 %v1825, %v1861
  %v1864 = vsub.f32 %v1830, %v1861
  %v1865 = vsub.f32 %v1833, %v1861
  %v1866 = vmul.f32 %v1862, %v1862
  %v1867 = vmul.f32 %v1863, %v1863
  %v1868 = vmul.f32 %v1864, %v1864
  %v1869 = vmul.f32 %v1865, %v1865
  %v1870 = vadd.f32 %v1866, %v1867
  %v1871 = vadd.f32 %v1870, %v1868
  %v1872 = vadd.f32 %v1871, %v1869
  %v1873 = vrot.slane %v1872, 4
  %v1874 = vadd.f32 %v1872, %v1873
  %v1875 = vrot.slane %v1874, 2
  %v1876 = vadd.f32 %v1874, %v1875
  %v1877 = vrot.slane %v1876, 1
  %v1878 = vadd.f32 %v1876, %v1877
  %1879 = vrot.lane.b32.xlu0 %v1878, 8
  %v1880 = vpop.permute.xlu0 %1879
  %v1881 = vadd.f32 %v1878, %v1880
  %1882 = vrot.lane.b32.xlu0 %v1881, 16
  %v1883 = vpop.permute.xlu0 %1882
  %v1884 = vadd.f32 %v1881, %v1883
  %1885 = vrot.lane.b32.xlu0 %v1884, 32
  %v1886 = vpop.permute.xlu0 %1885
  %v1887 = vadd.f32 %v1884, %v1886
  %1888 = vrot.lane.b32.xlu0 %v1887, 64
  %v1889 = vpop.permute.xlu0 %1888
  %v1890 = vadd.f32 %v1887, %v1889
  %v1891 = vmul.f32 %v1890, 0.001953125
  %v1892 = vadd.f32 %v1891, 1e-05
  %v1893 = vrsqrt.pop %v1892
  %v1894 = vlaneseq
  %v1895 = vshrl.u32 %v1894, 7
  %v1896 = vsub.s32 0, %v1895
  %v1897 = vrot.slane %v1893, %v1896
  %v1898 = vmul.f32 %v1862, %v1897
  %v1899 = vmul.f32 %v1863, %v1897
  %v1900 = vmul.f32 %v1864, %v1897
  %v1901 = vmul.f32 %v1865, %v1897
  %v1902 = vstv %s1720
  %v1903 = vmul.f32 %v1902, %v1898
  %v1904 = vmul.f32 %v1902, %v1899
  %v1905 = vmul.f32 %v1902, %v1900
  %v1906 = vmul.f32 %v1902, %v1901
  %v1907 = vadd.f32 %v492, %v1903
  %v1908 = vadd.f32 %v493, %v1904
  %v1909 = vadd.f32 %v494, %v1905
  %v1910 = vadd.f32 %v495, %v1906
  %s1911 = sld [smem:[#allocation4 + $0x7]]
  %v1912 = vpack.c.bf16 %v1717, %v1716
  %v1913 = vpack.c.bf16 %v1719, %v1718
  %v1914 = vld [vmem:[%s13] sm:$0xf]
  %v1915 = vld [vmem:[%s13 + $0x4] sm:$0xf]
  %v1916 = vld [vmem:[%s13 + $0x8] sm:$0xf]
  %v1917 = vld [vmem:[%s13 + $0xc] sm:$0xf]
  %v1918 = vld [vmem:[%s13 + $0x10] sm:$0xf]
  %v1919 = vld [vmem:[%s13 + $0x14] sm:$0xf]
  %v1920 = vld [vmem:[%s13 + $0x18] sm:$0xf]
  %v1921 = vld [vmem:[%s13 + $0x1c] sm:$0xf]
  %v1922 = vld [vmem:[%s13 + $0x20] sm:$0xf]
  %v1923 = vld [vmem:[%s13 + $0x24] sm:$0xf]
  %v1924 = vld [vmem:[%s13 + $0x28] sm:$0xf]
  %v1925 = vld [vmem:[%s13 + $0x2c] sm:$0xf]
  %v1926 = vld [vmem:[%s13 + $0x30] sm:$0xf]
  %v1927 = vld [vmem:[%s13 + $0x34] sm:$0xf]
  %v1928 = vld [vmem:[%s13 + $0x38] sm:$0xf]
  %v1929 = vld [vmem:[%s13 + $0x3c] sm:$0xf]
  %v1946 = vunpack.c.l.b16 %v1914
  %v1947 = vunpack.c.l.b16 %v1915
  %v1948 = vunpack.c.l.b16 %v1916
  %v1949 = vunpack.c.l.b16 %v1917
  %v1950 = vunpack.c.l.b16 %v1918
  %v1951 = vunpack.c.l.b16 %v1919
  %v1952 = vunpack.c.l.b16 %v1920
  %v1953 = vunpack.c.l.b16 %v1921
  %v1954 = vunpack.c.l.b16 %v1922
  %v1955 = vunpack.c.l.b16 %v1923
  %v1956 = vunpack.c.l.b16 %v1924
  %v1957 = vunpack.c.l.b16 %v1925
  %v1958 = vunpack.c.l.b16 %v1926
  %v1959 = vunpack.c.l.b16 %v1927
  %v1960 = vunpack.c.l.b16 %v1928
  %v1961 = vunpack.c.l.b16 %v1929
  %v1962 = vpack.c.b16 %v1947, %v1946
  %v1963 = vpack.c.b16 %v1949, %v1948
  %v1964 = vpack.c.b16 %v1951, %v1950
  %v1965 = vpack.c.b16 %v1953, %v1952
  %v1966 = vpack.c.b16 %v1955, %v1954
  %v1967 = vpack.c.b16 %v1957, %v1956
  %v1968 = vpack.c.b16 %v1959, %v1958
  %v1969 = vpack.c.b16 %v1961, %v1960
  %1978 = vmatprep.subr.bf16.mxu0 0
  %1979 = vmatpush1.bf16.msra.mxu0 %v1969
  %1980 = vmatprep.subr.bf16.mxu0 0
  %1981 = vmatpush1.bf16.msra.mxu0 %v1968
  %1982 = vmatprep.subr.bf16.mxu0 0
  %1983 = vmatpush1.bf16.msra.mxu0 %v1967
  %1984 = vmatprep.subr.bf16.mxu0 0
  %1985 = vmatpush1.bf16.msra.mxu0 %v1966
  %1986 = vmatprep.subr.bf16.mxu0 0
  %1987 = vmatpush1.bf16.msra.mxu0 %v1965
  %1988 = vmatprep.subr.bf16.mxu0 0
  %1989 = vmatpush1.bf16.msra.mxu0 %v1964
  %1990 = vmatprep.subr.bf16.mxu0 0
  %1991 = vmatpush1.bf16.msra.mxu0 %v1963
  %1992 = vmatprep.subr.bf16.mxu0 0
  %1993 = vmatpush1.bf16.msra.mxu0 %v1962
  %1994 = vmatprep.subr.bf16.mxu0 0
  %1995 = vmatpush2.bf16.msra.mxu0 0
  %1996 = vmatprep.subr.bf16.mxu0 0
  %1997 = vmatpush2.bf16.msra.mxu0 0
  %1998 = vmatprep.subr.bf16.mxu0 0
  %1999 = vmatpush2.bf16.msra.mxu0 0
  %2000 = vmatprep.subr.bf16.mxu0 0
  %2001 = vmatpush2.bf16.msra.mxu0 0
  %2002 = vmatprep.subr.bf16.mxu0 0
  %2003 = vmatpush2.bf16.msra.mxu0 0
  %2004 = vmatprep.subr.bf16.mxu0 0
  %2005 = vmatpush2.bf16.msra.mxu0 0
  %2006 = vmatprep.subr.bf16.mxu0 0
  %2007 = vmatpush2.bf16.msra.mxu0 0
  %2008 = vmatprep.subr.bf16.mxu0 0
  %2009 = vmatpush2.bf16.msra.mxu0 0
  %2010 = vmatprep.mubr.bf16.mxu0 0
  %2011 = vmatmul.mubr.bf16.gmra.mxu0 %v1912
  %v2012 = vpop.f32.mrf.mxu0
  %v2013 = vadd.f32 0.0, %v2012
  %v2014 = vpop.f32.mrf.mxu0
  %v2015 = vpop.f32.mrf.mxu0
  %v2016 = vadd.f32 0.0, %v2015
  %v2017 = vpop.f32.mrf.mxu0
  %2018 = vmatprep.mubr.bf16.mxu0 0
  %2019 = vmatmul.mubr.bf16.gmra.mxu0 %v1913
  %v2020 = vpop.f32.mrf.mxu0
  %v2021 = vadd.f32 0.0, %v2020
  %v2022 = vpop.f32.mrf.mxu0
  %v2023 = vpop.f32.mrf.mxu0
  %v2024 = vadd.f32 0.0, %v2023
  %v2025 = vpop.f32.mrf.mxu0
  %2026 = vdwg.mxu0
  %v2027 = vadd.f32 %v2013, %v2016
  %v2028 = vadd.f32 %v2027, %v2021
  %v2029 = vadd.f32 %v2028, %v2024
  %v2030 = vrot.slane %v2029, 4
  %v2031 = vadd.f32 %v2029, %v2030
  %v2032 = vrot.slane %v2031, 2
  %v2033 = vadd.f32 %v2031, %v2032
  %v2034 = vrot.slane %v2033, 1
  %v2035 = vadd.f32 %v2033, %v2034
  %2036 = vrot.lane.b32.xlu0 %v2035, 8
  %v2037 = vpop.permute.xlu0 %2036
  %v2038 = vadd.f32 %v2035, %v2037
  %2039 = vrot.lane.b32.xlu0 %v2038, 16
  %v2040 = vpop.permute.xlu0 %2039
  %v2041 = vadd.f32 %v2038, %v2040
  %2042 = vrot.lane.b32.xlu0 %v2041, 32
  %v2043 = vpop.permute.xlu0 %2042
  %v2044 = vadd.f32 %v2041, %v2043
  %2045 = vrot.lane.b32.xlu0 %v2044, 64
  %v2046 = vpop.permute.xlu0 %2045
  %v2047 = vadd.f32 %v2044, %v2046
  %v2048 = vmul.f32 %v2047, 0.001953125
  %v2049 = vlaneseq
  %v2050 = vshrl.u32 %v2049, 7
  %v2051 = vsub.s32 0, %v2050
  %v2052 = vrot.slane %v2048, %v2051
  %v2053 = vsub.f32 %v2013, %v2052
  %v2054 = vsub.f32 %v2016, %v2052
  %v2055 = vsub.f32 %v2021, %v2052
  %v2056 = vsub.f32 %v2024, %v2052
  %v2057 = vmul.f32 %v2053, %v2053
  %v2058 = vmul.f32 %v2054, %v2054
  %v2059 = vmul.f32 %v2055, %v2055
  %v2060 = vmul.f32 %v2056, %v2056
  %v2061 = vadd.f32 %v2057, %v2058
  %v2062 = vadd.f32 %v2061, %v2059
  %v2063 = vadd.f32 %v2062, %v2060
  %v2064 = vrot.slane %v2063, 4
  %v2065 = vadd.f32 %v2063, %v2064
  %v2066 = vrot.slane %v2065, 2
  %v2067 = vadd.f32 %v2065, %v2066
  %v2068 = vrot.slane %v2067, 1
  %v2069 = vadd.f32 %v2067, %v2068
  %2070 = vrot.lane.b32.xlu0 %v2069, 8
  %v2071 = vpop.permute.xlu0 %2070
  %v2072 = vadd.f32 %v2069, %v2071
  %2073 = vrot.lane.b32.xlu0 %v2072, 16
  %v2074 = vpop.permute.xlu0 %2073
  %v2075 = vadd.f32 %v2072, %v2074
  %2076 = vrot.lane.b32.xlu0 %v2075, 32
  %v2077 = vpop.permute.xlu0 %2076
  %v2078 = vadd.f32 %v2075, %v2077
  %2079 = vrot.lane.b32.xlu0 %v2078, 64
  %v2080 = vpop.permute.xlu0 %2079
  %v2081 = vadd.f32 %v2078, %v2080
  %v2082 = vmul.f32 %v2081, 0.001953125
  %v2083 = vadd.f32 %v2082, 1e-05
  %v2084 = vrsqrt.pop %v2083
  %v2085 = vlaneseq
  %v2086 = vshrl.u32 %v2085, 7
  %v2087 = vsub.s32 0, %v2086
  %v2088 = vrot.slane %v2084, %v2087
  %v2089 = vmul.f32 %v2053, %v2088
  %v2090 = vmul.f32 %v2054, %v2088
  %v2091 = vmul.f32 %v2055, %v2088
  %v2092 = vmul.f32 %v2056, %v2088
  %v2093 = vstv %s1911
  %v2094 = vmul.f32 %v2093, %v2089
  %v2095 = vmul.f32 %v2093, %v2090
  %v2096 = vmul.f32 %v2093, %v2091
  %v2097 = vmul.f32 %v2093, %v2092
  %v2098 = vadd.f32 %v1907, %v2094
  %v2099 = vadd.f32 %v1908, %v2095
  %v2100 = vadd.f32 %v1909, %v2096
  %v2101 = vadd.f32 %v1910, %v2097
  %v2102 = vpack.c.bf16 %v712, %v711
  %v2103 = vpack.c.bf16 %v714, %v713
  %v2104 = vld [vmem:[%s8] sm:$0xf]
  %v2105 = vld [vmem:[%s8 + $0x4] sm:$0xf]
  %v2106 = vld [vmem:[%s8 + $0x8] sm:$0xf]
  %v2107 = vld [vmem:[%s8 + $0xc] sm:$0xf]
  %v2108 = vld [vmem:[%s8 + $0x10] sm:$0xf]
  %v2109 = vld [vmem:[%s8 + $0x14] sm:$0xf]
  %v2110 = vld [vmem:[%s8 + $0x18] sm:$0xf]
  %v2111 = vld [vmem:[%s8 + $0x1c] sm:$0xf]
  %v2112 = vld [vmem:[%s8 + $0x20] sm:$0xf]
  %v2113 = vld [vmem:[%s8 + $0x24] sm:$0xf]
  %v2114 = vld [vmem:[%s8 + $0x28] sm:$0xf]
  %v2115 = vld [vmem:[%s8 + $0x2c] sm:$0xf]
  %v2116 = vld [vmem:[%s8 + $0x30] sm:$0xf]
  %v2117 = vld [vmem:[%s8 + $0x34] sm:$0xf]
  %v2118 = vld [vmem:[%s8 + $0x38] sm:$0xf]
  %v2119 = vld [vmem:[%s8 + $0x3c] sm:$0xf]
  %v2136 = vunpack.c.l.b16 %v2104
  %v2137 = vunpack.c.l.b16 %v2105
  %v2138 = vunpack.c.l.b16 %v2106
  %v2139 = vunpack.c.l.b16 %v2107
  %v2140 = vunpack.c.l.b16 %v2108
  %v2141 = vunpack.c.l.b16 %v2109
  %v2142 = vunpack.c.l.b16 %v2110
  %v2143 = vunpack.c.l.b16 %v2111
  %v2144 = vunpack.c.l.b16 %v2112
  %v2145 = vunpack.c.l.b16 %v2113
  %v2146 = vunpack.c.l.b16 %v2114
  %v2147 = vunpack.c.l.b16 %v2115
  %v2148 = vunpack.c.l.b16 %v2116
  %v2149 = vunpack.c.l.b16 %v2117
  %v2150 = vunpack.c.l.b16 %v2118
  %v2151 = vunpack.c.l.b16 %v2119
  %v2152 = vpack.c.b16 %v2137, %v2136
  %v2153 = vpack.c.b16 %v2139, %v2138
  %v2154 = vpack.c.b16 %v2141, %v2140
  %v2155 = vpack.c.b16 %v2143, %v2142
  %v2156 = vpack.c.b16 %v2145, %v2144
  %v2157 = vpack.c.b16 %v2147, %v2146
  %v2158 = vpack.c.b16 %v2149, %v2148
  %v2159 = vpack.c.b16 %v2151, %v2150
  %2168 = vmatprep.subr.bf16.mxu0 0
  %2169 = vmatpush1.bf16.msra.mxu0 %v2159
  %2170 = vmatprep.subr.bf16.mxu0 0
  %2171 = vmatpush1.bf16.msra.mxu0 %v2158
  %2172 = vmatprep.subr.bf16.mxu0 0
  %2173 = vmatpush1.bf16.msra.mxu0 %v2157
  %2174 = vmatprep.subr.bf16.mxu0 0
  %2175 = vmatpush1.bf16.msra.mxu0 %v2156
  %2176 = vmatprep.subr.bf16.mxu0 0
  %2177 = vmatpush1.bf16.msra.mxu0 %v2155
  %2178 = vmatprep.subr.bf16.mxu0 0
  %2179 = vmatpush1.bf16.msra.mxu0 %v2154
  %2180 = vmatprep.subr.bf16.mxu0 0
  %2181 = vmatpush1.bf16.msra.mxu0 %v2153
  %2182 = vmatprep.subr.bf16.mxu0 0
  %2183 = vmatpush1.bf16.msra.mxu0 %v2152
  %2184 = vmatprep.subr.bf16.mxu0 0
  %2185 = vmatpush2.bf16.msra.mxu0 0
  %2186 = vmatprep.subr.bf16.mxu0 0
  %2187 = vmatpush2.bf16.msra.mxu0 0
  %2188 = vmatprep.subr.bf16.mxu0 0
  %2189 = vmatpush2.bf16.msra.mxu0 0
  %2190 = vmatprep.subr.bf16.mxu0 0
  %2191 = vmatpush2.bf16.msra.mxu0 0
  %2192 = vmatprep.subr.bf16.mxu0 0
  %2193 = vmatpush2.bf16.msra.mxu0 0
  %2194 = vmatprep.subr.bf16.mxu0 0
  %2195 = vmatpush2.bf16.msra.mxu0 0
  %2196 = vmatprep.subr.bf16.mxu0 0
  %2197 = vmatpush2.bf16.msra.mxu0 0
  %2198 = vmatprep.subr.bf16.mxu0 0
  %2199 = vmatpush2.bf16.msra.mxu0 0
  %2200 = vmatprep.mubr.bf16.mxu0 0
  %2201 = vmatmul.mubr.bf16.gmra.mxu0 %v2102
  %v2202 = vpop.f32.mrf.mxu0
  %v2203 = vadd.f32 0.0, %v2202
  %v2204 = vpop.f32.mrf.mxu0
  %v2205 = vpop.f32.mrf.mxu0
  %v2206 = vadd.f32 0.0, %v2205
  %v2207 = vpop.f32.mrf.mxu0
  %2208 = vmatprep.mubr.bf16.mxu0 0
  %2209 = vmatmul.mubr.bf16.gmra.mxu0 %v2103
  %v2210 = vpop.f32.mrf.mxu0
  %v2211 = vadd.f32 0.0, %v2210
  %v2212 = vpop.f32.mrf.mxu0
  %v2213 = vpop.f32.mrf.mxu0
  %v2214 = vadd.f32 0.0, %v2213
  %v2215 = vpop.f32.mrf.mxu0
  %2216 = vdwg.mxu0
  %v2217 = vadd.f32 %v2203, %v2206
  %v2218 = vadd.f32 %v2217, %v2211
  %v2219 = vadd.f32 %v2218, %v2214
  %v2220 = vrot.slane %v2219, 4
  %v2221 = vadd.f32 %v2219, %v2220
  %v2222 = vrot.slane %v2221, 2
  %v2223 = vadd.f32 %v2221, %v2222
  %v2224 = vrot.slane %v2223, 1
  %v2225 = vadd.f32 %v2223, %v2224
  %2226 = vrot.lane.b32.xlu0 %v2225, 8
  %v2227 = vpop.permute.xlu0 %2226
  %v2228 = vadd.f32 %v2225, %v2227
  %2229 = vrot.lane.b32.xlu0 %v2228, 16
  %v2230 = vpop.permute.xlu0 %2229
  %v2231 = vadd.f32 %v2228, %v2230
  %2232 = vrot.lane.b32.xlu0 %v2231, 32
  %v2233 = vpop.permute.xlu0 %2232
  %v2234 = vadd.f32 %v2231, %v2233
  %2235 = vrot.lane.b32.xlu0 %v2234, 64
  %v2236 = vpop.permute.xlu0 %2235
  %v2237 = vadd.f32 %v2234, %v2236
  %v2238 = vmul.f32 %v2237, 0.001953125
  %v2239 = vlaneseq
  %v2240 = vshrl.u32 %v2239, 7
  %v2241 = vsub.s32 0, %v2240
  %v2242 = vrot.slane %v2238, %v2241
  %v2243 = vsub.f32 %v2203, %v2242
  %v2244 = vsub.f32 %v2206, %v2242
  %v2245 = vsub.f32 %v2211, %v2242
  %v2246 = vsub.f32 %v2214, %v2242
  %v2247 = vmul.f32 %v2243, %v2243
  %v2248 = vmul.f32 %v2244, %v2244
  %v2249 = vmul.f32 %v2245, %v2245
  %v2250 = vmul.f32 %v2246, %v2246
  %v2251 = vadd.f32 %v2247, %v2248
  %v2252 = vadd.f32 %v2251, %v2249
  %v2253 = vadd.f32 %v2252, %v2250
  %v2254 = vrot.slane %v2253, 4
  %v2255 = vadd.f32 %v2253, %v2254
  %v2256 = vrot.slane %v2255, 2
  %v2257 = vadd.f32 %v2255, %v2256
  %v2258 = vrot.slane %v2257, 1
  %v2259 = vadd.f32 %v2257, %v2258
  %2260 = vrot.lane.b32.xlu0 %v2259, 8
  %v2261 = vpop.permute.xlu0 %2260
  %v2262 = vadd.f32 %v2259, %v2261
  %2263 = vrot.lane.b32.xlu0 %v2262, 16
  %v2264 = vpop.permute.xlu0 %2263
  %v2265 = vadd.f32 %v2262, %v2264
  %2266 = vrot.lane.b32.xlu0 %v2265, 32
  %v2267 = vpop.permute.xlu0 %2266
  %v2268 = vadd.f32 %v2265, %v2267
  %2269 = vrot.lane.b32.xlu0 %v2268, 64
  %v2270 = vpop.permute.xlu0 %2269
  %v2271 = vadd.f32 %v2268, %v2270
  %v2272 = vmul.f32 %v2271, 0.001953125
  %v2273 = vadd.f32 %v2272, 1e-05
  %v2274 = vrsqrt.pop %v2273
  %v2275 = vlaneseq
  %v2276 = vshrl.u32 %v2275, 7
  %v2277 = vsub.s32 0, %v2276
  %v2278 = vrot.slane %v2274, %v2277
  %v2279 = vmul.f32 %v2243, %v2278
  %v2280 = vmul.f32 %v2244, %v2278
  %v2281 = vmul.f32 %v2245, %v2278
  %v2282 = vmul.f32 %v2246, %v2278
  %v2283 = vmax.f32 %v2279, 0.0
  %v2284 = vmax.f32 %v2280, 0.0
  %v2285 = vmax.f32 %v2281, 0.0
  %v2286 = vmax.f32 %v2282, 0.0
  %2287 = vst [vmem:[#allocation2 + $0x8] sm:$0xff] %v2283
  %2288 = vst [vmem:[#allocation2 + $0x10] sm:$0xff] %v2284
  %2289 = vst [vmem:[#allocation2 + $0x28] sm:$0xff] %v2285
  %2290 = vst [vmem:[#allocation2 + $0x30] sm:$0xff] %v2286
  %v2291 = vld [vmem:[#allocation2 + $0x7] sm:$0xff]
  %v2292 = vld [vmem:[#allocation2 + $0xf] sm:$0xff]
  %v2293 = vld [vmem:[#allocation2 + $0x27] sm:$0xff]
  %v2294 = vld [vmem:[#allocation2 + $0x2f] sm:$0xff]
  %2295 = vrot.lane.b32.xlu0 %v2291, 8
  %v2296 = vpop.permute.xlu0 %2295
  %2297 = vrot.lane.b32.xlu0 %v2292, 8
  %v2298 = vpop.permute.xlu0 %2297
  %2299 = vrot.lane.b32.xlu0 %v2293, 8
  %v2300 = vpop.permute.xlu0 %2299
  %2301 = vrot.lane.b32.xlu0 %v2294, 8
  %v2302 = vpop.permute.xlu0 %2301
  %v2303 = vld [vmem:[%s3] sm:$0x1]
  %v2304 = vlaneseq
  %v2305 = vshrl.u32 %v2304, 7
  %v2306 = vsub.s32 0, %v2305
  %v2307 = vrot.slane %v2303, %v2306
  %v2308 = vmul.f32 %v2296, %v2307
  %v2309 = vmul.f32 %v2298, %v2307
  %v2310 = vmul.f32 %v2300, %v2307
  %v2311 = vmul.f32 %v2302, %v2307
  %v2312 = vadd.f32 %v2308, 0.0
  %v2313 = vadd.f32 %v2309, 0.0
  %v2314 = vadd.f32 %v2310, 0.0
  %v2315 = vadd.f32 %v2311, 0.0
  %v2316 = vld [vmem:[%s3 + $0x1] sm:$0x1]
  %v2317 = vlaneseq
  %v2318 = vshrl.u32 %v2317, 7
  %v2319 = vsub.s32 0, %v2318
  %v2320 = vrot.slane %v2316, %v2319
  %v2321 = vmul.f32 %v2291, %v2320
  %v2322 = vmul.f32 %v2292, %v2320
  %v2323 = vmul.f32 %v2293, %v2320
  %v2324 = vmul.f32 %v2294, %v2320
  %v2325 = vadd.f32 %v2312, %v2321
  %v2326 = vadd.f32 %v2313, %v2322
  %v2327 = vadd.f32 %v2314, %v2323
  %v2328 = vadd.f32 %v2315, %v2324
  %2329 = vrot.lane.b32.xlu0 %v2291, 120
  %v2330 = vpop.permute.xlu0 %2329
  %2331 = vrot.lane.b32.xlu0 %v2292, 120
  %v2332 = vpop.permute.xlu0 %2331
  %2333 = vrot.lane.b32.xlu0 %v2293, 120
  %v2334 = vpop.permute.xlu0 %2333
  %2335 = vrot.lane.b32.xlu0 %v2294, 120
  %v2336 = vpop.permute.xlu0 %2335
  %v2337 = vld [vmem:[%s3 + $0x2] sm:$0x1]
  %v2338 = vlaneseq
  %v2339 = vshrl.u32 %v2338, 7
  %v2340 = vsub.s32 0, %v2339
  %v2341 = vrot.slane %v2337, %v2340
  %v2342 = vmul.f32 %v2330, %v2341
  %v2343 = vmul.f32 %v2332, %v2341
  %v2344 = vmul.f32 %v2334, %v2341
  %v2345 = vmul.f32 %v2336, %v2341
  %v2346 = vadd.f32 %v2325, %v2342
  %v2347 = vadd.f32 %v2326, %v2343
  %v2348 = vadd.f32 %v2327, %v2344
  %v2349 = vadd.f32 %v2328, %v2345
  %v2350 = vld [vmem:[#allocation2 + $0x8] sm:$0xff]
  %v2351 = vld [vmem:[#allocation2 + $0x10] sm:$0xff]
  %v2352 = vld [vmem:[#allocation2 + $0x28] sm:$0xff]
  %v2353 = vld [vmem:[#allocation2 + $0x30] sm:$0xff]
  %2354 = vrot.lane.b32.xlu0 %v2350, 8
  %v2355 = vpop.permute.xlu0 %2354
  %2356 = vrot.lane.b32.xlu0 %v2351, 8
  %v2357 = vpop.permute.xlu0 %2356
  %2358 = vrot.lane.b32.xlu0 %v2352, 8
  %v2359 = vpop.permute.xlu0 %2358
  %2360 = vrot.lane.b32.xlu0 %v2353, 8
  %v2361 = vpop.permute.xlu0 %2360
  %v2362 = vld [vmem:[%s3 + $0x3] sm:$0x1]
  %v2363 = vlaneseq
  %v2364 = vshrl.u32 %v2363, 7
  %v2365 = vsub.s32 0, %v2364
  %v2366 = vrot.slane %v2362, %v2365
  %v2367 = vmul.f32 %v2355, %v2366
  %v2368 = vmul.f32 %v2357, %v2366
  %v2369 = vmul.f32 %v2359, %v2366
  %v2370 = vmul.f32 %v2361, %v2366
  %v2371 = vadd.f32 %v2346, %v2367
  %v2372 = vadd.f32 %v2347, %v2368
  %v2373 = vadd.f32 %v2348, %v2369
  %v2374 = vadd.f32 %v2349, %v2370
  %v2375 = vld [vmem:[%s3 + $0x4] sm:$0x1]
  %v2376 = vlaneseq
  %v2377 = vshrl.u32 %v2376, 7
  %v2378 = vsub.s32 0, %v2377
  %v2379 = vrot.slane %v2375, %v2378
  %v2380 = vmul.f32 %v2350, %v2379
  %v2381 = vmul.f32 %v2351, %v2379
  %v2382 = vmul.f32 %v2352, %v2379
  %v2383 = vmul.f32 %v2353, %v2379
  %v2384 = vadd.f32 %v2371, %v2380
  %v2385 = vadd.f32 %v2372, %v2381
  %v2386 = vadd.f32 %v2373, %v2382
  %v2387 = vadd.f32 %v2374, %v2383
  %2388 = vrot.lane.b32.xlu0 %v2350, 120
  %v2389 = vpop.permute.xlu0 %2388
  %2390 = vrot.lane.b32.xlu0 %v2351, 120
  %v2391 = vpop.permute.xlu0 %2390
  %2392 = vrot.lane.b32.xlu0 %v2352, 120
  %v2393 = vpop.permute.xlu0 %2392
  %2394 = vrot.lane.b32.xlu0 %v2353, 120
  %v2395 = vpop.permute.xlu0 %2394
  %v2396 = vld [vmem:[%s3 + $0x5] sm:$0x1]
  %v2397 = vlaneseq
  %v2398 = vshrl.u32 %v2397, 7
  %v2399 = vsub.s32 0, %v2398
  %v2400 = vrot.slane %v2396, %v2399
  %v2401 = vmul.f32 %v2389, %v2400
  %v2402 = vmul.f32 %v2391, %v2400
  %v2403 = vmul.f32 %v2393, %v2400
  %v2404 = vmul.f32 %v2395, %v2400
  %v2405 = vadd.f32 %v2384, %v2401
  %v2406 = vadd.f32 %v2385, %v2402
  %v2407 = vadd.f32 %v2386, %v2403
  %v2408 = vadd.f32 %v2387, %v2404
  %v2409 = vld [vmem:[#allocation2 + $0x9] sm:$0xff]
  %v2410 = vld [vmem:[#allocation2 + $0x11] sm:$0xff]
  %v2411 = vld [vmem:[#allocation2 + $0x29] sm:$0xff]
  %v2412 = vld [vmem:[#allocation2 + $0x31] sm:$0xff]
  %2413 = vrot.lane.b32.xlu0 %v2409, 8
  %v2414 = vpop.permute.xlu0 %2413
  %2415 = vrot.lane.b32.xlu0 %v2410, 8
  %v2416 = vpop.permute.xlu0 %2415
  %2417 = vrot.lane.b32.xlu0 %v2411, 8
  %v2418 = vpop.permute.xlu0 %2417
  %2419 = vrot.lane.b32.xlu0 %v2412, 8
  %v2420 = vpop.permute.xlu0 %2419
  %v2421 = vld [vmem:[%s3 + $0x6] sm:$0x1]
  %v2422 = vlaneseq
  %v2423 = vshrl.u32 %v2422, 7
  %v2424 = vsub.s32 0, %v2423
  %v2425 = vrot.slane %v2421, %v2424
  %v2426 = vmul.f32 %v2414, %v2425
  %v2427 = vmul.f32 %v2416, %v2425
  %v2428 = vmul.f32 %v2418, %v2425
  %v2429 = vmul.f32 %v2420, %v2425
  %v2430 = vadd.f32 %v2405, %v2426
  %v2431 = vadd.f32 %v2406, %v2427
  %v2432 = vadd.f32 %v2407, %v2428
  %v2433 = vadd.f32 %v2408, %v2429
  %v2434 = vld [vmem:[%s3 + $0x7] sm:$0x1]
  %v2435 = vlaneseq
  %v2436 = vshrl.u32 %v2435, 7
  %v2437 = vsub.s32 0, %v2436
  %v2438 = vrot.slane %v2434, %v2437
  %v2439 = vmul.f32 %v2409, %v2438
  %v2440 = vmul.f32 %v2410, %v2438
  %v2441 = vmul.f32 %v2411, %v2438
  %v2442 = vmul.f32 %v2412, %v2438
  %v2443 = vadd.f32 %v2430, %v2439
  %v2444 = vadd.f32 %v2431, %v2440
  %v2445 = vadd.f32 %v2432, %v2441
  %v2446 = vadd.f32 %v2433, %v2442
  %2447 = vrot.lane.b32.xlu0 %v2409, 120
  %v2448 = vpop.permute.xlu0 %2447
  %2449 = vrot.lane.b32.xlu0 %v2410, 120
  %v2450 = vpop.permute.xlu0 %2449
  %2451 = vrot.lane.b32.xlu0 %v2411, 120
  %v2452 = vpop.permute.xlu0 %2451
  %2453 = vrot.lane.b32.xlu0 %v2412, 120
  %v2454 = vpop.permute.xlu0 %2453
  %v2455 = vld [vmem:[%s3 + $0x8] sm:$0x1]
  %v2456 = vlaneseq
  %v2457 = vshrl.u32 %v2456, 7
  %v2458 = vsub.s32 0, %v2457
  %v2459 = vrot.slane %v2455, %v2458
  %v2460 = vmul.f32 %v2448, %v2459
  %v2461 = vmul.f32 %v2450, %v2459
  %v2462 = vmul.f32 %v2452, %v2459
  %v2463 = vmul.f32 %v2454, %v2459
  %v2464 = vadd.f32 %v2443, %v2460
  %v2465 = vadd.f32 %v2444, %v2461
  %v2466 = vadd.f32 %v2445, %v2462
  %v2467 = vadd.f32 %v2446, %v2463
  %v2468 = vpack.c.bf16 %v2465, %v2464
  %v2469 = vpack.c.bf16 %v2467, %v2466
  %v2470 = vld [vmem:[%s9] sm:$0xf]
  %v2471 = vld [vmem:[%s9 + $0x4] sm:$0xf]
  %v2472 = vld [vmem:[%s9 + $0x8] sm:$0xf]
  %v2473 = vld [vmem:[%s9 + $0xc] sm:$0xf]
  %v2474 = vld [vmem:[%s9 + $0x10] sm:$0xf]
  %v2475 = vld [vmem:[%s9 + $0x14] sm:$0xf]
  %v2476 = vld [vmem:[%s9 + $0x18] sm:$0xf]
  %v2477 = vld [vmem:[%s9 + $0x1c] sm:$0xf]
  %v2478 = vld [vmem:[%s9 + $0x20] sm:$0xf]
  %v2479 = vld [vmem:[%s9 + $0x24] sm:$0xf]
  %v2480 = vld [vmem:[%s9 + $0x28] sm:$0xf]
  %v2481 = vld [vmem:[%s9 + $0x2c] sm:$0xf]
  %v2482 = vld [vmem:[%s9 + $0x30] sm:$0xf]
  %v2483 = vld [vmem:[%s9 + $0x34] sm:$0xf]
  %v2484 = vld [vmem:[%s9 + $0x38] sm:$0xf]
  %v2485 = vld [vmem:[%s9 + $0x3c] sm:$0xf]
  %v2502 = vunpack.c.l.b16 %v2470
  %v2503 = vunpack.c.l.b16 %v2471
  %v2504 = vunpack.c.l.b16 %v2472
  %v2505 = vunpack.c.l.b16 %v2473
  %v2506 = vunpack.c.l.b16 %v2474
  %v2507 = vunpack.c.l.b16 %v2475
  %v2508 = vunpack.c.l.b16 %v2476
  %v2509 = vunpack.c.l.b16 %v2477
  %v2510 = vunpack.c.l.b16 %v2478
  %v2511 = vunpack.c.l.b16 %v2479
  %v2512 = vunpack.c.l.b16 %v2480
  %v2513 = vunpack.c.l.b16 %v2481
  %v2514 = vunpack.c.l.b16 %v2482
  %v2515 = vunpack.c.l.b16 %v2483
  %v2516 = vunpack.c.l.b16 %v2484
  %v2517 = vunpack.c.l.b16 %v2485
  %v2518 = vpack.c.b16 %v2503, %v2502
  %v2519 = vpack.c.b16 %v2505, %v2504
  %v2520 = vpack.c.b16 %v2507, %v2506
  %v2521 = vpack.c.b16 %v2509, %v2508
  %v2522 = vpack.c.b16 %v2511, %v2510
  %v2523 = vpack.c.b16 %v2513, %v2512
  %v2524 = vpack.c.b16 %v2515, %v2514
  %v2525 = vpack.c.b16 %v2517, %v2516
  %2534 = vmatprep.subr.bf16.mxu0 0
  %2535 = vmatpush1.bf16.msra.mxu0 %v2525
  %2536 = vmatprep.subr.bf16.mxu0 0
  %2537 = vmatpush1.bf16.msra.mxu0 %v2524
  %2538 = vmatprep.subr.bf16.mxu0 0
  %2539 = vmatpush1.bf16.msra.mxu0 %v2523
  %2540 = vmatprep.subr.bf16.mxu0 0
  %2541 = vmatpush1.bf16.msra.mxu0 %v2522
  %2542 = vmatprep.subr.bf16.mxu0 0
  %2543 = vmatpush1.bf16.msra.mxu0 %v2521
  %2544 = vmatprep.subr.bf16.mxu0 0
  %2545 = vmatpush1.bf16.msra.mxu0 %v2520
  %2546 = vmatprep.subr.bf16.mxu0 0
  %2547 = vmatpush1.bf16.msra.mxu0 %v2519
  %2548 = vmatprep.subr.bf16.mxu0 0
  %2549 = vmatpush1.bf16.msra.mxu0 %v2518
  %2550 = vmatprep.subr.bf16.mxu0 0
  %2551 = vmatpush2.bf16.msra.mxu0 0
  %2552 = vmatprep.subr.bf16.mxu0 0
  %2553 = vmatpush2.bf16.msra.mxu0 0
  %2554 = vmatprep.subr.bf16.mxu0 0
  %2555 = vmatpush2.bf16.msra.mxu0 0
  %2556 = vmatprep.subr.bf16.mxu0 0
  %2557 = vmatpush2.bf16.msra.mxu0 0
  %2558 = vmatprep.subr.bf16.mxu0 0
  %2559 = vmatpush2.bf16.msra.mxu0 0
  %2560 = vmatprep.subr.bf16.mxu0 0
  %2561 = vmatpush2.bf16.msra.mxu0 0
  %2562 = vmatprep.subr.bf16.mxu0 0
  %2563 = vmatpush2.bf16.msra.mxu0 0
  %2564 = vmatprep.subr.bf16.mxu0 0
  %2565 = vmatpush2.bf16.msra.mxu0 0
  %2566 = vmatprep.mubr.bf16.mxu0 0
  %2567 = vmatmul.mubr.bf16.gmra.mxu0 %v2468
  %v2568 = vpop.f32.mrf.mxu0
  %v2569 = vadd.f32 0.0, %v2568
  %v2570 = vpop.f32.mrf.mxu0
  %v2571 = vpop.f32.mrf.mxu0
  %v2572 = vadd.f32 0.0, %v2571
  %v2573 = vpop.f32.mrf.mxu0
  %2574 = vmatprep.mubr.bf16.mxu0 0
  %2575 = vmatmul.mubr.bf16.gmra.mxu0 %v2469
  %v2576 = vpop.f32.mrf.mxu0
  %v2577 = vadd.f32 0.0, %v2576
  %v2578 = vpop.f32.mrf.mxu0
  %v2579 = vpop.f32.mrf.mxu0
  %v2580 = vadd.f32 0.0, %v2579
  %v2581 = vpop.f32.mrf.mxu0
  %2582 = vdwg.mxu0
  %v2583 = vadd.f32 %v2569, %v2572
  %v2584 = vadd.f32 %v2583, %v2577
  %v2585 = vadd.f32 %v2584, %v2580
  %v2586 = vrot.slane %v2585, 4
  %v2587 = vadd.f32 %v2585, %v2586
  %v2588 = vrot.slane %v2587, 2
  %v2589 = vadd.f32 %v2587, %v2588
  %v2590 = vrot.slane %v2589, 1
  %v2591 = vadd.f32 %v2589, %v2590
  %2592 = vrot.lane.b32.xlu0 %v2591, 8
  %v2593 = vpop.permute.xlu0 %2592
  %v2594 = vadd.f32 %v2591, %v2593
  %2595 = vrot.lane.b32.xlu0 %v2594, 16
  %v2596 = vpop.permute.xlu0 %2595
  %v2597 = vadd.f32 %v2594, %v2596
  %2598 = vrot.lane.b32.xlu0 %v2597, 32
  %v2599 = vpop.permute.xlu0 %2598
  %v2600 = vadd.f32 %v2597, %v2599
  %2601 = vrot.lane.b32.xlu0 %v2600, 64
  %v2602 = vpop.permute.xlu0 %2601
  %v2603 = vadd.f32 %v2600, %v2602
  %v2604 = vmul.f32 %v2603, 0.001953125
  %v2605 = vlaneseq
  %v2606 = vshrl.u32 %v2605, 7
  %v2607 = vsub.s32 0, %v2606
  %v2608 = vrot.slane %v2604, %v2607
  %v2609 = vsub.f32 %v2569, %v2608
  %v2610 = vsub.f32 %v2572, %v2608
  %v2611 = vsub.f32 %v2577, %v2608
  %v2612 = vsub.f32 %v2580, %v2608
  %v2613 = vmul.f32 %v2609, %v2609
  %v2614 = vmul.f32 %v2610, %v2610
  %v2615 = vmul.f32 %v2611, %v2611
  %v2616 = vmul.f32 %v2612, %v2612
  %v2617 = vadd.f32 %v2613, %v2614
  %v2618 = vadd.f32 %v2617, %v2615
  %v2619 = vadd.f32 %v2618, %v2616
  %v2620 = vrot.slane %v2619, 4
  %v2621 = vadd.f32 %v2619, %v2620
  %v2622 = vrot.slane %v2621, 2
  %v2623 = vadd.f32 %v2621, %v2622
  %v2624 = vrot.slane %v2623, 1
  %v2625 = vadd.f32 %v2623, %v2624
  %2626 = vrot.lane.b32.xlu0 %v2625, 8
  %v2627 = vpop.permute.xlu0 %2626
  %v2628 = vadd.f32 %v2625, %v2627
  %2629 = vrot.lane.b32.xlu0 %v2628, 16
  %v2630 = vpop.permute.xlu0 %2629
  %v2631 = vadd.f32 %v2628, %v2630
  %2632 = vrot.lane.b32.xlu0 %v2631, 32
  %v2633 = vpop.permute.xlu0 %2632
  %v2634 = vadd.f32 %v2631, %v2633
  %2635 = vrot.lane.b32.xlu0 %v2634, 64
  %v2636 = vpop.permute.xlu0 %2635
  %v2637 = vadd.f32 %v2634, %v2636
  %v2638 = vmul.f32 %v2637, 0.001953125
  %v2639 = vadd.f32 %v2638, 1e-05
  %v2640 = vrsqrt.pop %v2639
  %v2641 = vlaneseq
  %v2642 = vshrl.u32 %v2641, 7
  %v2643 = vsub.s32 0, %v2642
  %v2644 = vrot.slane %v2640, %v2643
  %v2645 = vmul.f32 %v2609, %v2644
  %v2646 = vmul.f32 %v2610, %v2644
  %v2647 = vmul.f32 %v2611, %v2644
  %v2648 = vmul.f32 %v2612, %v2644
  %s2649 = sld [smem:[#allocation4 + $0x4]]
  %v2650 = vstv %s2649
  %v2651 = vmul.f32 %v2650, %v2645
  %v2652 = vmul.f32 %v2650, %v2646
  %v2653 = vmul.f32 %v2650, %v2647
  %v2654 = vmul.f32 %v2650, %v2648
  %v2655 = vadd.f32 %v2098, %v2651
  %v2656 = vadd.f32 %v2099, %v2652
  %v2657 = vadd.f32 %v2100, %v2653
  %v2658 = vadd.f32 %v2101, %v2654
  %v2659 = vpack.c.bf16 %v1179, %v1178
  %v2660 = vpack.c.bf16 %v1181, %v1180
  %v2661 = vld [vmem:[%s10] sm:$0xf]
  %v2662 = vld [vmem:[%s10 + $0x4] sm:$0xf]
  %v2663 = vld [vmem:[%s10 + $0x8] sm:$0xf]
  %v2664 = vld [vmem:[%s10 + $0xc] sm:$0xf]
  %v2665 = vld [vmem:[%s10 + $0x10] sm:$0xf]
  %v2666 = vld [vmem:[%s10 + $0x14] sm:$0xf]
  %v2667 = vld [vmem:[%s10 + $0x18] sm:$0xf]
  %v2668 = vld [vmem:[%s10 + $0x1c] sm:$0xf]
  %v2669 = vld [vmem:[%s10 + $0x20] sm:$0xf]
  %v2670 = vld [vmem:[%s10 + $0x24] sm:$0xf]
  %v2671 = vld [vmem:[%s10 + $0x28] sm:$0xf]
  %v2672 = vld [vmem:[%s10 + $0x2c] sm:$0xf]
  %v2673 = vld [vmem:[%s10 + $0x30] sm:$0xf]
  %v2674 = vld [vmem:[%s10 + $0x34] sm:$0xf]
  %v2675 = vld [vmem:[%s10 + $0x38] sm:$0xf]
  %v2676 = vld [vmem:[%s10 + $0x3c] sm:$0xf]
  %v2693 = vunpack.c.l.b16 %v2661
  %v2694 = vunpack.c.l.b16 %v2662
  %v2695 = vunpack.c.l.b16 %v2663
  %v2696 = vunpack.c.l.b16 %v2664
  %v2697 = vunpack.c.l.b16 %v2665
  %v2698 = vunpack.c.l.b16 %v2666
  %v2699 = vunpack.c.l.b16 %v2667
  %v2700 = vunpack.c.l.b16 %v2668
  %v2701 = vunpack.c.l.b16 %v2669
  %v2702 = vunpack.c.l.b16 %v2670
  %v2703 = vunpack.c.l.b16 %v2671
  %v2704 = vunpack.c.l.b16 %v2672
  %v2705 = vunpack.c.l.b16 %v2673
  %v2706 = vunpack.c.l.b16 %v2674
  %v2707 = vunpack.c.l.b16 %v2675
  %v2708 = vunpack.c.l.b16 %v2676
  %v2709 = vpack.c.b16 %v2694, %v2693
  %v2710 = vpack.c.b16 %v2696, %v2695
  %v2711 = vpack.c.b16 %v2698, %v2697
  %v2712 = vpack.c.b16 %v2700, %v2699
  %v2713 = vpack.c.b16 %v2702, %v2701
  %v2714 = vpack.c.b16 %v2704, %v2703
  %v2715 = vpack.c.b16 %v2706, %v2705
  %v2716 = vpack.c.b16 %v2708, %v2707
  %2725 = vmatprep.subr.bf16.mxu0 0
  %2726 = vmatpush1.bf16.msra.mxu0 %v2716
  %2727 = vmatprep.subr.bf16.mxu0 0
  %2728 = vmatpush1.bf16.msra.mxu0 %v2715
  %2729 = vmatprep.subr.bf16.mxu0 0
  %2730 = vmatpush1.bf16.msra.mxu0 %v2714
  %2731 = vmatprep.subr.bf16.mxu0 0
  %2732 = vmatpush1.bf16.msra.mxu0 %v2713
  %2733 = vmatprep.subr.bf16.mxu0 0
  %2734 = vmatpush1.bf16.msra.mxu0 %v2712
  %2735 = vmatprep.subr.bf16.mxu0 0
  %2736 = vmatpush1.bf16.msra.mxu0 %v2711
  %2737 = vmatprep.subr.bf16.mxu0 0
  %2738 = vmatpush1.bf16.msra.mxu0 %v2710
  %2739 = vmatprep.subr.bf16.mxu0 0
  %2740 = vmatpush1.bf16.msra.mxu0 %v2709
  %2741 = vmatprep.subr.bf16.mxu0 0
  %2742 = vmatpush2.bf16.msra.mxu0 0
  %2743 = vmatprep.subr.bf16.mxu0 0
  %2744 = vmatpush2.bf16.msra.mxu0 0
  %2745 = vmatprep.subr.bf16.mxu0 0
  %2746 = vmatpush2.bf16.msra.mxu0 0
  %2747 = vmatprep.subr.bf16.mxu0 0
  %2748 = vmatpush2.bf16.msra.mxu0 0
  %2749 = vmatprep.subr.bf16.mxu0 0
  %2750 = vmatpush2.bf16.msra.mxu0 0
  %2751 = vmatprep.subr.bf16.mxu0 0
  %2752 = vmatpush2.bf16.msra.mxu0 0
  %2753 = vmatprep.subr.bf16.mxu0 0
  %2754 = vmatpush2.bf16.msra.mxu0 0
  %2755 = vmatprep.subr.bf16.mxu0 0
  %2756 = vmatpush2.bf16.msra.mxu0 0
  %2757 = vmatprep.mubr.bf16.mxu0 0
  %2758 = vmatmul.mubr.bf16.gmra.mxu0 %v2659
  %v2759 = vpop.f32.mrf.mxu0
  %v2760 = vadd.f32 0.0, %v2759
  %v2761 = vpop.f32.mrf.mxu0
  %v2762 = vpop.f32.mrf.mxu0
  %v2763 = vadd.f32 0.0, %v2762
  %v2764 = vpop.f32.mrf.mxu0
  %2765 = vmatprep.mubr.bf16.mxu0 0
  %2766 = vmatmul.mubr.bf16.gmra.mxu0 %v2660
  %v2767 = vpop.f32.mrf.mxu0
  %v2768 = vadd.f32 0.0, %v2767
  %v2769 = vpop.f32.mrf.mxu0
  %v2770 = vpop.f32.mrf.mxu0
  %v2771 = vadd.f32 0.0, %v2770
  %v2772 = vpop.f32.mrf.mxu0
  %2773 = vdwg.mxu0
  %v2774 = vadd.f32 %v2760, %v2763
  %v2775 = vadd.f32 %v2774, %v2768
  %v2776 = vadd.f32 %v2775, %v2771
  %v2777 = vrot.slane %v2776, 4
  %v2778 = vadd.f32 %v2776, %v2777
  %v2779 = vrot.slane %v2778, 2
  %v2780 = vadd.f32 %v2778, %v2779
  %v2781 = vrot.slane %v2780, 1
  %v2782 = vadd.f32 %v2780, %v2781
  %2783 = vrot.lane.b32.xlu0 %v2782, 8
  %v2784 = vpop.permute.xlu0 %2783
  %v2785 = vadd.f32 %v2782, %v2784
  %2786 = vrot.lane.b32.xlu0 %v2785, 16
  %v2787 = vpop.permute.xlu0 %2786
  %v2788 = vadd.f32 %v2785, %v2787
  %2789 = vrot.lane.b32.xlu0 %v2788, 32
  %v2790 = vpop.permute.xlu0 %2789
  %v2791 = vadd.f32 %v2788, %v2790
  %2792 = vrot.lane.b32.xlu0 %v2791, 64
  %v2793 = vpop.permute.xlu0 %2792
  %v2794 = vadd.f32 %v2791, %v2793
  %v2795 = vmul.f32 %v2794, 0.001953125
  %v2796 = vlaneseq
  %v2797 = vshrl.u32 %v2796, 7
  %v2798 = vsub.s32 0, %v2797
  %v2799 = vrot.slane %v2795, %v2798
  %v2800 = vsub.f32 %v2760, %v2799
  %v2801 = vsub.f32 %v2763, %v2799
  %v2802 = vsub.f32 %v2768, %v2799
  %v2803 = vsub.f32 %v2771, %v2799
  %v2804 = vmul.f32 %v2800, %v2800
  %v2805 = vmul.f32 %v2801, %v2801
  %v2806 = vmul.f32 %v2802, %v2802
  %v2807 = vmul.f32 %v2803, %v2803
  %v2808 = vadd.f32 %v2804, %v2805
  %v2809 = vadd.f32 %v2808, %v2806
  %v2810 = vadd.f32 %v2809, %v2807
  %v2811 = vrot.slane %v2810, 4
  %v2812 = vadd.f32 %v2810, %v2811
  %v2813 = vrot.slane %v2812, 2
  %v2814 = vadd.f32 %v2812, %v2813
  %v2815 = vrot.slane %v2814, 1
  %v2816 = vadd.f32 %v2814, %v2815
  %2817 = vrot.lane.b32.xlu0 %v2816, 8
  %v2818 = vpop.permute.xlu0 %2817
  %v2819 = vadd.f32 %v2816, %v2818
  %2820 = vrot.lane.b32.xlu0 %v2819, 16
  %v2821 = vpop.permute.xlu0 %2820
  %v2822 = vadd.f32 %v2819, %v2821
  %2823 = vrot.lane.b32.xlu0 %v2822, 32
  %v2824 = vpop.permute.xlu0 %2823
  %v2825 = vadd.f32 %v2822, %v2824
  %2826 = vrot.lane.b32.xlu0 %v2825, 64
  %v2827 = vpop.permute.xlu0 %2826
  %v2828 = vadd.f32 %v2825, %v2827
  %v2829 = vmul.f32 %v2828, 0.001953125
  %v2830 = vadd.f32 %v2829, 1e-05
  %v2831 = vrsqrt.pop %v2830
  %v2832 = vlaneseq
  %v2833 = vshrl.u32 %v2832, 7
  %v2834 = vsub.s32 0, %v2833
  %v2835 = vrot.slane %v2831, %v2834
  %v2836 = vmul.f32 %v2800, %v2835
  %v2837 = vmul.f32 %v2801, %v2835
  %v2838 = vmul.f32 %v2802, %v2835
  %v2839 = vmul.f32 %v2803, %v2835
  %v2840 = vmax.f32 %v2836, 0.0
  %v2841 = vmax.f32 %v2837, 0.0
  %v2842 = vmax.f32 %v2838, 0.0
  %v2843 = vmax.f32 %v2839, 0.0
  %2844 = vst [vmem:[#allocation2 + $0x8] sm:$0xff] %v2840
  %2845 = vst [vmem:[#allocation2 + $0x10] sm:$0xff] %v2841
  %2846 = vst [vmem:[#allocation2 + $0x28] sm:$0xff] %v2842
  %2847 = vst [vmem:[#allocation2 + $0x30] sm:$0xff] %v2843
  %v2848 = vld [vmem:[#allocation2 + $0x6] sm:$0xff]
  %v2849 = vld [vmem:[#allocation2 + $0xe] sm:$0xff]
  %v2850 = vld [vmem:[#allocation2 + $0x26] sm:$0xff]
  %v2851 = vld [vmem:[#allocation2 + $0x2e] sm:$0xff]
  %2852 = vrot.lane.b32.xlu0 %v2848, 16
  %v2853 = vpop.permute.xlu0 %2852
  %2854 = vrot.lane.b32.xlu0 %v2849, 16
  %v2855 = vpop.permute.xlu0 %2854
  %2856 = vrot.lane.b32.xlu0 %v2850, 16
  %v2857 = vpop.permute.xlu0 %2856
  %2858 = vrot.lane.b32.xlu0 %v2851, 16
  %v2859 = vpop.permute.xlu0 %2858
  %v2860 = vld [vmem:[%s5] sm:$0x1]
  %v2861 = vlaneseq
  %v2862 = vshrl.u32 %v2861, 7
  %v2863 = vsub.s32 0, %v2862
  %v2864 = vrot.slane %v2860, %v2863
  %v2865 = vmul.f32 %v2853, %v2864
  %v2866 = vmul.f32 %v2855, %v2864
  %v2867 = vmul.f32 %v2857, %v2864
  %v2868 = vmul.f32 %v2859, %v2864
  %v2869 = vadd.f32 %v2865, 0.0
  %v2870 = vadd.f32 %v2866, 0.0
  %v2871 = vadd.f32 %v2867, 0.0
  %v2872 = vadd.f32 %v2868, 0.0
  %2873 = vrot.lane.b32.xlu0 %v2848, 8
  %v2874 = vpop.permute.xlu0 %2873
  %2875 = vrot.lane.b32.xlu0 %v2849, 8
  %v2876 = vpop.permute.xlu0 %2875
  %2877 = vrot.lane.b32.xlu0 %v2850, 8
  %v2878 = vpop.permute.xlu0 %2877
  %2879 = vrot.lane.b32.xlu0 %v2851, 8
  %v2880 = vpop.permute.xlu0 %2879
  %v2881 = vld [vmem:[%s5 + $0x1] sm:$0x1]
  %v2882 = vlaneseq
  %v2883 = vshrl.u32 %v2882, 7
  %v2884 = vsub.s32 0, %v2883
  %v2885 = vrot.slane %v2881, %v2884
  %v2886 = vmul.f32 %v2874, %v2885
  %v2887 = vmul.f32 %v2876, %v2885
  %v2888 = vmul.f32 %v2878, %v2885
  %v2889 = vmul.f32 %v2880, %v2885
  %v2890 = vadd.f32 %v2869, %v2886
  %v2891 = vadd.f32 %v2870, %v2887
  %v2892 = vadd.f32 %v2871, %v2888
  %v2893 = vadd.f32 %v2872, %v2889
  %v2894 = vld [vmem:[%s5 + $0x2] sm:$0x1]
  %v2895 = vlaneseq
  %v2896 = vshrl.u32 %v2895, 7
  %v2897 = vsub.s32 0, %v2896
  %v2898 = vrot.slane %v2894, %v2897
  %v2899 = vmul.f32 %v2848, %v2898
  %v2900 = vmul.f32 %v2849, %v2898
  %v2901 = vmul.f32 %v2850, %v2898
  %v2902 = vmul.f32 %v2851, %v2898
  %v2903 = vadd.f32 %v2890, %v2899
  %v2904 = vadd.f32 %v2891, %v2900
  %v2905 = vadd.f32 %v2892, %v2901
  %v2906 = vadd.f32 %v2893, %v2902
  %2907 = vrot.lane.b32.xlu0 %v2848, 120
  %v2908 = vpop.permute.xlu0 %2907
  %2909 = vrot.lane.b32.xlu0 %v2849, 120
  %v2910 = vpop.permute.xlu0 %2909
  %2911 = vrot.lane.b32.xlu0 %v2850, 120
  %v2912 = vpop.permute.xlu0 %2911
  %2913 = vrot.lane.b32.xlu0 %v2851, 120
  %v2914 = vpop.permute.xlu0 %2913
  %v2915 = vld [vmem:[%s5 + $0x3] sm:$0x1]
  %v2916 = vlaneseq
  %v2917 = vshrl.u32 %v2916, 7
  %v2918 = vsub.s32 0, %v2917
  %v2919 = vrot.slane %v2915, %v2918
  %v2920 = vmul.f32 %v2908, %v2919
  %v2921 = vmul.f32 %v2910, %v2919
  %v2922 = vmul.f32 %v2912, %v2919
  %v2923 = vmul.f32 %v2914, %v2919
  %v2924 = vadd.f32 %v2903, %v2920
  %v2925 = vadd.f32 %v2904, %v2921
  %v2926 = vadd.f32 %v2905, %v2922
  %v2927 = vadd.f32 %v2906, %v2923
  %2928 = vrot.lane.b32.xlu0 %v2848, 112
  %v2929 = vpop.permute.xlu0 %2928
  %2930 = vrot.lane.b32.xlu0 %v2849, 112
  %v2931 = vpop.permute.xlu0 %2930
  %2932 = vrot.lane.b32.xlu0 %v2850, 112
  %v2933 = vpop.permute.xlu0 %2932
  %2934 = vrot.lane.b32.xlu0 %v2851, 112
  %v2935 = vpop.permute.xlu0 %2934
  %v2936 = vld [vmem:[%s5 + $0x4] sm:$0x1]
  %v2937 = vlaneseq
  %v2938 = vshrl.u32 %v2937, 7
  %v2939 = vsub.s32 0, %v2938
  %v2940 = vrot.slane %v2936, %v2939
  %v2941 = vmul.f32 %v2929, %v2940
  %v2942 = vmul.f32 %v2931, %v2940
  %v2943 = vmul.f32 %v2933, %v2940
  %v2944 = vmul.f32 %v2935, %v2940
  %v2945 = vadd.f32 %v2924, %v2941
  %v2946 = vadd.f32 %v2925, %v2942
  %v2947 = vadd.f32 %v2926, %v2943
  %v2948 = vadd.f32 %v2927, %v2944
  %v2949 = vld [vmem:[#allocation2 + $0x7] sm:$0xff]
  %v2950 = vld [vmem:[#allocation2 + $0xf] sm:$0xff]
  %v2951 = vld [vmem:[#allocation2 + $0x27] sm:$0xff]
  %v2952 = vld [vmem:[#allocation2 + $0x2f] sm:$0xff]
  %2953 = vrot.lane.b32.xlu0 %v2949, 16
  %v2954 = vpop.permute.xlu0 %2953
  %2955 = vrot.lane.b32.xlu0 %v2950, 16
  %v2956 = vpop.permute.xlu0 %2955
  %2957 = vrot.lane.b32.xlu0 %v2951, 16
  %v2958 = vpop.permute.xlu0 %2957
  %2959 = vrot.lane.b32.xlu0 %v2952, 16
  %v2960 = vpop.permute.xlu0 %2959
  %v2961 = vld [vmem:[%s5 + $0x5] sm:$0x1]
  %v2962 = vlaneseq
  %v2963 = vshrl.u32 %v2962, 7
  %v2964 = vsub.s32 0, %v2963
  %v2965 = vrot.slane %v2961, %v2964
  %v2966 = vmul.f32 %v2954, %v2965
  %v2967 = vmul.f32 %v2956, %v2965
  %v2968 = vmul.f32 %v2958, %v2965
  %v2969 = vmul.f32 %v2960, %v2965
  %v2970 = vadd.f32 %v2945, %v2966
  %v2971 = vadd.f32 %v2946, %v2967
  %v2972 = vadd.f32 %v2947, %v2968
  %v2973 = vadd.f32 %v2948, %v2969
  %2974 = vrot.lane.b32.xlu0 %v2949, 8
  %v2975 = vpop.permute.xlu0 %2974
  %2976 = vrot.lane.b32.xlu0 %v2950, 8
  %v2977 = vpop.permute.xlu0 %2976
  %2978 = vrot.lane.b32.xlu0 %v2951, 8
  %v2979 = vpop.permute.xlu0 %2978
  %2980 = vrot.lane.b32.xlu0 %v2952, 8
  %v2981 = vpop.permute.xlu0 %2980
  %v2982 = vld [vmem:[%s5 + $0x6] sm:$0x1]
  %v2983 = vlaneseq
  %v2984 = vshrl.u32 %v2983, 7
  %v2985 = vsub.s32 0, %v2984
  %v2986 = vrot.slane %v2982, %v2985
  %v2987 = vmul.f32 %v2975, %v2986
  %v2988 = vmul.f32 %v2977, %v2986
  %v2989 = vmul.f32 %v2979, %v2986
  %v2990 = vmul.f32 %v2981, %v2986
  %v2991 = vadd.f32 %v2970, %v2987
  %v2992 = vadd.f32 %v2971, %v2988
  %v2993 = vadd.f32 %v2972, %v2989
  %v2994 = vadd.f32 %v2973, %v2990
  %v2995 = vld [vmem:[%s5 + $0x7] sm:$0x1]
  %v2996 = vlaneseq
  %v2997 = vshrl.u32 %v2996, 7
  %v2998 = vsub.s32 0, %v2997
  %v2999 = vrot.slane %v2995, %v2998
  %v3000 = vmul.f32 %v2949, %v2999
  %v3001 = vmul.f32 %v2950, %v2999
  %v3002 = vmul.f32 %v2951, %v2999
  %v3003 = vmul.f32 %v2952, %v2999
  %v3004 = vadd.f32 %v2991, %v3000
  %v3005 = vadd.f32 %v2992, %v3001
  %v3006 = vadd.f32 %v2993, %v3002
  %v3007 = vadd.f32 %v2994, %v3003
  %3008 = vrot.lane.b32.xlu0 %v2949, 120
  %v3009 = vpop.permute.xlu0 %3008
  %3010 = vrot.lane.b32.xlu0 %v2950, 120
  %v3011 = vpop.permute.xlu0 %3010
  %3012 = vrot.lane.b32.xlu0 %v2951, 120
  %v3013 = vpop.permute.xlu0 %3012
  %3014 = vrot.lane.b32.xlu0 %v2952, 120
  %v3015 = vpop.permute.xlu0 %3014
  %v3016 = vld [vmem:[%s5 + $0x8] sm:$0x1]
  %v3017 = vlaneseq
  %v3018 = vshrl.u32 %v3017, 7
  %v3019 = vsub.s32 0, %v3018
  %v3020 = vrot.slane %v3016, %v3019
  %v3021 = vmul.f32 %v3009, %v3020
  %v3022 = vmul.f32 %v3011, %v3020
  %v3023 = vmul.f32 %v3013, %v3020
  %v3024 = vmul.f32 %v3015, %v3020
  %v3025 = vadd.f32 %v3004, %v3021
  %v3026 = vadd.f32 %v3005, %v3022
  %v3027 = vadd.f32 %v3006, %v3023
  %v3028 = vadd.f32 %v3007, %v3024
  %3029 = vrot.lane.b32.xlu0 %v2949, 112
  %v3030 = vpop.permute.xlu0 %3029
  %3031 = vrot.lane.b32.xlu0 %v2950, 112
  %v3032 = vpop.permute.xlu0 %3031
  %3033 = vrot.lane.b32.xlu0 %v2951, 112
  %v3034 = vpop.permute.xlu0 %3033
  %3035 = vrot.lane.b32.xlu0 %v2952, 112
  %v3036 = vpop.permute.xlu0 %3035
  %v3037 = vld [vmem:[%s5 + $0x9] sm:$0x1]
  %v3038 = vlaneseq
  %v3039 = vshrl.u32 %v3038, 7
  %v3040 = vsub.s32 0, %v3039
  %v3041 = vrot.slane %v3037, %v3040
  %v3042 = vmul.f32 %v3030, %v3041
  %v3043 = vmul.f32 %v3032, %v3041
  %v3044 = vmul.f32 %v3034, %v3041
  %v3045 = vmul.f32 %v3036, %v3041
  %v3046 = vadd.f32 %v3025, %v3042
  %v3047 = vadd.f32 %v3026, %v3043
  %v3048 = vadd.f32 %v3027, %v3044
  %v3049 = vadd.f32 %v3028, %v3045
  %v3050 = vld [vmem:[#allocation2 + $0x8] sm:$0xff]
  %v3051 = vld [vmem:[#allocation2 + $0x10] sm:$0xff]
  %v3052 = vld [vmem:[#allocation2 + $0x28] sm:$0xff]
  %v3053 = vld [vmem:[#allocation2 + $0x30] sm:$0xff]
  %3054 = vrot.lane.b32.xlu0 %v3050, 16
  %v3055 = vpop.permute.xlu0 %3054
  %3056 = vrot.lane.b32.xlu0 %v3051, 16
  %v3057 = vpop.permute.xlu0 %3056
  %3058 = vrot.lane.b32.xlu0 %v3052, 16
  %v3059 = vpop.permute.xlu0 %3058
  %3060 = vrot.lane.b32.xlu0 %v3053, 16
  %v3061 = vpop.permute.xlu0 %3060
  %v3062 = vld [vmem:[%s5 + $0xa] sm:$0x1]
  %v3063 = vlaneseq
  %v3064 = vshrl.u32 %v3063, 7
  %v3065 = vsub.s32 0, %v3064
  %v3066 = vrot.slane %v3062, %v3065
  %v3067 = vmul.f32 %v3055, %v3066
  %v3068 = vmul.f32 %v3057, %v3066
  %v3069 = vmul.f32 %v3059, %v3066
  %v3070 = vmul.f32 %v3061, %v3066
  %v3071 = vadd.f32 %v3046, %v3067
  %v3072 = vadd.f32 %v3047, %v3068
  %v3073 = vadd.f32 %v3048, %v3069
  %v3074 = vadd.f32 %v3049, %v3070
  %3075 = vrot.lane.b32.xlu0 %v3050, 8
  %v3076 = vpop.permute.xlu0 %3075
  %3077 = vrot.lane.b32.xlu0 %v3051, 8
  %v3078 = vpop.permute.xlu0 %3077
  %3079 = vrot.lane.b32.xlu0 %v3052, 8
  %v3080 = vpop.permute.xlu0 %3079
  %3081 = vrot.lane.b32.xlu0 %v3053, 8
  %v3082 = vpop.permute.xlu0 %3081
  %v3083 = vld [vmem:[%s5 + $0xb] sm:$0x1]
  %v3084 = vlaneseq
  %v3085 = vshrl.u32 %v3084, 7
  %v3086 = vsub.s32 0, %v3085
  %v3087 = vrot.slane %v3083, %v3086
  %v3088 = vmul.f32 %v3076, %v3087
  %v3089 = vmul.f32 %v3078, %v3087
  %v3090 = vmul.f32 %v3080, %v3087
  %v3091 = vmul.f32 %v3082, %v3087
  %v3092 = vadd.f32 %v3071, %v3088
  %v3093 = vadd.f32 %v3072, %v3089
  %v3094 = vadd.f32 %v3073, %v3090
  %v3095 = vadd.f32 %v3074, %v3091
  %v3096 = vld [vmem:[%s5 + $0xc] sm:$0x1]
  %v3097 = vlaneseq
  %v3098 = vshrl.u32 %v3097, 7
  %v3099 = vsub.s32 0, %v3098
  %v3100 = vrot.slane %v3096, %v3099
  %v3101 = vmul.f32 %v3050, %v3100
  %v3102 = vmul.f32 %v3051, %v3100
  %v3103 = vmul.f32 %v3052, %v3100
  %v3104 = vmul.f32 %v3053, %v3100
  %v3105 = vadd.f32 %v3092, %v3101
  %v3106 = vadd.f32 %v3093, %v3102
  %v3107 = vadd.f32 %v3094, %v3103
  %v3108 = vadd.f32 %v3095, %v3104
  %3109 = vrot.lane.b32.xlu0 %v3050, 120
  %v3110 = vpop.permute.xlu0 %3109
  %3111 = vrot.lane.b32.xlu0 %v3051, 120
  %v3112 = vpop.permute.xlu0 %3111
  %3113 = vrot.lane.b32.xlu0 %v3052, 120
  %v3114 = vpop.permute.xlu0 %3113
  %3115 = vrot.lane.b32.xlu0 %v3053, 120
  %v3116 = vpop.permute.xlu0 %3115
  %v3117 = vld [vmem:[%s5 + $0xd] sm:$0x1]
  %v3118 = vlaneseq
  %v3119 = vshrl.u32 %v3118, 7
  %v3120 = vsub.s32 0, %v3119
  %v3121 = vrot.slane %v3117, %v3120
  %v3122 = vmul.f32 %v3110, %v3121
  %v3123 = vmul.f32 %v3112, %v3121
  %v3124 = vmul.f32 %v3114, %v3121
  %v3125 = vmul.f32 %v3116, %v3121
  %v3126 = vadd.f32 %v3105, %v3122
  %v3127 = vadd.f32 %v3106, %v3123
  %v3128 = vadd.f32 %v3107, %v3124
  %v3129 = vadd.f32 %v3108, %v3125
  %3130 = vrot.lane.b32.xlu0 %v3050, 112
  %v3131 = vpop.permute.xlu0 %3130
  %3132 = vrot.lane.b32.xlu0 %v3051, 112
  %v3133 = vpop.permute.xlu0 %3132
  %3134 = vrot.lane.b32.xlu0 %v3052, 112
  %v3135 = vpop.permute.xlu0 %3134
  %3136 = vrot.lane.b32.xlu0 %v3053, 112
  %v3137 = vpop.permute.xlu0 %3136
  %v3138 = vld [vmem:[%s5 + $0xe] sm:$0x1]
  %v3139 = vlaneseq
  %v3140 = vshrl.u32 %v3139, 7
  %v3141 = vsub.s32 0, %v3140
  %v3142 = vrot.slane %v3138, %v3141
  %v3143 = vmul.f32 %v3131, %v3142
  %v3144 = vmul.f32 %v3133, %v3142
  %v3145 = vmul.f32 %v3135, %v3142
  %v3146 = vmul.f32 %v3137, %v3142
  %v3147 = vadd.f32 %v3126, %v3143
  %v3148 = vadd.f32 %v3127, %v3144
  %v3149 = vadd.f32 %v3128, %v3145
  %v3150 = vadd.f32 %v3129, %v3146
  %v3151 = vld [vmem:[#allocation2 + $0x9] sm:$0xff]
  %v3152 = vld [vmem:[#allocation2 + $0x11] sm:$0xff]
  %v3153 = vld [vmem:[#allocation2 + $0x29] sm:$0xff]
  %v3154 = vld [vmem:[#allocation2 + $0x31] sm:$0xff]
  %3155 = vrot.lane.b32.xlu0 %v3151, 16
  %v3156 = vpop.permute.xlu0 %3155
  %3157 = vrot.lane.b32.xlu0 %v3152, 16
  %v3158 = vpop.permute.xlu0 %3157
  %3159 = vrot.lane.b32.xlu0 %v3153, 16
  %v3160 = vpop.permute.xlu0 %3159
  %3161 = vrot.lane.b32.xlu0 %v3154, 16
  %v3162 = vpop.permute.xlu0 %3161
  %v3163 = vld [vmem:[%s5 + $0xf] sm:$0x1]
  %v3164 = vlaneseq
  %v3165 = vshrl.u32 %v3164, 7
  %v3166 = vsub.s32 0, %v3165
  %v3167 = vrot.slane %v3163, %v3166
  %v3168 = vmul.f32 %v3156, %v3167
  %v3169 = vmul.f32 %v3158, %v3167
  %v3170 = vmul.f32 %v3160, %v3167
  %v3171 = vmul.f32 %v3162, %v3167
  %v3172 = vadd.f32 %v3147, %v3168
  %v3173 = vadd.f32 %v3148, %v3169
  %v3174 = vadd.f32 %v3149, %v3170
  %v3175 = vadd.f32 %v3150, %v3171
  %3176 = vrot.lane.b32.xlu0 %v3151, 8
  %v3177 = vpop.permute.xlu0 %3176
  %3178 = vrot.lane.b32.xlu0 %v3152, 8
  %v3179 = vpop.permute.xlu0 %3178
  %3180 = vrot.lane.b32.xlu0 %v3153, 8
  %v3181 = vpop.permute.xlu0 %3180
  %3182 = vrot.lane.b32.xlu0 %v3154, 8
  %v3183 = vpop.permute.xlu0 %3182
  %v3184 = vld [vmem:[%s5 + $0x10] sm:$0x1]
  %v3185 = vlaneseq
  %v3186 = vshrl.u32 %v3185, 7
  %v3187 = vsub.s32 0, %v3186
  %v3188 = vrot.slane %v3184, %v3187
  %v3189 = vmul.f32 %v3177, %v3188
  %v3190 = vmul.f32 %v3179, %v3188
  %v3191 = vmul.f32 %v3181, %v3188
  %v3192 = vmul.f32 %v3183, %v3188
  %v3193 = vadd.f32 %v3172, %v3189
  %v3194 = vadd.f32 %v3173, %v3190
  %v3195 = vadd.f32 %v3174, %v3191
  %v3196 = vadd.f32 %v3175, %v3192
  %v3197 = vld [vmem:[%s5 + $0x11] sm:$0x1]
  %v3198 = vlaneseq
  %v3199 = vshrl.u32 %v3198, 7
  %v3200 = vsub.s32 0, %v3199
  %v3201 = vrot.slane %v3197, %v3200
  %v3202 = vmul.f32 %v3151, %v3201
  %v3203 = vmul.f32 %v3152, %v3201
  %v3204 = vmul.f32 %v3153, %v3201
  %v3205 = vmul.f32 %v3154, %v3201
  %v3206 = vadd.f32 %v3193, %v3202
  %v3207 = vadd.f32 %v3194, %v3203
  %v3208 = vadd.f32 %v3195, %v3204
  %v3209 = vadd.f32 %v3196, %v3205
  %3210 = vrot.lane.b32.xlu0 %v3151, 120
  %v3211 = vpop.permute.xlu0 %3210
  %3212 = vrot.lane.b32.xlu0 %v3152, 120
  %v3213 = vpop.permute.xlu0 %3212
  %3214 = vrot.lane.b32.xlu0 %v3153, 120
  %v3215 = vpop.permute.xlu0 %3214
  %3216 = vrot.lane.b32.xlu0 %v3154, 120
  %v3217 = vpop.permute.xlu0 %3216
  %v3218 = vld [vmem:[%s5 + $0x12] sm:$0x1]
  %v3219 = vlaneseq
  %v3220 = vshrl.u32 %v3219, 7
  %v3221 = vsub.s32 0, %v3220
  %v3222 = vrot.slane %v3218, %v3221
  %v3223 = vmul.f32 %v3211, %v3222
  %v3224 = vmul.f32 %v3213, %v3222
  %v3225 = vmul.f32 %v3215, %v3222
  %v3226 = vmul.f32 %v3217, %v3222
  %v3227 = vadd.f32 %v3206, %v3223
  %v3228 = vadd.f32 %v3207, %v3224
  %v3229 = vadd.f32 %v3208, %v3225
  %v3230 = vadd.f32 %v3209, %v3226
  %3231 = vrot.lane.b32.xlu0 %v3151, 112
  %v3232 = vpop.permute.xlu0 %3231
  %3233 = vrot.lane.b32.xlu0 %v3152, 112
  %v3234 = vpop.permute.xlu0 %3233
  %3235 = vrot.lane.b32.xlu0 %v3153, 112
  %v3236 = vpop.permute.xlu0 %3235
  %3237 = vrot.lane.b32.xlu0 %v3154, 112
  %v3238 = vpop.permute.xlu0 %3237
  %v3239 = vld [vmem:[%s5 + $0x13] sm:$0x1]
  %v3240 = vlaneseq
  %v3241 = vshrl.u32 %v3240, 7
  %v3242 = vsub.s32 0, %v3241
  %v3243 = vrot.slane %v3239, %v3242
  %v3244 = vmul.f32 %v3232, %v3243
  %v3245 = vmul.f32 %v3234, %v3243
  %v3246 = vmul.f32 %v3236, %v3243
  %v3247 = vmul.f32 %v3238, %v3243
  %v3248 = vadd.f32 %v3227, %v3244
  %v3249 = vadd.f32 %v3228, %v3245
  %v3250 = vadd.f32 %v3229, %v3246
  %v3251 = vadd.f32 %v3230, %v3247
  %v3252 = vld [vmem:[#allocation2 + $0xa] sm:$0xff]
  %v3253 = vld [vmem:[#allocation2 + $0x12] sm:$0xff]
  %v3254 = vld [vmem:[#allocation2 + $0x2a] sm:$0xff]
  %v3255 = vld [vmem:[#allocation2 + $0x32] sm:$0xff]
  %3256 = vrot.lane.b32.xlu0 %v3252, 16
  %v3257 = vpop.permute.xlu0 %3256
  %3258 = vrot.lane.b32.xlu0 %v3253, 16
  %v3259 = vpop.permute.xlu0 %3258
  %3260 = vrot.lane.b32.xlu0 %v3254, 16
  %v3261 = vpop.permute.xlu0 %3260
  %3262 = vrot.lane.b32.xlu0 %v3255, 16
  %v3263 = vpop.permute.xlu0 %3262
  %v3264 = vld [vmem:[%s5 + $0x14] sm:$0x1]
  %v3265 = vlaneseq
  %v3266 = vshrl.u32 %v3265, 7
  %v3267 = vsub.s32 0, %v3266
  %v3268 = vrot.slane %v3264, %v3267
  %v3269 = vmul.f32 %v3257, %v3268
  %v3270 = vmul.f32 %v3259, %v3268
  %v3271 = vmul.f32 %v3261, %v3268
  %v3272 = vmul.f32 %v3263, %v3268
  %v3273 = vadd.f32 %v3248, %v3269
  %v3274 = vadd.f32 %v3249, %v3270
  %v3275 = vadd.f32 %v3250, %v3271
  %v3276 = vadd.f32 %v3251, %v3272
  %3277 = vrot.lane.b32.xlu0 %v3252, 8
  %v3278 = vpop.permute.xlu0 %3277
  %3279 = vrot.lane.b32.xlu0 %v3253, 8
  %v3280 = vpop.permute.xlu0 %3279
  %3281 = vrot.lane.b32.xlu0 %v3254, 8
  %v3282 = vpop.permute.xlu0 %3281
  %3283 = vrot.lane.b32.xlu0 %v3255, 8
  %v3284 = vpop.permute.xlu0 %3283
  %v3285 = vld [vmem:[%s5 + $0x15] sm:$0x1]
  %v3286 = vlaneseq
  %v3287 = vshrl.u32 %v3286, 7
  %v3288 = vsub.s32 0, %v3287
  %v3289 = vrot.slane %v3285, %v3288
  %v3290 = vmul.f32 %v3278, %v3289
  %v3291 = vmul.f32 %v3280, %v3289
  %v3292 = vmul.f32 %v3282, %v3289
  %v3293 = vmul.f32 %v3284, %v3289
  %v3294 = vadd.f32 %v3273, %v3290
  %v3295 = vadd.f32 %v3274, %v3291
  %v3296 = vadd.f32 %v3275, %v3292
  %v3297 = vadd.f32 %v3276, %v3293
  %v3298 = vld [vmem:[%s5 + $0x16] sm:$0x1]
  %v3299 = vlaneseq
  %v3300 = vshrl.u32 %v3299, 7
  %v3301 = vsub.s32 0, %v3300
  %v3302 = vrot.slane %v3298, %v3301
  %v3303 = vmul.f32 %v3252, %v3302
  %v3304 = vmul.f32 %v3253, %v3302
  %v3305 = vmul.f32 %v3254, %v3302
  %v3306 = vmul.f32 %v3255, %v3302
  %v3307 = vadd.f32 %v3294, %v3303
  %v3308 = vadd.f32 %v3295, %v3304
  %v3309 = vadd.f32 %v3296, %v3305
  %v3310 = vadd.f32 %v3297, %v3306
  %3311 = vrot.lane.b32.xlu0 %v3252, 120
  %v3312 = vpop.permute.xlu0 %3311
  %3313 = vrot.lane.b32.xlu0 %v3253, 120
  %v3314 = vpop.permute.xlu0 %3313
  %3315 = vrot.lane.b32.xlu0 %v3254, 120
  %v3316 = vpop.permute.xlu0 %3315
  %3317 = vrot.lane.b32.xlu0 %v3255, 120
  %v3318 = vpop.permute.xlu0 %3317
  %v3319 = vld [vmem:[%s5 + $0x17] sm:$0x1]
  %v3320 = vlaneseq
  %v3321 = vshrl.u32 %v3320, 7
  %v3322 = vsub.s32 0, %v3321
  %v3323 = vrot.slane %v3319, %v3322
  %v3324 = vmul.f32 %v3312, %v3323
  %v3325 = vmul.f32 %v3314, %v3323
  %v3326 = vmul.f32 %v3316, %v3323
  %v3327 = vmul.f32 %v3318, %v3323
  %v3328 = vadd.f32 %v3307, %v3324
  %v3329 = vadd.f32 %v3308, %v3325
  %v3330 = vadd.f32 %v3309, %v3326
  %v3331 = vadd.f32 %v3310, %v3327
  %3332 = vrot.lane.b32.xlu0 %v3252, 112
  %v3333 = vpop.permute.xlu0 %3332
  %3334 = vrot.lane.b32.xlu0 %v3253, 112
  %v3335 = vpop.permute.xlu0 %3334
  %3336 = vrot.lane.b32.xlu0 %v3254, 112
  %v3337 = vpop.permute.xlu0 %3336
  %3338 = vrot.lane.b32.xlu0 %v3255, 112
  %v3339 = vpop.permute.xlu0 %3338
  %v3340 = vld [vmem:[%s5 + $0x18] sm:$0x1]
  %v3341 = vlaneseq
  %v3342 = vshrl.u32 %v3341, 7
  %v3343 = vsub.s32 0, %v3342
  %v3344 = vrot.slane %v3340, %v3343
  %v3345 = vmul.f32 %v3333, %v3344
  %v3346 = vmul.f32 %v3335, %v3344
  %v3347 = vmul.f32 %v3337, %v3344
  %v3348 = vmul.f32 %v3339, %v3344
  %v3349 = vadd.f32 %v3328, %v3345
  %v3350 = vadd.f32 %v3329, %v3346
  %v3351 = vadd.f32 %v3330, %v3347
  %v3352 = vadd.f32 %v3331, %v3348
  %v3353 = vpack.c.bf16 %v3350, %v3349
  %v3354 = vpack.c.bf16 %v3352, %v3351
  %v3355 = vld [vmem:[%s11] sm:$0xf]
  %v3356 = vld [vmem:[%s11 + $0x4] sm:$0xf]
  %v3357 = vld [vmem:[%s11 + $0x8] sm:$0xf]
  %v3358 = vld [vmem:[%s11 + $0xc] sm:$0xf]
  %v3359 = vld [vmem:[%s11 + $0x10] sm:$0xf]
  %v3360 = vld [vmem:[%s11 + $0x14] sm:$0xf]
  %v3361 = vld [vmem:[%s11 + $0x18] sm:$0xf]
  %v3362 = vld [vmem:[%s11 + $0x1c] sm:$0xf]
  %v3363 = vld [vmem:[%s11 + $0x20] sm:$0xf]
  %v3364 = vld [vmem:[%s11 + $0x24] sm:$0xf]
  %v3365 = vld [vmem:[%s11 + $0x28] sm:$0xf]
  %v3366 = vld [vmem:[%s11 + $0x2c] sm:$0xf]
  %v3367 = vld [vmem:[%s11 + $0x30] sm:$0xf]
  %v3368 = vld [vmem:[%s11 + $0x34] sm:$0xf]
  %v3369 = vld [vmem:[%s11 + $0x38] sm:$0xf]
  %v3370 = vld [vmem:[%s11 + $0x3c] sm:$0xf]
  %v3387 = vunpack.c.l.b16 %v3355
  %v3388 = vunpack.c.l.b16 %v3356
  %v3389 = vunpack.c.l.b16 %v3357
  %v3390 = vunpack.c.l.b16 %v3358
  %v3391 = vunpack.c.l.b16 %v3359
  %v3392 = vunpack.c.l.b16 %v3360
  %v3393 = vunpack.c.l.b16 %v3361
  %v3394 = vunpack.c.l.b16 %v3362
  %v3395 = vunpack.c.l.b16 %v3363
  %v3396 = vunpack.c.l.b16 %v3364
  %v3397 = vunpack.c.l.b16 %v3365
  %v3398 = vunpack.c.l.b16 %v3366
  %v3399 = vunpack.c.l.b16 %v3367
  %v3400 = vunpack.c.l.b16 %v3368
  %v3401 = vunpack.c.l.b16 %v3369
  %v3402 = vunpack.c.l.b16 %v3370
  %v3403 = vpack.c.b16 %v3388, %v3387
  %v3404 = vpack.c.b16 %v3390, %v3389
  %v3405 = vpack.c.b16 %v3392, %v3391
  %v3406 = vpack.c.b16 %v3394, %v3393
  %v3407 = vpack.c.b16 %v3396, %v3395
  %v3408 = vpack.c.b16 %v3398, %v3397
  %v3409 = vpack.c.b16 %v3400, %v3399
  %v3410 = vpack.c.b16 %v3402, %v3401
  %3419 = vmatprep.subr.bf16.mxu0 0
  %3420 = vmatpush1.bf16.msra.mxu0 %v3410
  %3421 = vmatprep.subr.bf16.mxu0 0
  %3422 = vmatpush1.bf16.msra.mxu0 %v3409
  %3423 = vmatprep.subr.bf16.mxu0 0
  %3424 = vmatpush1.bf16.msra.mxu0 %v3408
  %3425 = vmatprep.subr.bf16.mxu0 0
  %3426 = vmatpush1.bf16.msra.mxu0 %v3407
  %3427 = vmatprep.subr.bf16.mxu0 0
  %3428 = vmatpush1.bf16.msra.mxu0 %v3406
  %3429 = vmatprep.subr.bf16.mxu0 0
  %3430 = vmatpush1.bf16.msra.mxu0 %v3405
  %3431 = vmatprep.subr.bf16.mxu0 0
  %3432 = vmatpush1.bf16.msra.mxu0 %v3404
  %3433 = vmatprep.subr.bf16.mxu0 0
  %3434 = vmatpush1.bf16.msra.mxu0 %v3403
  %3435 = vmatprep.subr.bf16.mxu0 0
  %3436 = vmatpush2.bf16.msra.mxu0 0
  %3437 = vmatprep.subr.bf16.mxu0 0
  %3438 = vmatpush2.bf16.msra.mxu0 0
  %3439 = vmatprep.subr.bf16.mxu0 0
  %3440 = vmatpush2.bf16.msra.mxu0 0
  %3441 = vmatprep.subr.bf16.mxu0 0
  %3442 = vmatpush2.bf16.msra.mxu0 0
  %3443 = vmatprep.subr.bf16.mxu0 0
  %3444 = vmatpush2.bf16.msra.mxu0 0
  %3445 = vmatprep.subr.bf16.mxu0 0
  %3446 = vmatpush2.bf16.msra.mxu0 0
  %3447 = vmatprep.subr.bf16.mxu0 0
  %3448 = vmatpush2.bf16.msra.mxu0 0
  %3449 = vmatprep.subr.bf16.mxu0 0
  %3450 = vmatpush2.bf16.msra.mxu0 0
  %3451 = vmatprep.mubr.bf16.mxu0 0
  %3452 = vmatmul.mubr.bf16.gmra.mxu0 %v3353
  %v3453 = vpop.f32.mrf.mxu0
  %v3454 = vadd.f32 0.0, %v3453
  %v3455 = vpop.f32.mrf.mxu0
  %v3456 = vpop.f32.mrf.mxu0
  %v3457 = vadd.f32 0.0, %v3456
  %v3458 = vpop.f32.mrf.mxu0
  %3459 = vmatprep.mubr.bf16.mxu0 0
  %3460 = vmatmul.mubr.bf16.gmra.mxu0 %v3354
  %v3461 = vpop.f32.mrf.mxu0
  %v3462 = vadd.f32 0.0, %v3461
  %v3463 = vpop.f32.mrf.mxu0
  %v3464 = vpop.f32.mrf.mxu0
  %v3465 = vadd.f32 0.0, %v3464
  %v3466 = vpop.f32.mrf.mxu0
  %3467 = vdwg.mxu0
  %v3468 = vadd.f32 %v3454, %v3457
  %v3469 = vadd.f32 %v3468, %v3462
  %v3470 = vadd.f32 %v3469, %v3465
  %v3471 = vrot.slane %v3470, 4
  %v3472 = vadd.f32 %v3470, %v3471
  %v3473 = vrot.slane %v3472, 2
  %v3474 = vadd.f32 %v3472, %v3473
  %v3475 = vrot.slane %v3474, 1
  %v3476 = vadd.f32 %v3474, %v3475
  %3477 = vrot.lane.b32.xlu0 %v3476, 8
  %v3478 = vpop.permute.xlu0 %3477
  %v3479 = vadd.f32 %v3476, %v3478
  %3480 = vrot.lane.b32.xlu0 %v3479, 16
  %v3481 = vpop.permute.xlu0 %3480
  %v3482 = vadd.f32 %v3479, %v3481
  %3483 = vrot.lane.b32.xlu0 %v3482, 32
  %v3484 = vpop.permute.xlu0 %3483
  %v3485 = vadd.f32 %v3482, %v3484
  %3486 = vrot.lane.b32.xlu0 %v3485, 64
  %v3487 = vpop.permute.xlu0 %3486
  %v3488 = vadd.f32 %v3485, %v3487
  %v3489 = vmul.f32 %v3488, 0.001953125
  %v3490 = vlaneseq
  %v3491 = vshrl.u32 %v3490, 7
  %v3492 = vsub.s32 0, %v3491
  %v3493 = vrot.slane %v3489, %v3492
  %v3494 = vsub.f32 %v3454, %v3493
  %v3495 = vsub.f32 %v3457, %v3493
  %v3496 = vsub.f32 %v3462, %v3493
  %v3497 = vsub.f32 %v3465, %v3493
  %v3498 = vmul.f32 %v3494, %v3494
  %v3499 = vmul.f32 %v3495, %v3495
  %v3500 = vmul.f32 %v3496, %v3496
  %v3501 = vmul.f32 %v3497, %v3497
  %v3502 = vadd.f32 %v3498, %v3499
  %v3503 = vadd.f32 %v3502, %v3500
  %v3504 = vadd.f32 %v3503, %v3501
  %v3505 = vrot.slane %v3504, 4
  %v3506 = vadd.f32 %v3504, %v3505
  %v3507 = vrot.slane %v3506, 2
  %v3508 = vadd.f32 %v3506, %v3507
  %v3509 = vrot.slane %v3508, 1
  %v3510 = vadd.f32 %v3508, %v3509
  %3511 = vrot.lane.b32.xlu0 %v3510, 8
  %v3512 = vpop.permute.xlu0 %3511
  %v3513 = vadd.f32 %v3510, %v3512
  %3514 = vrot.lane.b32.xlu0 %v3513, 16
  %v3515 = vpop.permute.xlu0 %3514
  %v3516 = vadd.f32 %v3513, %v3515
  %3517 = vrot.lane.b32.xlu0 %v3516, 32
  %v3518 = vpop.permute.xlu0 %3517
  %v3519 = vadd.f32 %v3516, %v3518
  %3520 = vrot.lane.b32.xlu0 %v3519, 64
  %v3521 = vpop.permute.xlu0 %3520
  %v3522 = vadd.f32 %v3519, %v3521
  %v3523 = vmul.f32 %v3522, 0.001953125
  %v3524 = vadd.f32 %v3523, 1e-05
  %v3525 = vrsqrt.pop %v3524
  %v3526 = vlaneseq
  %v3527 = vshrl.u32 %v3526, 7
  %v3528 = vsub.s32 0, %v3527
  %v3529 = vrot.slane %v3525, %v3528
  %v3530 = vmul.f32 %v3494, %v3529
  %v3531 = vmul.f32 %v3495, %v3529
  %v3532 = vmul.f32 %v3496, %v3529
  %v3533 = vmul.f32 %v3497, %v3529
  %s3534 = sld [smem:[#allocation4 + $0x5]]
  %v3535 = vstv %s3534
  %v3536 = vmul.f32 %v3535, %v3530
  %v3537 = vmul.f32 %v3535, %v3531
  %v3538 = vmul.f32 %v3535, %v3532
  %v3539 = vmul.f32 %v3535, %v3533
  %v3540 = vadd.f32 %v2655, %v3536
  %v3541 = vadd.f32 %v2656, %v3537
  %v3542 = vadd.f32 %v2657, %v3538
  %v3543 = vadd.f32 %v2658, %v3539
  %3544 = vst [vmem:[%s14] sm:$0xff] %v3540
  %3545 = vst [vmem:[%s14 + $0x8] sm:$0xff] %v3541
  %3546 = vst [vmem:[%s14 + $0x10] sm:$0xff] %v3542
  %3547 = vst [vmem:[%s14 + $0x18] sm:$0xff] %v3543
  // Predicated region
  $region54: #{mixed_op_forward.1} parent=0 // pred_check
    _
  $region55: #{mixed_op_forward.1} parent=0 // pred_check_branch
    %3549 = sbr.rel (0) target = $region57
  $region56: #{mixed_op_forward.1} parent=0 // pred_region
    _
  $region57: #{mixed_op_forward.1} parent=0 // pred_fallthru
    _
  // Predicated region
  $region58: #{mixed_op_forward.1} parent=0 // pred_check
    _
  $region59: #{mixed_op_forward.1} parent=0 // pred_check_branch
    %3551 = sbr.rel (0) target = $region61
  $region60: #{mixed_op_forward.1} parent=0 // pred_region
    _
  $region61: #{mixed_op_forward.1} parent=0 // pred_fallthru
    _

</llo_original>
